<compile_context>
chip_gen: v7x
topology: tpu7x:2x2x1
jax: 0.10.0
libtpu: 0.0.40
codegen_flags: <defaults>
</compile_context>

<pallas_src>
import functools

import jax
import jax.numpy as jnp
from jax import lax
from jax.experimental import pallas as pl
from jax.experimental.pallas import tpu as pltpu


CFG = dict(vocab=100, type_vocab=2, max_pos=64, hidden=32, heads=4,
           layers=2, intermediate=64, eps=1e-12)


# ------------------------------ in-kernel helpers ----------------------------

def _gelu(y):
    # TODO(synk): tanh approximation of GELU (HF default is erf-based).
    return 0.5 * y * (1.0 + jnp.tanh(0.7978845608028654 * (y + 0.044715 * y * y * y)))


def _layer_norm(y, g, b, eps):
    mu = jnp.mean(y, axis=-1, keepdims=True)
    var = jnp.mean((y - mu) * (y - mu), axis=-1, keepdims=True)
    return (y - mu) * lax.rsqrt(var + eps) * g + b


# --------------------------------- the kernel --------------------------------

def _bert_encoder_kernel(emb_ref, mask_ref, emb_g_ref, emb_b_ref,
                         w_qkv_ref, b_qkv_ref, wo_ref, bo_ref,
                         ln1_g_ref, ln1_b_ref,
                         w1_ref, b1_ref, w2_ref, b2_ref,
                         ln2_g_ref, ln2_b_ref,
                         o_ref, *, n_layers, n_heads, d_head, scale, eps):
    """One grid step == one batch element.  Weights and every intermediate
    activation are VMEM/vreg resident; nothing touches HBM until the final
    float32 store of the hidden state."""
    S = emb_ref.shape[1]
    H = emb_ref.shape[2]

    # Embedding LayerNorm (stats in f32).
    h = _layer_norm(emb_ref[0].astype(jnp.float32),
                    emb_g_ref[...], emb_b_ref[...], eps)

    add_mask = mask_ref[0]                              # (1, S) additive f32 mask

    for l in range(n_layers):                           # static unroll (L = 2)
        # ---- self-attention --------------------------------------------------
        x16 = h.astype(jnp.bfloat16)
        qkv = jnp.dot(x16, w_qkv_ref[l],
                      preferred_element_type=jnp.float32) + b_qkv_ref[l]
        # q / k / v come from static lane slices of the fused (S, 3H) projection.
        # TODO(synk): for real BERT sizes make the head a grid axis instead of
        #             this per-head lane-slice loop.
        ctx_heads = []
        for hd in range(n_heads):
            lo = hd * d_head
            qh = qkv[:, lo:lo + d_head].astype(jnp.bfloat16)
            kh = qkv[:, H + lo:H + lo + d_head].astype(jnp.bfloat16)
            vh = qkv[:, 2 * H + lo:2 * H + lo + d_head].astype(jnp.bfloat16)
            # s[i, j] = <q_i, k_j> : contract the head dim, no explicit transpose.
            s = lax.dot_general(qh, kh, (((1,), (1,)), ((), ())),
                                preferred_element_type=jnp.float32) * scale
            s = s + add_mask                            # broadcast over query rows
            s = s - jnp.max(s, axis=-1, keepdims=True)
            p = jnp.exp(s)
            p = p / jnp.sum(p, axis=-1, keepdims=True)  # exact division for parity
            ctx_heads.append(jnp.dot(p.astype(jnp.bfloat16), vh,
                                     preferred_element_type=jnp.float32))
        ctx = jnp.concatenate(ctx_heads, axis=-1)       # (S, H) f32

        # ---- attention output projection + residual + LayerNorm --------------
        attn_out = jnp.dot(ctx.astype(jnp.bfloat16), wo_ref[l],
                           preferred_element_type=jnp.float32) + bo_ref[l]
        h = _layer_norm(attn_out + h, ln1_g_ref[l], ln1_b_ref[l], eps)

        # ---- feed-forward + residual + LayerNorm ------------------------------
        ffn = jnp.dot(h.astype(jnp.bfloat16), w1_ref[l],
                      preferred_element_type=jnp.float32) + b1_ref[l]
        ffn = _gelu(ffn)
        ffn_out = jnp.dot(ffn.astype(jnp.bfloat16), w2_ref[l],
                          preferred_element_type=jnp.float32) + b2_ref[l]
        h = _layer_norm(ffn_out + h, ln2_g_ref[l], ln2_b_ref[l], eps)

    # Final hidden state written directly as float32.
    o_ref[0] = h


# -------------------------------- kernel wrapper ------------------------------

def _resident(arr):
    """Whole-array block whose block index never changes with the grid step, so
    Pallas DMAs it to VMEM once per core and keeps it resident across steps."""
    zeros = (0,) * arr.ndim
    return pl.BlockSpec(arr.shape, lambda b, _z=zeros: _z)


def bert_encoder(params, emb, ext_mask, cfg):
    """emb: (B, S, H) f32 pre-LN embedding sum; ext_mask: (B, 1, S) f32 additive."""
    B, S, H = emb.shape
    L, nH = cfg['layers'], cfg['heads']
    dh = H // nH

    kern = functools.partial(_bert_encoder_kernel,
                             n_layers=L, n_heads=nH, d_head=dh,
                             scale=1.0 / float(dh) ** 0.5, eps=cfg['eps'])

    weight_names = ('w_qkv', 'b_qkv', 'wo', 'bo', 'ln1_g', 'ln1_b',
                    'w1', 'b1', 'w2', 'b2', 'ln2_g', 'ln2_b')
    weights = [params[n] for n in weight_names]

    return pl.pallas_call(
        kern,
        out_shape=jax.ShapeDtypeStruct((B, S, H), jnp.float32),
        grid=(B,),
        in_specs=([pl.BlockSpec((1, S, H), lambda b: (b, 0, 0)),   # embeddings
                   pl.BlockSpec((1, 1, S), lambda b: (b, 0, 0)),   # additive mask
                   _resident(params['emb_ln_g']),
                   _resident(params['emb_ln_b'])]
                  + [_resident(w) for w in weights]),
        out_specs=pl.BlockSpec((1, S, H), lambda b: (b, 0, 0)),
        compiler_params=pltpu.CompilerParams(
            dimension_semantics=("parallel",)),
    )(emb, ext_mask, params['emb_ln_g'], params['emb_ln_b'], *weights)


# ---------------------------------- parameters --------------------------------

def init_params(key, cfg):
    H, I, L = cfg['hidden'], cfg['intermediate'], cfg['layers']
    ks = jax.random.split(key, 7)

    def w(k, shape, dtype=jnp.bfloat16):
        return (0.02 * jax.random.normal(k, shape, jnp.float32)).astype(dtype)

    return dict(
        word_emb=w(ks[0], (cfg['vocab'], H), jnp.float32),
        pos_emb=w(ks[1], (cfg['max_pos'], H), jnp.float32),
        type_emb=w(ks[2], (cfg['type_vocab'], H), jnp.float32),
        emb_ln_g=jnp.ones((1, H), jnp.float32),
        emb_ln_b=jnp.zeros((1, H), jnp.float32),
        # Per-layer weights stacked on a leading layer axis -> a handful of small
        # VMEM-resident arrays instead of per-layer pallas_calls.
        w_qkv=w(ks[3], (L, H, 3 * H)),
        b_qkv=jnp.zeros((L, 1, 3 * H), jnp.float32),
        wo=w(ks[4], (L, H, H)),
        bo=jnp.zeros((L, 1, H), jnp.float32),
        ln1_g=jnp.ones((L, 1, H), jnp.float32),
        ln1_b=jnp.zeros((L, 1, H), jnp.float32),
        w1=w(ks[5], (L, H, I)),
        b1=jnp.zeros((L, 1, I), jnp.float32),
        w2=w(ks[6], (L, I, H)),
        b2=jnp.zeros((L, 1, H), jnp.float32),
        ln2_g=jnp.ones((L, 1, H), jnp.float32),
        ln2_b=jnp.zeros((L, 1, H), jnp.float32),
    )


# ----------------------------------- forward ----------------------------------

def bert_forward(params, x, segs, mask, cfg):
    """Equivalent of `top_vec, _ = BertModel(x, segs, attention_mask=mask)`
    in eval / no-grad mode (dropout is identity; pooled output unused)."""
    B, S = x.shape
    # Embedding gathers are plain-JAX glue (tiny); LN + encoder run fused in Pallas.
    emb = (params['word_emb'][x]
           + params['pos_emb'][:S][None, :, :]
           + params['type_emb'][segs])                           # (B, S, H) f32
    # HF-style extended additive mask: 0 keep / -10000 pad, kept in f32.
    ext_mask = (1.0 - mask.astype(jnp.float32))[:, None, :] * -10000.0
    return bert_encoder(params, emb, ext_mask, cfg)


@jax.jit
def forward(params, x, segs, mask):
    return bert_forward(params, x, segs, mask, CFG)


# ------------------------------------ main -------------------------------------

if __name__ == "__main__":
    B, S = 2, 8
    key = jax.random.PRNGKey(0)
    k_param, k_x, k_seg = jax.random.split(key, 3)

    params = init_params(k_param, CFG)
    x = jax.random.randint(k_x, (B, S), 0, CFG['vocab'], dtype=jnp.int32)
    segs = jax.random.randint(k_seg, (B, S), 0, CFG['type_vocab'], dtype=jnp.int32)
    # Mask: last two positions of batch element 1 are padding.
    mask = jnp.ones((B, S), jnp.float32).at[1, -2:].set(0.0)

    top_vec = forward(params, x, segs, mask)
    jax.block_until_ready(top_vec)
    assert top_vec.shape == (B, S, CFG['hidden'])
    assert bool(jnp.all(jnp.isfinite(top_vec)))
    print("KERNEL_OK")
</pallas_src>

<mosaic_0001>
module attributes {stable_mosaic.version = 11 : i64} {
  func.func @_bert_encoder_kernel(%arg0: i32, %arg1: memref<1x8x32xf32, #tpu.memory_space<vmem>>, %arg2: memref<1x1x8xf32, #tpu.memory_space<vmem>>, %arg3: memref<1x32xf32, #tpu.memory_space<vmem>>, %arg4: memref<1x32xf32, #tpu.memory_space<vmem>>, %arg5: memref<2x32x96xbf16, #tpu.memory_space<vmem>>, %arg6: memref<2x1x96xf32, #tpu.memory_space<vmem>>, %arg7: memref<2x32x32xbf16, #tpu.memory_space<vmem>>, %arg8: memref<2x1x32xf32, #tpu.memory_space<vmem>>, %arg9: memref<2x1x32xf32, #tpu.memory_space<vmem>>, %arg10: memref<2x1x32xf32, #tpu.memory_space<vmem>>, %arg11: memref<2x32x64xbf16, #tpu.memory_space<vmem>>, %arg12: memref<2x1x64xf32, #tpu.memory_space<vmem>>, %arg13: memref<2x64x32xbf16, #tpu.memory_space<vmem>>, %arg14: memref<2x1x32xf32, #tpu.memory_space<vmem>>, %arg15: memref<2x1x32xf32, #tpu.memory_space<vmem>>, %arg16: memref<2x1x32xf32, #tpu.memory_space<vmem>>, %arg17: memref<1x8x32xf32, #tpu.memory_space<vmem>>) attributes {dimension_semantics = [#tpu.dimension_semantics<parallel>], iteration_bounds = array<i64: 2>, scalar_prefetch = 0 : i64, scratch_operands = 0 : i64, tpu.core_type = #tpu.core_type<tc>, window_params = [{transform_indices = @transform_0, window_bounds = array<i64: 1, 8, 32>}, {transform_indices = @transform_1, window_bounds = array<i64: 1, 1, 8>}, {pipeline_mode = #tpu.pipeline_mode<synchronous>, transform_indices = @transform_2, window_bounds = array<i64: 1, 32>}, {pipeline_mode = #tpu.pipeline_mode<synchronous>, transform_indices = @transform_3, window_bounds = array<i64: 1, 32>}, {pipeline_mode = #tpu.pipeline_mode<synchronous>, transform_indices = @transform_4, window_bounds = array<i64: 2, 32, 96>}, {pipeline_mode = #tpu.pipeline_mode<synchronous>, transform_indices = @transform_5, window_bounds = array<i64: 2, 1, 96>}, {pipeline_mode = #tpu.pipeline_mode<synchronous>, transform_indices = @transform_6, window_bounds = array<i64: 2, 32, 32>}, {pipeline_mode = #tpu.pipeline_mode<synchronous>, transform_indices = @transform_7, window_bounds = array<i64: 2, 1, 32>}, {pipeline_mode = #tpu.pipeline_mode<synchronous>, transform_indices = @transform_8, window_bounds = array<i64: 2, 1, 32>}, {pipeline_mode = #tpu.pipeline_mode<synchronous>, transform_indices = @transform_9, window_bounds = array<i64: 2, 1, 32>}, {pipeline_mode = #tpu.pipeline_mode<synchronous>, transform_indices = @transform_10, window_bounds = array<i64: 2, 32, 64>}, {pipeline_mode = #tpu.pipeline_mode<synchronous>, transform_indices = @transform_11, window_bounds = array<i64: 2, 1, 64>}, {pipeline_mode = #tpu.pipeline_mode<synchronous>, transform_indices = @transform_12, window_bounds = array<i64: 2, 64, 32>}, {pipeline_mode = #tpu.pipeline_mode<synchronous>, transform_indices = @transform_13, window_bounds = array<i64: 2, 1, 32>}, {pipeline_mode = #tpu.pipeline_mode<synchronous>, transform_indices = @transform_14, window_bounds = array<i64: 2, 1, 32>}, {pipeline_mode = #tpu.pipeline_mode<synchronous>, transform_indices = @transform_15, window_bounds = array<i64: 2, 1, 32>}, {transform_indices = @transform_16, window_bounds = array<i64: 1, 8, 32>}]} {
    %c0 = arith.constant 0 : index
    %c0_0 = arith.constant 0 : index
    %c0_1 = arith.constant 0 : index
    %0 = vector.load %arg1[%c0, %c0_0, %c0_1] : memref<1x8x32xf32, #tpu.memory_space<vmem>>, vector<1x8x32xf32>
    %1 = vector.shape_cast %0 : vector<1x8x32xf32> to vector<8x32xf32>
    %c0_2 = arith.constant 0 : index
    %c0_3 = arith.constant 0 : index
    %2 = vector.load %arg3[%c0_2, %c0_3] : memref<1x32xf32, #tpu.memory_space<vmem>>, vector<1x32xf32>
    %c0_4 = arith.constant 0 : index
    %c0_5 = arith.constant 0 : index
    %3 = vector.load %arg4[%c0_4, %c0_5] : memref<1x32xf32, #tpu.memory_space<vmem>>, vector<1x32xf32>
    %cst = arith.constant dense<0.000000e+00> : vector<8xf32>
    %4 = vector.multi_reduction <add>, %1, %cst [1] : vector<8x32xf32> to vector<8xf32>
    %5 = vector.shape_cast %4 : vector<8xf32> to vector<8x1xf32>
    %cst_6 = arith.constant 3.200000e+01 : f32
    %6 = vector.broadcast %cst_6 : f32 to vector<8x1xf32>
    %7 = arith.divf %5, %6 : vector<8x1xf32>
    %8 = vector.broadcast %7 : vector<8x1xf32> to vector<8x32xf32>
    %9 = arith.subf %1, %8 : vector<8x32xf32>
    %10 = vector.broadcast %7 : vector<8x1xf32> to vector<8x32xf32>
    %11 = arith.subf %1, %10 : vector<8x32xf32>
    %12 = arith.mulf %9, %11 : vector<8x32xf32>
    %cst_7 = arith.constant dense<0.000000e+00> : vector<8xf32>
    %13 = vector.multi_reduction <add>, %12, %cst_7 [1] : vector<8x32xf32> to vector<8xf32>
    %14 = vector.shape_cast %13 : vector<8xf32> to vector<8x1xf32>
    %cst_8 = arith.constant 3.200000e+01 : f32
    %15 = vector.broadcast %cst_8 : f32 to vector<8x1xf32>
    %16 = arith.divf %14, %15 : vector<8x1xf32>
    %17 = vector.broadcast %7 : vector<8x1xf32> to vector<8x32xf32>
    %18 = arith.subf %1, %17 : vector<8x32xf32>
    %cst_9 = arith.constant 9.99999996E-13 : f32
    %19 = vector.broadcast %cst_9 : f32 to vector<8x1xf32>
    %20 = arith.addf %16, %19 : vector<8x1xf32>
    %21 = math.rsqrt %20 : vector<8x1xf32>
    %22 = vector.broadcast %21 : vector<8x1xf32> to vector<8x32xf32>
    %23 = arith.mulf %18, %22 : vector<8x32xf32>
    %24 = vector.broadcast %2 : vector<1x32xf32> to vector<8x32xf32>
    %25 = arith.mulf %23, %24 : vector<8x32xf32>
    %26 = vector.broadcast %3 : vector<1x32xf32> to vector<8x32xf32>
    %27 = arith.addf %25, %26 : vector<8x32xf32>
    %c0_10 = arith.constant 0 : index
    %c0_11 = arith.constant 0 : index
    %c0_12 = arith.constant 0 : index
    %28 = vector.load %arg2[%c0_10, %c0_11, %c0_12] : memref<1x1x8xf32, #tpu.memory_space<vmem>>, vector<1x1x8xf32>
    %29 = vector.shape_cast %28 : vector<1x1x8xf32> to vector<1x8xf32>
    %30 = arith.truncf %27 : vector<8x32xf32> to vector<8x32xbf16>
    %c0_13 = arith.constant 0 : index
    %c0_14 = arith.constant 0 : index
    %c0_15 = arith.constant 0 : index
    %31 = vector.load %arg5[%c0_13, %c0_14, %c0_15] : memref<2x32x96xbf16, #tpu.memory_space<vmem>>, vector<1x32x96xbf16>
    %32 = vector.shape_cast %31 : vector<1x32x96xbf16> to vector<32x96xbf16>
    %cst_16 = arith.constant dense<0.000000e+00> : vector<8x96xf32>
    %33 = tpu.matmul %30, %32, %cst_16 {dimension_numbers = #tpu.dot_dimension_numbers<[1], [0], [0], [1], [0, 0, 1, 1], [], []>} : vector<8x32xbf16>, vector<32x96xbf16>, vector<8x96xf32> -> vector<8x96xf32>
    %c0_17 = arith.constant 0 : index
    %c0_18 = arith.constant 0 : index
    %c0_19 = arith.constant 0 : index
    %34 = vector.load %arg6[%c0_17, %c0_18, %c0_19] : memref<2x1x96xf32, #tpu.memory_space<vmem>>, vector<1x1x96xf32>
    %35 = vector.shape_cast %34 : vector<1x1x96xf32> to vector<1x96xf32>
    %36 = vector.broadcast %35 : vector<1x96xf32> to vector<8x96xf32>
    %37 = arith.addf %33, %36 : vector<8x96xf32>
    %38 = vector.extract_strided_slice %37 {offsets = [0, 0], sizes = [8, 8], strides = [1, 1]} : vector<8x96xf32> to vector<8x8xf32>
    %39 = arith.truncf %38 : vector<8x8xf32> to vector<8x8xbf16>
    %40 = vector.extract_strided_slice %37 {offsets = [0, 32], sizes = [8, 8], strides = [1, 1]} : vector<8x96xf32> to vector<8x8xf32>
    %41 = arith.truncf %40 : vector<8x8xf32> to vector<8x8xbf16>
    %42 = vector.extract_strided_slice %37 {offsets = [0, 64], sizes = [8, 8], strides = [1, 1]} : vector<8x96xf32> to vector<8x8xf32>
    %43 = arith.truncf %42 : vector<8x8xf32> to vector<8x8xbf16>
    %cst_20 = arith.constant dense<0.000000e+00> : vector<8x8xf32>
    %44 = tpu.matmul %39, %41, %cst_20 {dimension_numbers = #tpu.dot_dimension_numbers<[1], [1], [0], [0], [0, 0, 1, 0], [], []>} : vector<8x8xbf16>, vector<8x8xbf16>, vector<8x8xf32> -> vector<8x8xf32>
    %cst_21 = arith.constant 0.353553385 : f32
    %45 = vector.broadcast %cst_21 : f32 to vector<8x8xf32>
    %46 = arith.mulf %44, %45 : vector<8x8xf32>
    %47 = vector.broadcast %29 : vector<1x8xf32> to vector<8x8xf32>
    %48 = arith.addf %46, %47 : vector<8x8xf32>
    %cst_22 = arith.constant dense<0xFF800000> : vector<8xf32>
    %49 = vector.multi_reduction <maximumf>, %48, %cst_22 [1] : vector<8x8xf32> to vector<8xf32>
    %50 = vector.shape_cast %49 : vector<8xf32> to vector<8x1xf32>
    %51 = vector.broadcast %50 : vector<8x1xf32> to vector<8x8xf32>
    %52 = arith.subf %48, %51 : vector<8x8xf32>
    %53 = math.exp %52 : vector<8x8xf32>
    %cst_23 = arith.constant dense<0.000000e+00> : vector<8xf32>
    %54 = vector.multi_reduction <add>, %53, %cst_23 [1] : vector<8x8xf32> to vector<8xf32>
    %55 = vector.shape_cast %54 : vector<8xf32> to vector<8x1xf32>
    %56 = vector.broadcast %55 : vector<8x1xf32> to vector<8x8xf32>
    %57 = arith.divf %53, %56 : vector<8x8xf32>
    %58 = arith.truncf %57 : vector<8x8xf32> to vector<8x8xbf16>
    %cst_24 = arith.constant dense<0.000000e+00> : vector<8x8xf32>
    %59 = tpu.matmul %58, %43, %cst_24 {dimension_numbers = #tpu.dot_dimension_numbers<[1], [0], [0], [1], [0, 0, 1, 1], [], []>} : vector<8x8xbf16>, vector<8x8xbf16>, vector<8x8xf32> -> vector<8x8xf32>
    %60 = vector.extract_strided_slice %37 {offsets = [0, 8], sizes = [8, 8], strides = [1, 1]} : vector<8x96xf32> to vector<8x8xf32>
    %61 = arith.truncf %60 : vector<8x8xf32> to vector<8x8xbf16>
    %62 = vector.extract_strided_slice %37 {offsets = [0, 40], sizes = [8, 8], strides = [1, 1]} : vector<8x96xf32> to vector<8x8xf32>
    %63 = arith.truncf %62 : vector<8x8xf32> to vector<8x8xbf16>
    %64 = vector.extract_strided_slice %37 {offsets = [0, 72], sizes = [8, 8], strides = [1, 1]} : vector<8x96xf32> to vector<8x8xf32>
    %65 = arith.truncf %64 : vector<8x8xf32> to vector<8x8xbf16>
    %cst_25 = arith.constant dense<0.000000e+00> : vector<8x8xf32>
    %66 = tpu.matmul %61, %63, %cst_25 {dimension_numbers = #tpu.dot_dimension_numbers<[1], [1], [0], [0], [0, 0, 1, 0], [], []>} : vector<8x8xbf16>, vector<8x8xbf16>, vector<8x8xf32> -> vector<8x8xf32>
    %cst_26 = arith.constant 0.353553385 : f32
    %67 = vector.broadcast %cst_26 : f32 to vector<8x8xf32>
    %68 = arith.mulf %66, %67 : vector<8x8xf32>
    %69 = vector.broadcast %29 : vector<1x8xf32> to vector<8x8xf32>
    %70 = arith.addf %68, %69 : vector<8x8xf32>
    %cst_27 = arith.constant dense<0xFF800000> : vector<8xf32>
    %71 = vector.multi_reduction <maximumf>, %70, %cst_27 [1] : vector<8x8xf32> to vector<8xf32>
    %72 = vector.shape_cast %71 : vector<8xf32> to vector<8x1xf32>
    %73 = vector.broadcast %72 : vector<8x1xf32> to vector<8x8xf32>
    %74 = arith.subf %70, %73 : vector<8x8xf32>
    %75 = math.exp %74 : vector<8x8xf32>
    %cst_28 = arith.constant dense<0.000000e+00> : vector<8xf32>
    %76 = vector.multi_reduction <add>, %75, %cst_28 [1] : vector<8x8xf32> to vector<8xf32>
    %77 = vector.shape_cast %76 : vector<8xf32> to vector<8x1xf32>
    %78 = vector.broadcast %77 : vector<8x1xf32> to vector<8x8xf32>
    %79 = arith.divf %75, %78 : vector<8x8xf32>
    %80 = arith.truncf %79 : vector<8x8xf32> to vector<8x8xbf16>
    %cst_29 = arith.constant dense<0.000000e+00> : vector<8x8xf32>
    %81 = tpu.matmul %80, %65, %cst_29 {dimension_numbers = #tpu.dot_dimension_numbers<[1], [0], [0], [1], [0, 0, 1, 1], [], []>} : vector<8x8xbf16>, vector<8x8xbf16>, vector<8x8xf32> -> vector<8x8xf32>
    %82 = vector.extract_strided_slice %37 {offsets = [0, 16], sizes = [8, 8], strides = [1, 1]} : vector<8x96xf32> to vector<8x8xf32>
    %83 = arith.truncf %82 : vector<8x8xf32> to vector<8x8xbf16>
    %84 = vector.extract_strided_slice %37 {offsets = [0, 48], sizes = [8, 8], strides = [1, 1]} : vector<8x96xf32> to vector<8x8xf32>
    %85 = arith.truncf %84 : vector<8x8xf32> to vector<8x8xbf16>
    %86 = vector.extract_strided_slice %37 {offsets = [0, 80], sizes = [8, 8], strides = [1, 1]} : vector<8x96xf32> to vector<8x8xf32>
    %87 = arith.truncf %86 : vector<8x8xf32> to vector<8x8xbf16>
    %cst_30 = arith.constant dense<0.000000e+00> : vector<8x8xf32>
    %88 = tpu.matmul %83, %85, %cst_30 {dimension_numbers = #tpu.dot_dimension_numbers<[1], [1], [0], [0], [0, 0, 1, 0], [], []>} : vector<8x8xbf16>, vector<8x8xbf16>, vector<8x8xf32> -> vector<8x8xf32>
    %cst_31 = arith.constant 0.353553385 : f32
    %89 = vector.broadcast %cst_31 : f32 to vector<8x8xf32>
    %90 = arith.mulf %88, %89 : vector<8x8xf32>
    %91 = vector.broadcast %29 : vector<1x8xf32> to vector<8x8xf32>
    %92 = arith.addf %90, %91 : vector<8x8xf32>
    %cst_32 = arith.constant dense<0xFF800000> : vector<8xf32>
    %93 = vector.multi_reduction <maximumf>, %92, %cst_32 [1] : vector<8x8xf32> to vector<8xf32>
    %94 = vector.shape_cast %93 : vector<8xf32> to vector<8x1xf32>
    %95 = vector.broadcast %94 : vector<8x1xf32> to vector<8x8xf32>
    %96 = arith.subf %92, %95 : vector<8x8xf32>
    %97 = math.exp %96 : vector<8x8xf32>
    %cst_33 = arith.constant dense<0.000000e+00> : vector<8xf32>
    %98 = vector.multi_reduction <add>, %97, %cst_33 [1] : vector<8x8xf32> to vector<8xf32>
    %99 = vector.shape_cast %98 : vector<8xf32> to vector<8x1xf32>
    %100 = vector.broadcast %99 : vector<8x1xf32> to vector<8x8xf32>
    %101 = arith.divf %97, %100 : vector<8x8xf32>
    %102 = arith.truncf %101 : vector<8x8xf32> to vector<8x8xbf16>
    %cst_34 = arith.constant dense<0.000000e+00> : vector<8x8xf32>
    %103 = tpu.matmul %102, %87, %cst_34 {dimension_numbers = #tpu.dot_dimension_numbers<[1], [0], [0], [1], [0, 0, 1, 1], [], []>} : vector<8x8xbf16>, vector<8x8xbf16>, vector<8x8xf32> -> vector<8x8xf32>
    %104 = vector.extract_strided_slice %37 {offsets = [0, 24], sizes = [8, 8], strides = [1, 1]} : vector<8x96xf32> to vector<8x8xf32>
    %105 = arith.truncf %104 : vector<8x8xf32> to vector<8x8xbf16>
    %106 = vector.extract_strided_slice %37 {offsets = [0, 56], sizes = [8, 8], strides = [1, 1]} : vector<8x96xf32> to vector<8x8xf32>
    %107 = arith.truncf %106 : vector<8x8xf32> to vector<8x8xbf16>
    %108 = vector.extract_strided_slice %37 {offsets = [0, 88], sizes = [8, 8], strides = [1, 1]} : vector<8x96xf32> to vector<8x8xf32>
    %109 = arith.truncf %108 : vector<8x8xf32> to vector<8x8xbf16>
    %cst_35 = arith.constant dense<0.000000e+00> : vector<8x8xf32>
    %110 = tpu.matmul %105, %107, %cst_35 {dimension_numbers = #tpu.dot_dimension_numbers<[1], [1], [0], [0], [0, 0, 1, 0], [], []>} : vector<8x8xbf16>, vector<8x8xbf16>, vector<8x8xf32> -> vector<8x8xf32>
    %cst_36 = arith.constant 0.353553385 : f32
    %111 = vector.broadcast %cst_36 : f32 to vector<8x8xf32>
    %112 = arith.mulf %110, %111 : vector<8x8xf32>
    %113 = vector.broadcast %29 : vector<1x8xf32> to vector<8x8xf32>
    %114 = arith.addf %112, %113 : vector<8x8xf32>
    %cst_37 = arith.constant dense<0xFF800000> : vector<8xf32>
    %115 = vector.multi_reduction <maximumf>, %114, %cst_37 [1] : vector<8x8xf32> to vector<8xf32>
    %116 = vector.shape_cast %115 : vector<8xf32> to vector<8x1xf32>
    %117 = vector.broadcast %116 : vector<8x1xf32> to vector<8x8xf32>
    %118 = arith.subf %114, %117 : vector<8x8xf32>
    %119 = math.exp %118 : vector<8x8xf32>
    %cst_38 = arith.constant dense<0.000000e+00> : vector<8xf32>
    %120 = vector.multi_reduction <add>, %119, %cst_38 [1] : vector<8x8xf32> to vector<8xf32>
    %121 = vector.shape_cast %120 : vector<8xf32> to vector<8x1xf32>
    %122 = vector.broadcast %121 : vector<8x1xf32> to vector<8x8xf32>
    %123 = arith.divf %119, %122 : vector<8x8xf32>
    %124 = arith.truncf %123 : vector<8x8xf32> to vector<8x8xbf16>
    %cst_39 = arith.constant dense<0.000000e+00> : vector<8x8xf32>
    %125 = tpu.matmul %124, %109, %cst_39 {dimension_numbers = #tpu.dot_dimension_numbers<[1], [0], [0], [1], [0, 0, 1, 1], [], []>} : vector<8x8xbf16>, vector<8x8xbf16>, vector<8x8xf32> -> vector<8x8xf32>
    %126 = tpu.concatenate %59, %81, %103, %125 in 1 : vector<8x8xf32>, vector<8x8xf32>, vector<8x8xf32>, vector<8x8xf32> -> vector<8x32xf32>
    %127 = arith.truncf %126 : vector<8x32xf32> to vector<8x32xbf16>
    %c0_40 = arith.constant 0 : index
    %c0_41 = arith.constant 0 : index
    %c0_42 = arith.constant 0 : index
    %128 = vector.load %arg7[%c0_40, %c0_41, %c0_42] : memref<2x32x32xbf16, #tpu.memory_space<vmem>>, vector<1x32x32xbf16>
    %129 = vector.shape_cast %128 : vector<1x32x32xbf16> to vector<32x32xbf16>
    %cst_43 = arith.constant dense<0.000000e+00> : vector<8x32xf32>
    %130 = tpu.matmul %127, %129, %cst_43 {dimension_numbers = #tpu.dot_dimension_numbers<[1], [0], [0], [1], [0, 0, 1, 1], [], []>} : vector<8x32xbf16>, vector<32x32xbf16>, vector<8x32xf32> -> vector<8x32xf32>
    %c0_44 = arith.constant 0 : index
    %c0_45 = arith.constant 0 : index
    %c0_46 = arith.constant 0 : index
    %131 = vector.load %arg8[%c0_44, %c0_45, %c0_46] : memref<2x1x32xf32, #tpu.memory_space<vmem>>, vector<1x1x32xf32>
    %132 = vector.shape_cast %131 : vector<1x1x32xf32> to vector<1x32xf32>
    %133 = vector.broadcast %132 : vector<1x32xf32> to vector<8x32xf32>
    %134 = arith.addf %130, %133 : vector<8x32xf32>
    %135 = arith.addf %134, %27 : vector<8x32xf32>
    %c0_47 = arith.constant 0 : index
    %c0_48 = arith.constant 0 : index
    %c0_49 = arith.constant 0 : index
    %136 = vector.load %arg9[%c0_47, %c0_48, %c0_49] : memref<2x1x32xf32, #tpu.memory_space<vmem>>, vector<1x1x32xf32>
    %137 = vector.shape_cast %136 : vector<1x1x32xf32> to vector<1x32xf32>
    %c0_50 = arith.constant 0 : index
    %c0_51 = arith.constant 0 : index
    %c0_52 = arith.constant 0 : index
    %138 = vector.load %arg10[%c0_50, %c0_51, %c0_52] : memref<2x1x32xf32, #tpu.memory_space<vmem>>, vector<1x1x32xf32>
    %139 = vector.shape_cast %138 : vector<1x1x32xf32> to vector<1x32xf32>
    %cst_53 = arith.constant dense<0.000000e+00> : vector<8xf32>
    %140 = vector.multi_reduction <add>, %135, %cst_53 [1] : vector<8x32xf32> to vector<8xf32>
    %141 = vector.shape_cast %140 : vector<8xf32> to vector<8x1xf32>
    %cst_54 = arith.constant 3.200000e+01 : f32
    %142 = vector.broadcast %cst_54 : f32 to vector<8x1xf32>
    %143 = arith.divf %141, %142 : vector<8x1xf32>
    %144 = vector.broadcast %143 : vector<8x1xf32> to vector<8x32xf32>
    %145 = arith.subf %135, %144 : vector<8x32xf32>
    %146 = vector.broadcast %143 : vector<8x1xf32> to vector<8x32xf32>
    %147 = arith.subf %135, %146 : vector<8x32xf32>
    %148 = arith.mulf %145, %147 : vector<8x32xf32>
    %cst_55 = arith.constant dense<0.000000e+00> : vector<8xf32>
    %149 = vector.multi_reduction <add>, %148, %cst_55 [1] : vector<8x32xf32> to vector<8xf32>
    %150 = vector.shape_cast %149 : vector<8xf32> to vector<8x1xf32>
    %cst_56 = arith.constant 3.200000e+01 : f32
    %151 = vector.broadcast %cst_56 : f32 to vector<8x1xf32>
    %152 = arith.divf %150, %151 : vector<8x1xf32>
    %153 = vector.broadcast %143 : vector<8x1xf32> to vector<8x32xf32>
    %154 = arith.subf %135, %153 : vector<8x32xf32>
    %cst_57 = arith.constant 9.99999996E-13 : f32
    %155 = vector.broadcast %cst_57 : f32 to vector<8x1xf32>
    %156 = arith.addf %152, %155 : vector<8x1xf32>
    %157 = math.rsqrt %156 : vector<8x1xf32>
    %158 = vector.broadcast %157 : vector<8x1xf32> to vector<8x32xf32>
    %159 = arith.mulf %154, %158 : vector<8x32xf32>
    %160 = vector.broadcast %137 : vector<1x32xf32> to vector<8x32xf32>
    %161 = arith.mulf %159, %160 : vector<8x32xf32>
    %162 = vector.broadcast %139 : vector<1x32xf32> to vector<8x32xf32>
    %163 = arith.addf %161, %162 : vector<8x32xf32>
    %164 = arith.truncf %163 : vector<8x32xf32> to vector<8x32xbf16>
    %c0_58 = arith.constant 0 : index
    %c0_59 = arith.constant 0 : index
    %c0_60 = arith.constant 0 : index
    %165 = vector.load %arg11[%c0_58, %c0_59, %c0_60] : memref<2x32x64xbf16, #tpu.memory_space<vmem>>, vector<1x32x64xbf16>
    %166 = vector.shape_cast %165 : vector<1x32x64xbf16> to vector<32x64xbf16>
    %cst_61 = arith.constant dense<0.000000e+00> : vector<8x64xf32>
    %167 = tpu.matmul %164, %166, %cst_61 {dimension_numbers = #tpu.dot_dimension_numbers<[1], [0], [0], [1], [0, 0, 1, 1], [], []>} : vector<8x32xbf16>, vector<32x64xbf16>, vector<8x64xf32> -> vector<8x64xf32>
    %c0_62 = arith.constant 0 : index
    %c0_63 = arith.constant 0 : index
    %c0_64 = arith.constant 0 : index
    %168 = vector.load %arg12[%c0_62, %c0_63, %c0_64] : memref<2x1x64xf32, #tpu.memory_space<vmem>>, vector<1x1x64xf32>
    %169 = vector.shape_cast %168 : vector<1x1x64xf32> to vector<1x64xf32>
    %170 = vector.broadcast %169 : vector<1x64xf32> to vector<8x64xf32>
    %171 = arith.addf %167, %170 : vector<8x64xf32>
    %cst_65 = arith.constant 5.000000e-01 : f32
    %172 = vector.broadcast %cst_65 : f32 to vector<8x64xf32>
    %173 = arith.mulf %172, %171 : vector<8x64xf32>
    %cst_66 = arith.constant 4.471500e-02 : f32
    %174 = vector.broadcast %cst_66 : f32 to vector<8x64xf32>
    %175 = arith.mulf %174, %171 : vector<8x64xf32>
    %176 = arith.mulf %175, %171 : vector<8x64xf32>
    %177 = arith.mulf %176, %171 : vector<8x64xf32>
    %178 = arith.addf %171, %177 : vector<8x64xf32>
    %cst_67 = arith.constant 0.797884583 : f32
    %179 = vector.broadcast %cst_67 : f32 to vector<8x64xf32>
    %180 = arith.mulf %179, %178 : vector<8x64xf32>
    %181 = math.tanh %180 : vector<8x64xf32>
    %cst_68 = arith.constant 1.000000e+00 : f32
    %182 = vector.broadcast %cst_68 : f32 to vector<8x64xf32>
    %183 = arith.addf %182, %181 : vector<8x64xf32>
    %184 = arith.mulf %173, %183 : vector<8x64xf32>
    %185 = arith.truncf %184 : vector<8x64xf32> to vector<8x64xbf16>
    %c0_69 = arith.constant 0 : index
    %c0_70 = arith.constant 0 : index
    %c0_71 = arith.constant 0 : index
    %186 = vector.load %arg13[%c0_69, %c0_70, %c0_71] : memref<2x64x32xbf16, #tpu.memory_space<vmem>>, vector<1x64x32xbf16>
    %187 = vector.shape_cast %186 : vector<1x64x32xbf16> to vector<64x32xbf16>
    %cst_72 = arith.constant dense<0.000000e+00> : vector<8x32xf32>
    %188 = tpu.matmul %185, %187, %cst_72 {dimension_numbers = #tpu.dot_dimension_numbers<[1], [0], [0], [1], [0, 0, 1, 1], [], []>} : vector<8x64xbf16>, vector<64x32xbf16>, vector<8x32xf32> -> vector<8x32xf32>
    %c0_73 = arith.constant 0 : index
    %c0_74 = arith.constant 0 : index
    %c0_75 = arith.constant 0 : index
    %189 = vector.load %arg14[%c0_73, %c0_74, %c0_75] : memref<2x1x32xf32, #tpu.memory_space<vmem>>, vector<1x1x32xf32>
    %190 = vector.shape_cast %189 : vector<1x1x32xf32> to vector<1x32xf32>
    %191 = vector.broadcast %190 : vector<1x32xf32> to vector<8x32xf32>
    %192 = arith.addf %188, %191 : vector<8x32xf32>
    %193 = arith.addf %192, %163 : vector<8x32xf32>
    %c0_76 = arith.constant 0 : index
    %c0_77 = arith.constant 0 : index
    %c0_78 = arith.constant 0 : index
    %194 = vector.load %arg15[%c0_76, %c0_77, %c0_78] : memref<2x1x32xf32, #tpu.memory_space<vmem>>, vector<1x1x32xf32>
    %195 = vector.shape_cast %194 : vector<1x1x32xf32> to vector<1x32xf32>
    %c0_79 = arith.constant 0 : index
    %c0_80 = arith.constant 0 : index
    %c0_81 = arith.constant 0 : index
    %196 = vector.load %arg16[%c0_79, %c0_80, %c0_81] : memref<2x1x32xf32, #tpu.memory_space<vmem>>, vector<1x1x32xf32>
    %197 = vector.shape_cast %196 : vector<1x1x32xf32> to vector<1x32xf32>
    %cst_82 = arith.constant dense<0.000000e+00> : vector<8xf32>
    %198 = vector.multi_reduction <add>, %193, %cst_82 [1] : vector<8x32xf32> to vector<8xf32>
    %199 = vector.shape_cast %198 : vector<8xf32> to vector<8x1xf32>
    %cst_83 = arith.constant 3.200000e+01 : f32
    %200 = vector.broadcast %cst_83 : f32 to vector<8x1xf32>
    %201 = arith.divf %199, %200 : vector<8x1xf32>
    %202 = vector.broadcast %201 : vector<8x1xf32> to vector<8x32xf32>
    %203 = arith.subf %193, %202 : vector<8x32xf32>
    %204 = vector.broadcast %201 : vector<8x1xf32> to vector<8x32xf32>
    %205 = arith.subf %193, %204 : vector<8x32xf32>
    %206 = arith.mulf %203, %205 : vector<8x32xf32>
    %cst_84 = arith.constant dense<0.000000e+00> : vector<8xf32>
    %207 = vector.multi_reduction <add>, %206, %cst_84 [1] : vector<8x32xf32> to vector<8xf32>
    %208 = vector.shape_cast %207 : vector<8xf32> to vector<8x1xf32>
    %cst_85 = arith.constant 3.200000e+01 : f32
    %209 = vector.broadcast %cst_85 : f32 to vector<8x1xf32>
    %210 = arith.divf %208, %209 : vector<8x1xf32>
    %211 = vector.broadcast %201 : vector<8x1xf32> to vector<8x32xf32>
    %212 = arith.subf %193, %211 : vector<8x32xf32>
    %cst_86 = arith.constant 9.99999996E-13 : f32
    %213 = vector.broadcast %cst_86 : f32 to vector<8x1xf32>
    %214 = arith.addf %210, %213 : vector<8x1xf32>
    %215 = math.rsqrt %214 : vector<8x1xf32>
    %216 = vector.broadcast %215 : vector<8x1xf32> to vector<8x32xf32>
    %217 = arith.mulf %212, %216 : vector<8x32xf32>
    %218 = vector.broadcast %195 : vector<1x32xf32> to vector<8x32xf32>
    %219 = arith.mulf %217, %218 : vector<8x32xf32>
    %220 = vector.broadcast %197 : vector<1x32xf32> to vector<8x32xf32>
    %221 = arith.addf %219, %220 : vector<8x32xf32>
    %222 = arith.truncf %221 : vector<8x32xf32> to vector<8x32xbf16>
    %c1 = arith.constant 1 : index
    %c0_87 = arith.constant 0 : index
    %c0_88 = arith.constant 0 : index
    %223 = vector.load %arg5[%c1, %c0_87, %c0_88] : memref<2x32x96xbf16, #tpu.memory_space<vmem>>, vector<1x32x96xbf16>
    %224 = vector.shape_cast %223 : vector<1x32x96xbf16> to vector<32x96xbf16>
    %cst_89 = arith.constant dense<0.000000e+00> : vector<8x96xf32>
    %225 = tpu.matmul %222, %224, %cst_89 {dimension_numbers = #tpu.dot_dimension_numbers<[1], [0], [0], [1], [0, 0, 1, 1], [], []>} : vector<8x32xbf16>, vector<32x96xbf16>, vector<8x96xf32> -> vector<8x96xf32>
    %c1_90 = arith.constant 1 : index
    %c0_91 = arith.constant 0 : index
    %c0_92 = arith.constant 0 : index
    %226 = vector.load %arg6[%c1_90, %c0_91, %c0_92] : memref<2x1x96xf32, #tpu.memory_space<vmem>>, vector<1x1x96xf32>
    %227 = vector.shape_cast %226 : vector<1x1x96xf32> to vector<1x96xf32>
    %228 = vector.broadcast %227 : vector<1x96xf32> to vector<8x96xf32>
    %229 = arith.addf %225, %228 : vector<8x96xf32>
    %230 = vector.extract_strided_slice %229 {offsets = [0, 0], sizes = [8, 8], strides = [1, 1]} : vector<8x96xf32> to vector<8x8xf32>
    %231 = arith.truncf %230 : vector<8x8xf32> to vector<8x8xbf16>
    %232 = vector.extract_strided_slice %229 {offsets = [0, 32], sizes = [8, 8], strides = [1, 1]} : vector<8x96xf32> to vector<8x8xf32>
    %233 = arith.truncf %232 : vector<8x8xf32> to vector<8x8xbf16>
    %234 = vector.extract_strided_slice %229 {offsets = [0, 64], sizes = [8, 8], strides = [1, 1]} : vector<8x96xf32> to vector<8x8xf32>
    %235 = arith.truncf %234 : vector<8x8xf32> to vector<8x8xbf16>
    %cst_93 = arith.constant dense<0.000000e+00> : vector<8x8xf32>
    %236 = tpu.matmul %231, %233, %cst_93 {dimension_numbers = #tpu.dot_dimension_numbers<[1], [1], [0], [0], [0, 0, 1, 0], [], []>} : vector<8x8xbf16>, vector<8x8xbf16>, vector<8x8xf32> -> vector<8x8xf32>
    %cst_94 = arith.constant 0.353553385 : f32
    %237 = vector.broadcast %cst_94 : f32 to vector<8x8xf32>
    %238 = arith.mulf %236, %237 : vector<8x8xf32>
    %239 = vector.broadcast %29 : vector<1x8xf32> to vector<8x8xf32>
    %240 = arith.addf %238, %239 : vector<8x8xf32>
    %cst_95 = arith.constant dense<0xFF800000> : vector<8xf32>
    %241 = vector.multi_reduction <maximumf>, %240, %cst_95 [1] : vector<8x8xf32> to vector<8xf32>
    %242 = vector.shape_cast %241 : vector<8xf32> to vector<8x1xf32>
    %243 = vector.broadcast %242 : vector<8x1xf32> to vector<8x8xf32>
    %244 = arith.subf %240, %243 : vector<8x8xf32>
    %245 = math.exp %244 : vector<8x8xf32>
    %cst_96 = arith.constant dense<0.000000e+00> : vector<8xf32>
    %246 = vector.multi_reduction <add>, %245, %cst_96 [1] : vector<8x8xf32> to vector<8xf32>
    %247 = vector.shape_cast %246 : vector<8xf32> to vector<8x1xf32>
    %248 = vector.broadcast %247 : vector<8x1xf32> to vector<8x8xf32>
    %249 = arith.divf %245, %248 : vector<8x8xf32>
    %250 = arith.truncf %249 : vector<8x8xf32> to vector<8x8xbf16>
    %cst_97 = arith.constant dense<0.000000e+00> : vector<8x8xf32>
    %251 = tpu.matmul %250, %235, %cst_97 {dimension_numbers = #tpu.dot_dimension_numbers<[1], [0], [0], [1], [0, 0, 1, 1], [], []>} : vector<8x8xbf16>, vector<8x8xbf16>, vector<8x8xf32> -> vector<8x8xf32>
    %252 = vector.extract_strided_slice %229 {offsets = [0, 8], sizes = [8, 8], strides = [1, 1]} : vector<8x96xf32> to vector<8x8xf32>
    %253 = arith.truncf %252 : vector<8x8xf32> to vector<8x8xbf16>
    %254 = vector.extract_strided_slice %229 {offsets = [0, 40], sizes = [8, 8], strides = [1, 1]} : vector<8x96xf32> to vector<8x8xf32>
    %255 = arith.truncf %254 : vector<8x8xf32> to vector<8x8xbf16>
    %256 = vector.extract_strided_slice %229 {offsets = [0, 72], sizes = [8, 8], strides = [1, 1]} : vector<8x96xf32> to vector<8x8xf32>
    %257 = arith.truncf %256 : vector<8x8xf32> to vector<8x8xbf16>
    %cst_98 = arith.constant dense<0.000000e+00> : vector<8x8xf32>
    %258 = tpu.matmul %253, %255, %cst_98 {dimension_numbers = #tpu.dot_dimension_numbers<[1], [1], [0], [0], [0, 0, 1, 0], [], []>} : vector<8x8xbf16>, vector<8x8xbf16>, vector<8x8xf32> -> vector<8x8xf32>
    %cst_99 = arith.constant 0.353553385 : f32
    %259 = vector.broadcast %cst_99 : f32 to vector<8x8xf32>
    %260 = arith.mulf %258, %259 : vector<8x8xf32>
    %261 = vector.broadcast %29 : vector<1x8xf32> to vector<8x8xf32>
    %262 = arith.addf %260, %261 : vector<8x8xf32>
    %cst_100 = arith.constant dense<0xFF800000> : vector<8xf32>
    %263 = vector.multi_reduction <maximumf>, %262, %cst_100 [1] : vector<8x8xf32> to vector<8xf32>
    %264 = vector.shape_cast %263 : vector<8xf32> to vector<8x1xf32>
    %265 = vector.broadcast %264 : vector<8x1xf32> to vector<8x8xf32>
    %266 = arith.subf %262, %265 : vector<8x8xf32>
    %267 = math.exp %266 : vector<8x8xf32>
    %cst_101 = arith.constant dense<0.000000e+00> : vector<8xf32>
    %268 = vector.multi_reduction <add>, %267, %cst_101 [1] : vector<8x8xf32> to vector<8xf32>
    %269 = vector.shape_cast %268 : vector<8xf32> to vector<8x1xf32>
    %270 = vector.broadcast %269 : vector<8x1xf32> to vector<8x8xf32>
    %271 = arith.divf %267, %270 : vector<8x8xf32>
    %272 = arith.truncf %271 : vector<8x8xf32> to vector<8x8xbf16>
    %cst_102 = arith.constant dense<0.000000e+00> : vector<8x8xf32>
    %273 = tpu.matmul %272, %257, %cst_102 {dimension_numbers = #tpu.dot_dimension_numbers<[1], [0], [0], [1], [0, 0, 1, 1], [], []>} : vector<8x8xbf16>, vector<8x8xbf16>, vector<8x8xf32> -> vector<8x8xf32>
    %274 = vector.extract_strided_slice %229 {offsets = [0, 16], sizes = [8, 8], strides = [1, 1]} : vector<8x96xf32> to vector<8x8xf32>
    %275 = arith.truncf %274 : vector<8x8xf32> to vector<8x8xbf16>
    %276 = vector.extract_strided_slice %229 {offsets = [0, 48], sizes = [8, 8], strides = [1, 1]} : vector<8x96xf32> to vector<8x8xf32>
    %277 = arith.truncf %276 : vector<8x8xf32> to vector<8x8xbf16>
    %278 = vector.extract_strided_slice %229 {offsets = [0, 80], sizes = [8, 8], strides = [1, 1]} : vector<8x96xf32> to vector<8x8xf32>
    %279 = arith.truncf %278 : vector<8x8xf32> to vector<8x8xbf16>
    %cst_103 = arith.constant dense<0.000000e+00> : vector<8x8xf32>
    %280 = tpu.matmul %275, %277, %cst_103 {dimension_numbers = #tpu.dot_dimension_numbers<[1], [1], [0], [0], [0, 0, 1, 0], [], []>} : vector<8x8xbf16>, vector<8x8xbf16>, vector<8x8xf32> -> vector<8x8xf32>
    %cst_104 = arith.constant 0.353553385 : f32
    %281 = vector.broadcast %cst_104 : f32 to vector<8x8xf32>
    %282 = arith.mulf %280, %281 : vector<8x8xf32>
    %283 = vector.broadcast %29 : vector<1x8xf32> to vector<8x8xf32>
    %284 = arith.addf %282, %283 : vector<8x8xf32>
    %cst_105 = arith.constant dense<0xFF800000> : vector<8xf32>
    %285 = vector.multi_reduction <maximumf>, %284, %cst_105 [1] : vector<8x8xf32> to vector<8xf32>
    %286 = vector.shape_cast %285 : vector<8xf32> to vector<8x1xf32>
    %287 = vector.broadcast %286 : vector<8x1xf32> to vector<8x8xf32>
    %288 = arith.subf %284, %287 : vector<8x8xf32>
    %289 = math.exp %288 : vector<8x8xf32>
    %cst_106 = arith.constant dense<0.000000e+00> : vector<8xf32>
    %290 = vector.multi_reduction <add>, %289, %cst_106 [1] : vector<8x8xf32> to vector<8xf32>
    %291 = vector.shape_cast %290 : vector<8xf32> to vector<8x1xf32>
    %292 = vector.broadcast %291 : vector<8x1xf32> to vector<8x8xf32>
    %293 = arith.divf %289, %292 : vector<8x8xf32>
    %294 = arith.truncf %293 : vector<8x8xf32> to vector<8x8xbf16>
    %cst_107 = arith.constant dense<0.000000e+00> : vector<8x8xf32>
    %295 = tpu.matmul %294, %279, %cst_107 {dimension_numbers = #tpu.dot_dimension_numbers<[1], [0], [0], [1], [0, 0, 1, 1], [], []>} : vector<8x8xbf16>, vector<8x8xbf16>, vector<8x8xf32> -> vector<8x8xf32>
    %296 = vector.extract_strided_slice %229 {offsets = [0, 24], sizes = [8, 8], strides = [1, 1]} : vector<8x96xf32> to vector<8x8xf32>
    %297 = arith.truncf %296 : vector<8x8xf32> to vector<8x8xbf16>
    %298 = vector.extract_strided_slice %229 {offsets = [0, 56], sizes = [8, 8], strides = [1, 1]} : vector<8x96xf32> to vector<8x8xf32>
    %299 = arith.truncf %298 : vector<8x8xf32> to vector<8x8xbf16>
    %300 = vector.extract_strided_slice %229 {offsets = [0, 88], sizes = [8, 8], strides = [1, 1]} : vector<8x96xf32> to vector<8x8xf32>
    %301 = arith.truncf %300 : vector<8x8xf32> to vector<8x8xbf16>
    %cst_108 = arith.constant dense<0.000000e+00> : vector<8x8xf32>
    %302 = tpu.matmul %297, %299, %cst_108 {dimension_numbers = #tpu.dot_dimension_numbers<[1], [1], [0], [0], [0, 0, 1, 0], [], []>} : vector<8x8xbf16>, vector<8x8xbf16>, vector<8x8xf32> -> vector<8x8xf32>
    %cst_109 = arith.constant 0.353553385 : f32
    %303 = vector.broadcast %cst_109 : f32 to vector<8x8xf32>
    %304 = arith.mulf %302, %303 : vector<8x8xf32>
    %305 = vector.broadcast %29 : vector<1x8xf32> to vector<8x8xf32>
    %306 = arith.addf %304, %305 : vector<8x8xf32>
    %cst_110 = arith.constant dense<0xFF800000> : vector<8xf32>
    %307 = vector.multi_reduction <maximumf>, %306, %cst_110 [1] : vector<8x8xf32> to vector<8xf32>
    %308 = vector.shape_cast %307 : vector<8xf32> to vector<8x1xf32>
    %309 = vector.broadcast %308 : vector<8x1xf32> to vector<8x8xf32>
    %310 = arith.subf %306, %309 : vector<8x8xf32>
    %311 = math.exp %310 : vector<8x8xf32>
    %cst_111 = arith.constant dense<0.000000e+00> : vector<8xf32>
    %312 = vector.multi_reduction <add>, %311, %cst_111 [1] : vector<8x8xf32> to vector<8xf32>
    %313 = vector.shape_cast %312 : vector<8xf32> to vector<8x1xf32>
    %314 = vector.broadcast %313 : vector<8x1xf32> to vector<8x8xf32>
    %315 = arith.divf %311, %314 : vector<8x8xf32>
    %316 = arith.truncf %315 : vector<8x8xf32> to vector<8x8xbf16>
    %cst_112 = arith.constant dense<0.000000e+00> : vector<8x8xf32>
    %317 = tpu.matmul %316, %301, %cst_112 {dimension_numbers = #tpu.dot_dimension_numbers<[1], [0], [0], [1], [0, 0, 1, 1], [], []>} : vector<8x8xbf16>, vector<8x8xbf16>, vector<8x8xf32> -> vector<8x8xf32>
    %318 = tpu.concatenate %251, %273, %295, %317 in 1 : vector<8x8xf32>, vector<8x8xf32>, vector<8x8xf32>, vector<8x8xf32> -> vector<8x32xf32>
    %319 = arith.truncf %318 : vector<8x32xf32> to vector<8x32xbf16>
    %c1_113 = arith.constant 1 : index
    %c0_114 = arith.constant 0 : index
    %c0_115 = arith.constant 0 : index
    %320 = vector.load %arg7[%c1_113, %c0_114, %c0_115] : memref<2x32x32xbf16, #tpu.memory_space<vmem>>, vector<1x32x32xbf16>
    %321 = vector.shape_cast %320 : vector<1x32x32xbf16> to vector<32x32xbf16>
    %cst_116 = arith.constant dense<0.000000e+00> : vector<8x32xf32>
    %322 = tpu.matmul %319, %321, %cst_116 {dimension_numbers = #tpu.dot_dimension_numbers<[1], [0], [0], [1], [0, 0, 1, 1], [], []>} : vector<8x32xbf16>, vector<32x32xbf16>, vector<8x32xf32> -> vector<8x32xf32>
    %c1_117 = arith.constant 1 : index
    %c0_118 = arith.constant 0 : index
    %c0_119 = arith.constant 0 : index
    %323 = vector.load %arg8[%c1_117, %c0_118, %c0_119] : memref<2x1x32xf32, #tpu.memory_space<vmem>>, vector<1x1x32xf32>
    %324 = vector.shape_cast %323 : vector<1x1x32xf32> to vector<1x32xf32>
    %325 = vector.broadcast %324 : vector<1x32xf32> to vector<8x32xf32>
    %326 = arith.addf %322, %325 : vector<8x32xf32>
    %327 = arith.addf %326, %221 : vector<8x32xf32>
    %c1_120 = arith.constant 1 : index
    %c0_121 = arith.constant 0 : index
    %c0_122 = arith.constant 0 : index
    %328 = vector.load %arg9[%c1_120, %c0_121, %c0_122] : memref<2x1x32xf32, #tpu.memory_space<vmem>>, vector<1x1x32xf32>
    %329 = vector.shape_cast %328 : vector<1x1x32xf32> to vector<1x32xf32>
    %c1_123 = arith.constant 1 : index
    %c0_124 = arith.constant 0 : index
    %c0_125 = arith.constant 0 : index
    %330 = vector.load %arg10[%c1_123, %c0_124, %c0_125] : memref<2x1x32xf32, #tpu.memory_space<vmem>>, vector<1x1x32xf32>
    %331 = vector.shape_cast %330 : vector<1x1x32xf32> to vector<1x32xf32>
    %cst_126 = arith.constant dense<0.000000e+00> : vector<8xf32>
    %332 = vector.multi_reduction <add>, %327, %cst_126 [1] : vector<8x32xf32> to vector<8xf32>
    %333 = vector.shape_cast %332 : vector<8xf32> to vector<8x1xf32>
    %cst_127 = arith.constant 3.200000e+01 : f32
    %334 = vector.broadcast %cst_127 : f32 to vector<8x1xf32>
    %335 = arith.divf %333, %334 : vector<8x1xf32>
    %336 = vector.broadcast %335 : vector<8x1xf32> to vector<8x32xf32>
    %337 = arith.subf %327, %336 : vector<8x32xf32>
    %338 = vector.broadcast %335 : vector<8x1xf32> to vector<8x32xf32>
    %339 = arith.subf %327, %338 : vector<8x32xf32>
    %340 = arith.mulf %337, %339 : vector<8x32xf32>
    %cst_128 = arith.constant dense<0.000000e+00> : vector<8xf32>
    %341 = vector.multi_reduction <add>, %340, %cst_128 [1] : vector<8x32xf32> to vector<8xf32>
    %342 = vector.shape_cast %341 : vector<8xf32> to vector<8x1xf32>
    %cst_129 = arith.constant 3.200000e+01 : f32
    %343 = vector.broadcast %cst_129 : f32 to vector<8x1xf32>
    %344 = arith.divf %342, %343 : vector<8x1xf32>
    %345 = vector.broadcast %335 : vector<8x1xf32> to vector<8x32xf32>
    %346 = arith.subf %327, %345 : vector<8x32xf32>
    %cst_130 = arith.constant 9.99999996E-13 : f32
    %347 = vector.broadcast %cst_130 : f32 to vector<8x1xf32>
    %348 = arith.addf %344, %347 : vector<8x1xf32>
    %349 = math.rsqrt %348 : vector<8x1xf32>
    %350 = vector.broadcast %349 : vector<8x1xf32> to vector<8x32xf32>
    %351 = arith.mulf %346, %350 : vector<8x32xf32>
    %352 = vector.broadcast %329 : vector<1x32xf32> to vector<8x32xf32>
    %353 = arith.mulf %351, %352 : vector<8x32xf32>
    %354 = vector.broadcast %331 : vector<1x32xf32> to vector<8x32xf32>
    %355 = arith.addf %353, %354 : vector<8x32xf32>
    %356 = arith.truncf %355 : vector<8x32xf32> to vector<8x32xbf16>
    %c1_131 = arith.constant 1 : index
    %c0_132 = arith.constant 0 : index
    %c0_133 = arith.constant 0 : index
    %357 = vector.load %arg11[%c1_131, %c0_132, %c0_133] : memref<2x32x64xbf16, #tpu.memory_space<vmem>>, vector<1x32x64xbf16>
    %358 = vector.shape_cast %357 : vector<1x32x64xbf16> to vector<32x64xbf16>
    %cst_134 = arith.constant dense<0.000000e+00> : vector<8x64xf32>
    %359 = tpu.matmul %356, %358, %cst_134 {dimension_numbers = #tpu.dot_dimension_numbers<[1], [0], [0], [1], [0, 0, 1, 1], [], []>} : vector<8x32xbf16>, vector<32x64xbf16>, vector<8x64xf32> -> vector<8x64xf32>
    %c1_135 = arith.constant 1 : index
    %c0_136 = arith.constant 0 : index
    %c0_137 = arith.constant 0 : index
    %360 = vector.load %arg12[%c1_135, %c0_136, %c0_137] : memref<2x1x64xf32, #tpu.memory_space<vmem>>, vector<1x1x64xf32>
    %361 = vector.shape_cast %360 : vector<1x1x64xf32> to vector<1x64xf32>
    %362 = vector.broadcast %361 : vector<1x64xf32> to vector<8x64xf32>
    %363 = arith.addf %359, %362 : vector<8x64xf32>
    %cst_138 = arith.constant 5.000000e-01 : f32
    %364 = vector.broadcast %cst_138 : f32 to vector<8x64xf32>
    %365 = arith.mulf %364, %363 : vector<8x64xf32>
    %cst_139 = arith.constant 4.471500e-02 : f32
    %366 = vector.broadcast %cst_139 : f32 to vector<8x64xf32>
    %367 = arith.mulf %366, %363 : vector<8x64xf32>
    %368 = arith.mulf %367, %363 : vector<8x64xf32>
    %369 = arith.mulf %368, %363 : vector<8x64xf32>
    %370 = arith.addf %363, %369 : vector<8x64xf32>
    %cst_140 = arith.constant 0.797884583 : f32
    %371 = vector.broadcast %cst_140 : f32 to vector<8x64xf32>
    %372 = arith.mulf %371, %370 : vector<8x64xf32>
    %373 = math.tanh %372 : vector<8x64xf32>
    %cst_141 = arith.constant 1.000000e+00 : f32
    %374 = vector.broadcast %cst_141 : f32 to vector<8x64xf32>
    %375 = arith.addf %374, %373 : vector<8x64xf32>
    %376 = arith.mulf %365, %375 : vector<8x64xf32>
    %377 = arith.truncf %376 : vector<8x64xf32> to vector<8x64xbf16>
    %c1_142 = arith.constant 1 : index
    %c0_143 = arith.constant 0 : index
    %c0_144 = arith.constant 0 : index
    %378 = vector.load %arg13[%c1_142, %c0_143, %c0_144] : memref<2x64x32xbf16, #tpu.memory_space<vmem>>, vector<1x64x32xbf16>
    %379 = vector.shape_cast %378 : vector<1x64x32xbf16> to vector<64x32xbf16>
    %cst_145 = arith.constant dense<0.000000e+00> : vector<8x32xf32>
    %380 = tpu.matmul %377, %379, %cst_145 {dimension_numbers = #tpu.dot_dimension_numbers<[1], [0], [0], [1], [0, 0, 1, 1], [], []>} : vector<8x64xbf16>, vector<64x32xbf16>, vector<8x32xf32> -> vector<8x32xf32>
    %c1_146 = arith.constant 1 : index
    %c0_147 = arith.constant 0 : index
    %c0_148 = arith.constant 0 : index
    %381 = vector.load %arg14[%c1_146, %c0_147, %c0_148] : memref<2x1x32xf32, #tpu.memory_space<vmem>>, vector<1x1x32xf32>
    %382 = vector.shape_cast %381 : vector<1x1x32xf32> to vector<1x32xf32>
    %383 = vector.broadcast %382 : vector<1x32xf32> to vector<8x32xf32>
    %384 = arith.addf %380, %383 : vector<8x32xf32>
    %385 = arith.addf %384, %355 : vector<8x32xf32>
    %c1_149 = arith.constant 1 : index
    %c0_150 = arith.constant 0 : index
    %c0_151 = arith.constant 0 : index
    %386 = vector.load %arg15[%c1_149, %c0_150, %c0_151] : memref<2x1x32xf32, #tpu.memory_space<vmem>>, vector<1x1x32xf32>
    %387 = vector.shape_cast %386 : vector<1x1x32xf32> to vector<1x32xf32>
    %c1_152 = arith.constant 1 : index
    %c0_153 = arith.constant 0 : index
    %c0_154 = arith.constant 0 : index
    %388 = vector.load %arg16[%c1_152, %c0_153, %c0_154] : memref<2x1x32xf32, #tpu.memory_space<vmem>>, vector<1x1x32xf32>
    %389 = vector.shape_cast %388 : vector<1x1x32xf32> to vector<1x32xf32>
    %cst_155 = arith.constant dense<0.000000e+00> : vector<8xf32>
    %390 = vector.multi_reduction <add>, %385, %cst_155 [1] : vector<8x32xf32> to vector<8xf32>
    %391 = vector.shape_cast %390 : vector<8xf32> to vector<8x1xf32>
    %cst_156 = arith.constant 3.200000e+01 : f32
    %392 = vector.broadcast %cst_156 : f32 to vector<8x1xf32>
    %393 = arith.divf %391, %392 : vector<8x1xf32>
    %394 = vector.broadcast %393 : vector<8x1xf32> to vector<8x32xf32>
    %395 = arith.subf %385, %394 : vector<8x32xf32>
    %396 = vector.broadcast %393 : vector<8x1xf32> to vector<8x32xf32>
    %397 = arith.subf %385, %396 : vector<8x32xf32>
    %398 = arith.mulf %395, %397 : vector<8x32xf32>
    %cst_157 = arith.constant dense<0.000000e+00> : vector<8xf32>
    %399 = vector.multi_reduction <add>, %398, %cst_157 [1] : vector<8x32xf32> to vector<8xf32>
    %400 = vector.shape_cast %399 : vector<8xf32> to vector<8x1xf32>
    %cst_158 = arith.constant 3.200000e+01 : f32
    %401 = vector.broadcast %cst_158 : f32 to vector<8x1xf32>
    %402 = arith.divf %400, %401 : vector<8x1xf32>
    %403 = vector.broadcast %393 : vector<8x1xf32> to vector<8x32xf32>
    %404 = arith.subf %385, %403 : vector<8x32xf32>
    %cst_159 = arith.constant 9.99999996E-13 : f32
    %405 = vector.broadcast %cst_159 : f32 to vector<8x1xf32>
    %406 = arith.addf %402, %405 : vector<8x1xf32>
    %407 = math.rsqrt %406 : vector<8x1xf32>
    %408 = vector.broadcast %407 : vector<8x1xf32> to vector<8x32xf32>
    %409 = arith.mulf %404, %408 : vector<8x32xf32>
    %410 = vector.broadcast %387 : vector<1x32xf32> to vector<8x32xf32>
    %411 = arith.mulf %409, %410 : vector<8x32xf32>
    %412 = vector.broadcast %389 : vector<1x32xf32> to vector<8x32xf32>
    %413 = arith.addf %411, %412 : vector<8x32xf32>
    %c0_160 = arith.constant 0 : index
    %c0_161 = arith.constant 0 : index
    %c0_162 = arith.constant 0 : index
    %414 = vector.load %arg17[%c0_160, %c0_161, %c0_162] : memref<1x8x32xf32, #tpu.memory_space<vmem>>, vector<1x8x32xf32>
    %415 = vector.shape_cast %414 : vector<1x8x32xf32> to vector<8x32xf32>
    %416 = vector.shape_cast %413 : vector<8x32xf32> to vector<1x8x32xf32>
    tpu.vector_store %arg17[%c0_160, %c0_161, %c0_162], %416 {strides = array<i32>} : memref<1x8x32xf32, #tpu.memory_space<vmem>>, vector<1x8x32xf32>,
    return
  }
  func.func @transform_0(%arg0: i32) -> (i32, i32, i32) {
    %c0_i32 = arith.constant 0 : i32
    %c0_i32_0 = arith.constant 0 : i32
    %c0_i32_1 = arith.constant 0 : i32
    return %arg0, %c0_i32, %c0_i32_0 : i32, i32, i32
  }
  func.func @transform_1(%arg0: i32) -> (i32, i32, i32) {
    %c0_i32 = arith.constant 0 : i32
    %c0_i32_0 = arith.constant 0 : i32
    %c0_i32_1 = arith.constant 0 : i32
    return %arg0, %c0_i32, %c0_i32_0 : i32, i32, i32
  }
  func.func @transform_2(%arg0: i32) -> (i32, i32) {
    %c0_i32 = arith.constant 0 : i32
    %c0_i32_0 = arith.constant 0 : i32
    %c0_i32_1 = arith.constant 0 : i32
    return %c0_i32, %c0_i32_0 : i32, i32
  }
  func.func @transform_3(%arg0: i32) -> (i32, i32) {
    %c0_i32 = arith.constant 0 : i32
    %c0_i32_0 = arith.constant 0 : i32
    %c0_i32_1 = arith.constant 0 : i32
    return %c0_i32, %c0_i32_0 : i32, i32
  }
  func.func @transform_4(%arg0: i32) -> (i32, i32, i32) {
    %c0_i32 = arith.constant 0 : i32
    %c0_i32_0 = arith.constant 0 : i32
    %c0_i32_1 = arith.constant 0 : i32
    %c0_i32_2 = arith.constant 0 : i32
    return %c0_i32, %c0_i32_0, %c0_i32_1 : i32, i32, i32
  }
  func.func @transform_5(%arg0: i32) -> (i32, i32, i32) {
    %c0_i32 = arith.constant 0 : i32
    %c0_i32_0 = arith.constant 0 : i32
    %c0_i32_1 = arith.constant 0 : i32
    %c0_i32_2 = arith.constant 0 : i32
    return %c0_i32, %c0_i32_0, %c0_i32_1 : i32, i32, i32
  }
  func.func @transform_6(%arg0: i32) -> (i32, i32, i32) {
    %c0_i32 = arith.constant 0 : i32
    %c0_i32_0 = arith.constant 0 : i32
    %c0_i32_1 = arith.constant 0 : i32
    %c0_i32_2 = arith.constant 0 : i32
    return %c0_i32, %c0_i32_0, %c0_i32_1 : i32, i32, i32
  }
  func.func @transform_7(%arg0: i32) -> (i32, i32, i32) {
    %c0_i32 = arith.constant 0 : i32
    %c0_i32_0 = arith.constant 0 : i32
    %c0_i32_1 = arith.constant 0 : i32
    %c0_i32_2 = arith.constant 0 : i32
    return %c0_i32, %c0_i32_0, %c0_i32_1 : i32, i32, i32
  }
  func.func @transform_8(%arg0: i32) -> (i32, i32, i32) {
    %c0_i32 = arith.constant 0 : i32
    %c0_i32_0 = arith.constant 0 : i32
    %c0_i32_1 = arith.constant 0 : i32
    %c0_i32_2 = arith.constant 0 : i32
    return %c0_i32, %c0_i32_0, %c0_i32_1 : i32, i32, i32
  }
  func.func @transform_9(%arg0: i32) -> (i32, i32, i32) {
    %c0_i32 = arith.constant 0 : i32
    %c0_i32_0 = arith.constant 0 : i32
    %c0_i32_1 = arith.constant 0 : i32
    %c0_i32_2 = arith.constant 0 : i32
    return %c0_i32, %c0_i32_0, %c0_i32_1 : i32, i32, i32
  }
  func.func @transform_10(%arg0: i32) -> (i32, i32, i32) {
    %c0_i32 = arith.constant 0 : i32
    %c0_i32_0 = arith.constant 0 : i32
    %c0_i32_1 = arith.constant 0 : i32
    %c0_i32_2 = arith.constant 0 : i32
    return %c0_i32, %c0_i32_0, %c0_i32_1 : i32, i32, i32
  }
  func.func @transform_11(%arg0: i32) -> (i32, i32, i32) {
    %c0_i32 = arith.constant 0 : i32
    %c0_i32_0 = arith.constant 0 : i32
    %c0_i32_1 = arith.constant 0 : i32
    %c0_i32_2 = arith.constant 0 : i32
    return %c0_i32, %c0_i32_0, %c0_i32_1 : i32, i32, i32
  }
  func.func @transform_12(%arg0: i32) -> (i32, i32, i32) {
    %c0_i32 = arith.constant 0 : i32
    %c0_i32_0 = arith.constant 0 : i32
    %c0_i32_1 = arith.constant 0 : i32
    %c0_i32_2 = arith.constant 0 : i32
    return %c0_i32, %c0_i32_0, %c0_i32_1 : i32, i32, i32
  }
  func.func @transform_13(%arg0: i32) -> (i32, i32, i32) {
    %c0_i32 = arith.constant 0 : i32
    %c0_i32_0 = arith.constant 0 : i32
    %c0_i32_1 = arith.constant 0 : i32
    %c0_i32_2 = arith.constant 0 : i32
    return %c0_i32, %c0_i32_0, %c0_i32_1 : i32, i32, i32
  }
  func.func @transform_14(%arg0: i32) -> (i32, i32, i32) {
    %c0_i32 = arith.constant 0 : i32
    %c0_i32_0 = arith.constant 0 : i32
    %c0_i32_1 = arith.constant 0 : i32
    %c0_i32_2 = arith.constant 0 : i32
    return %c0_i32, %c0_i32_0, %c0_i32_1 : i32, i32, i32
  }
  func.func @transform_15(%arg0: i32) -> (i32, i32, i32) {
    %c0_i32 = arith.constant 0 : i32
    %c0_i32_0 = arith.constant 0 : i32
    %c0_i32_1 = arith.constant 0 : i32
    %c0_i32_2 = arith.constant 0 : i32
    return %c0_i32, %c0_i32_0, %c0_i32_1 : i32, i32, i32
  }
  func.func @transform_16(%arg0: i32) -> (i32, i32, i32) {
    %c0_i32 = arith.constant 0 : i32
    %c0_i32_0 = arith.constant 0 : i32
    %c0_i32_1 = arith.constant 0 : i32
    return %arg0, %c0_i32, %c0_i32_0 : i32, i32, i32
  }
}

</mosaic_0001>

<llo_original>
// kernel: forward.1
$region0: #{forward.1}
  #allocation0 [shape = 'u32[]', space=smem, size = 0x4, offset = 0x4, fixed_abs, tag = 'smem constant byte address 0x4 - core index']
  #allocation1 [shape = 'u32[144,128]{1,0:T(1,128)}', space=vmem, size = 0x12000, scoped, tag = 'internal scratch']
  %s0 = inlined_call_operand.vmem [shape: f32[2,8,32], index: 0, kind: input, shape index: {}]
  %s1 = inlined_call_operand.vmem [shape: f32[2,1,8], index: 1, kind: input, shape index: {}]
  %s2 = inlined_call_operand.vmem [shape: f32[1,32], index: 2, kind: input, shape index: {}]
  %s3 = inlined_call_operand.vmem [shape: f32[1,32], index: 3, kind: input, shape index: {}]
  %s4 = inlined_call_operand.vmem [shape: bf16[2,32,96], index: 4, kind: input, shape index: {}]
  %s5 = inlined_call_operand.vmem [shape: f32[2,1,96], index: 5, kind: input, shape index: {}]
  %s6 = inlined_call_operand.vmem [shape: bf16[2,32,32], index: 6, kind: input, shape index: {}]
  %s7 = inlined_call_operand.vmem [shape: f32[2,1,32], index: 7, kind: input, shape index: {}]
  %s8 = inlined_call_operand.vmem [shape: f32[2,1,32], index: 8, kind: input, shape index: {}]
  %s9 = inlined_call_operand.vmem [shape: f32[2,1,32], index: 9, kind: input, shape index: {}]
  %s10 = inlined_call_operand.vmem [shape: bf16[2,32,64], index: 10, kind: input, shape index: {}]
  %s11 = inlined_call_operand.vmem [shape: f32[2,1,64], index: 11, kind: input, shape index: {}]
  %s12 = inlined_call_operand.vmem [shape: bf16[2,64,32], index: 12, kind: input, shape index: {}]
  %s13 = inlined_call_operand.vmem [shape: f32[2,1,32], index: 13, kind: input, shape index: {}]
  %s14 = inlined_call_operand.vmem [shape: f32[2,1,32], index: 14, kind: input, shape index: {}]
  %s15 = inlined_call_operand.vmem [shape: f32[2,1,32], index: 15, kind: input, shape index: {}]
  %s16 = inlined_call_operand.hbm [shape: f32[2,8,32], index: 16, kind: output, shape index: {}]
  %s17 = sld [smem:[#allocation0]]
  $region97: #{forward.1} parent=0
    _
  %s19 = ssub.s32 1, %s17
  %s20 = scalar_select 0, %s19, %s17
  $region1: #{forward.1} parent=0
    #allocation2 [shape = 'u8[8192]{0}', space=vmem, size = 0x2000, scoped, tag = 'output window, operand 0']
    #allocation3 [shape = 's32[2]{0}', space=sflag, size = 0x8, scoped, tag = 'scoped memory for forward.1']
    %21 = vsyncpa [#allocation3], 0
    %s22 = scalar_lea.sflag [#allocation3], 1
    %23 = vsyncpa %s22, 0
    loop: start=0, step=1, limit=4
    $region2: #{forward.1} parent=1 // loop_pre_header
      _
    $region3: #{forward.1} parent=1 // loop_header
      %s25 = sphi 0, %s29
      %p26 = scmp.ge.s32.totalorder %s25, 4
      %s35 = sphi 0, %s37
      %s38 = sphi 0, %s35
      %s39 = sphi 0, %s38
      %s55 = sphi 0, %s39
      %s61 = sphi 0, %s63
      %s64 = sphi 0, %s61
      %s65 = sphi 0, %s64
      %s81 = sphi 0, %s65
      %s85 = sphi 0, %s85
      %s87 = sphi 0, %s85
      %s88 = sphi 0, %s87
      %s102 = sphi 0, %s88
      %s106 = sphi 0, %s106
      %s108 = sphi 0, %s106
      %s109 = sphi 0, %s108
      %s123 = sphi 0, %s109
      %s127 = sphi 0, %s127
      %s129 = sphi 0, %s127
      %s130 = sphi 0, %s129
      %s144 = sphi 0, %s130
      %s148 = sphi 0, %s148
      %s150 = sphi 0, %s148
      %s151 = sphi 0, %s150
      %s165 = sphi 0, %s151
      %s169 = sphi 0, %s169
      %s171 = sphi 0, %s169
      %s172 = sphi 0, %s171
      %s186 = sphi 0, %s172
      %s190 = sphi 0, %s190
      %s192 = sphi 0, %s190
      %s193 = sphi 0, %s192
      %s207 = sphi 0, %s193
      %s211 = sphi 0, %s211
      %s213 = sphi 0, %s211
      %s214 = sphi 0, %s213
      %s228 = sphi 0, %s214
      %s232 = sphi 0, %s232
      %s234 = sphi 0, %s232
      %s235 = sphi 0, %s234
      %s249 = sphi 0, %s235
      %s253 = sphi 0, %s253
      %s255 = sphi 0, %s253
      %s256 = sphi 0, %s255
      %s270 = sphi 0, %s256
      %s274 = sphi 0, %s274
      %s276 = sphi 0, %s274
      %s277 = sphi 0, %s276
      %s291 = sphi 0, %s277
      %s295 = sphi 0, %s295
      %s297 = sphi 0, %s295
      %s298 = sphi 0, %s297
      %s312 = sphi 0, %s298
      %s316 = sphi 0, %s316
      %s318 = sphi 0, %s316
      %s319 = sphi 0, %s318
      %s333 = sphi 0, %s319
      %s337 = sphi 0, %s337
      %s339 = sphi 0, %s337
      %s340 = sphi 0, %s339
      %s354 = sphi 0, %s340
      %s358 = sphi 0, %s358
      %s360 = sphi 0, %s358
      %s361 = sphi 0, %s360
      %s375 = sphi 0, %s361
      %s381 = sphi 0, %s383
      %s384 = sphi 0, %s381
      %s385 = sphi 0, %s384
      %s401 = sphi 0, %s385
    $region4: #{forward.1} parent=1 // loop_header_branch
      %28 = sbr.rel (%p26) target = $region8
    $region5: #{forward.1} parent=1 // loop_body
      %s30 = ssub.s32 %s25, 1
      %s31 = ssub.s32 %s25, 2
      %s32 = sadd.s32 %s25, 1
      %s33 = ssub.s32 %s25, %s32
      %p34 = scmp.eq.s32.totalorder %s33, 0
      %s36 = sadd.s32 %s35, 1
      %s37 = scalar_select %p34, %s35, %s36
      %p40 = pneg %p34
      %p41 = scmp.eq.s32.totalorder %s25, 1
      %p42 = por %p40, %p41
      %p43 = scmp.ne.s32.totalorder %s35, %s38
      %p44 = scmp.eq.s32.totalorder %s25, 0
      %p45 = por %p43, %p44
      %p46 = scmp.ne.s32.totalorder %s35, %s38
      %p47 = scmp.eq.s32.totalorder %s30, 1
      %p48 = por %p46, %p47
      %p49 = scmp.ne.s32.totalorder %s38, %s39
      %p50 = scmp.eq.s32.totalorder %s30, 0
      %p51 = por %p49, %p50
      %p52 = scmp.ne.s32.totalorder %s38, %s39
      %p53 = scmp.eq.s32.totalorder %s31, 1
      %p54 = por %p52, %p53
      %p56 = scmp.ne.s32.totalorder %s39, %s55
      %p57 = scmp.eq.s32.totalorder %s31, 0
      %p58 = por %p56, %p57
      %s59 = ssub.s32 %s25, %s32
      %p60 = scmp.eq.s32.totalorder %s59, 0
      %s62 = sadd.s32 %s61, 1
      %s63 = scalar_select %p60, %s61, %s62
      %p66 = pneg %p60
      %p67 = scmp.eq.s32.totalorder %s25, 1
      %p68 = por %p66, %p67
      %p69 = scmp.ne.s32.totalorder %s61, %s64
      %p70 = scmp.eq.s32.totalorder %s25, 0
      %p71 = por %p69, %p70
      %p72 = scmp.ne.s32.totalorder %s61, %s64
      %p73 = scmp.eq.s32.totalorder %s30, 1
      %p74 = por %p72, %p73
      %p75 = scmp.ne.s32.totalorder %s64, %s65
      %p76 = scmp.eq.s32.totalorder %s30, 0
      %p77 = por %p75, %p76
      %p78 = scmp.ne.s32.totalorder %s64, %s65
      %p79 = scmp.eq.s32.totalorder %s31, 1
      %p80 = por %p78, %p79
      %p82 = scmp.ne.s32.totalorder %s65, %s81
      %p83 = scmp.eq.s32.totalorder %s31, 0
      %p84 = por %p82, %p83
      %s86 = sadd.s32 %s85, 1
      %p89 = scmp.eq.s32.totalorder %s25, 1
      %p90 = scmp.ne.s32.totalorder %s85, %s87
      %p91 = scmp.eq.s32.totalorder %s25, 0
      %p92 = por %p90, %p91
      %p93 = scmp.ne.s32.totalorder %s85, %s87
      %p94 = scmp.eq.s32.totalorder %s30, 1
      %p95 = por %p93, %p94
      %p96 = scmp.ne.s32.totalorder %s87, %s88
      %p97 = scmp.eq.s32.totalorder %s30, 0
      %p98 = por %p96, %p97
      %p99 = scmp.ne.s32.totalorder %s87, %s88
      %p100 = scmp.eq.s32.totalorder %s31, 1
      %p101 = por %p99, %p100
      %p103 = scmp.ne.s32.totalorder %s88, %s102
      %p104 = scmp.eq.s32.totalorder %s31, 0
      %p105 = por %p103, %p104
      %s107 = sadd.s32 %s106, 1
      %p110 = scmp.eq.s32.totalorder %s25, 1
      %p111 = scmp.ne.s32.totalorder %s106, %s108
      %p112 = scmp.eq.s32.totalorder %s25, 0
      %p113 = por %p111, %p112
      %p114 = scmp.ne.s32.totalorder %s106, %s108
      %p115 = scmp.eq.s32.totalorder %s30, 1
      %p116 = por %p114, %p115
      %p117 = scmp.ne.s32.totalorder %s108, %s109
      %p118 = scmp.eq.s32.totalorder %s30, 0
      %p119 = por %p117, %p118
      %p120 = scmp.ne.s32.totalorder %s108, %s109
      %p121 = scmp.eq.s32.totalorder %s31, 1
      %p122 = por %p120, %p121
      %p124 = scmp.ne.s32.totalorder %s109, %s123
      %p125 = scmp.eq.s32.totalorder %s31, 0
      %p126 = por %p124, %p125
      %s128 = sadd.s32 %s127, 1
      %p131 = scmp.eq.s32.totalorder %s25, 1
      %p132 = scmp.ne.s32.totalorder %s127, %s129
      %p133 = scmp.eq.s32.totalorder %s25, 0
      %p134 = por %p132, %p133
      %p135 = scmp.ne.s32.totalorder %s127, %s129
      %p136 = scmp.eq.s32.totalorder %s30, 1
      %p137 = por %p135, %p136
      %p138 = scmp.ne.s32.totalorder %s129, %s130
      %p139 = scmp.eq.s32.totalorder %s30, 0
      %p140 = por %p138, %p139
      %p141 = scmp.ne.s32.totalorder %s129, %s130
      %p142 = scmp.eq.s32.totalorder %s31, 1
      %p143 = por %p141, %p142
      %p145 = scmp.ne.s32.totalorder %s130, %s144
      %p146 = scmp.eq.s32.totalorder %s31, 0
      %p147 = por %p145, %p146
      %s149 = sadd.s32 %s148, 1
      %p152 = scmp.eq.s32.totalorder %s25, 1
      %p153 = scmp.ne.s32.totalorder %s148, %s150
      %p154 = scmp.eq.s32.totalorder %s25, 0
      %p155 = por %p153, %p154
      %p156 = scmp.ne.s32.totalorder %s148, %s150
      %p157 = scmp.eq.s32.totalorder %s30, 1
      %p158 = por %p156, %p157
      %p159 = scmp.ne.s32.totalorder %s150, %s151
      %p160 = scmp.eq.s32.totalorder %s30, 0
      %p161 = por %p159, %p160
      %p162 = scmp.ne.s32.totalorder %s150, %s151
      %p163 = scmp.eq.s32.totalorder %s31, 1
      %p164 = por %p162, %p163
      %p166 = scmp.ne.s32.totalorder %s151, %s165
      %p167 = scmp.eq.s32.totalorder %s31, 0
      %p168 = por %p166, %p167
      %s170 = sadd.s32 %s169, 1
      %p173 = scmp.eq.s32.totalorder %s25, 1
      %p174 = scmp.ne.s32.totalorder %s169, %s171
      %p175 = scmp.eq.s32.totalorder %s25, 0
      %p176 = por %p174, %p175
      %p177 = scmp.ne.s32.totalorder %s169, %s171
      %p178 = scmp.eq.s32.totalorder %s30, 1
      %p179 = por %p177, %p178
      %p180 = scmp.ne.s32.totalorder %s171, %s172
      %p181 = scmp.eq.s32.totalorder %s30, 0
      %p182 = por %p180, %p181
      %p183 = scmp.ne.s32.totalorder %s171, %s172
      %p184 = scmp.eq.s32.totalorder %s31, 1
      %p185 = por %p183, %p184
      %p187 = scmp.ne.s32.totalorder %s172, %s186
      %p188 = scmp.eq.s32.totalorder %s31, 0
      %p189 = por %p187, %p188
      %s191 = sadd.s32 %s190, 1
      %p194 = scmp.eq.s32.totalorder %s25, 1
      %p195 = scmp.ne.s32.totalorder %s190, %s192
      %p196 = scmp.eq.s32.totalorder %s25, 0
      %p197 = por %p195, %p196
      %p198 = scmp.ne.s32.totalorder %s190, %s192
      %p199 = scmp.eq.s32.totalorder %s30, 1
      %p200 = por %p198, %p199
      %p201 = scmp.ne.s32.totalorder %s192, %s193
      %p202 = scmp.eq.s32.totalorder %s30, 0
      %p203 = por %p201, %p202
      %p204 = scmp.ne.s32.totalorder %s192, %s193
      %p205 = scmp.eq.s32.totalorder %s31, 1
      %p206 = por %p204, %p205
      %p208 = scmp.ne.s32.totalorder %s193, %s207
      %p209 = scmp.eq.s32.totalorder %s31, 0
      %p210 = por %p208, %p209
      %s212 = sadd.s32 %s211, 1
      %p215 = scmp.eq.s32.totalorder %s25, 1
      %p216 = scmp.ne.s32.totalorder %s211, %s213
      %p217 = scmp.eq.s32.totalorder %s25, 0
      %p218 = por %p216, %p217
      %p219 = scmp.ne.s32.totalorder %s211, %s213
      %p220 = scmp.eq.s32.totalorder %s30, 1
      %p221 = por %p219, %p220
      %p222 = scmp.ne.s32.totalorder %s213, %s214
      %p223 = scmp.eq.s32.totalorder %s30, 0
      %p224 = por %p222, %p223
      %p225 = scmp.ne.s32.totalorder %s213, %s214
      %p226 = scmp.eq.s32.totalorder %s31, 1
      %p227 = por %p225, %p226
      %p229 = scmp.ne.s32.totalorder %s214, %s228
      %p230 = scmp.eq.s32.totalorder %s31, 0
      %p231 = por %p229, %p230
      %s233 = sadd.s32 %s232, 1
      %p236 = scmp.eq.s32.totalorder %s25, 1
      %p237 = scmp.ne.s32.totalorder %s232, %s234
      %p238 = scmp.eq.s32.totalorder %s25, 0
      %p239 = por %p237, %p238
      %p240 = scmp.ne.s32.totalorder %s232, %s234
      %p241 = scmp.eq.s32.totalorder %s30, 1
      %p242 = por %p240, %p241
      %p243 = scmp.ne.s32.totalorder %s234, %s235
      %p244 = scmp.eq.s32.totalorder %s30, 0
      %p245 = por %p243, %p244
      %p246 = scmp.ne.s32.totalorder %s234, %s235
      %p247 = scmp.eq.s32.totalorder %s31, 1
      %p248 = por %p246, %p247
      %p250 = scmp.ne.s32.totalorder %s235, %s249
      %p251 = scmp.eq.s32.totalorder %s31, 0
      %p252 = por %p250, %p251
      %s254 = sadd.s32 %s253, 1
      %p257 = scmp.eq.s32.totalorder %s25, 1
      %p258 = scmp.ne.s32.totalorder %s253, %s255
      %p259 = scmp.eq.s32.totalorder %s25, 0
      %p260 = por %p258, %p259
      %p261 = scmp.ne.s32.totalorder %s253, %s255
      %p262 = scmp.eq.s32.totalorder %s30, 1
      %p263 = por %p261, %p262
      %p264 = scmp.ne.s32.totalorder %s255, %s256
      %p265 = scmp.eq.s32.totalorder %s30, 0
      %p266 = por %p264, %p265
      %p267 = scmp.ne.s32.totalorder %s255, %s256
      %p268 = scmp.eq.s32.totalorder %s31, 1
      %p269 = por %p267, %p268
      %p271 = scmp.ne.s32.totalorder %s256, %s270
      %p272 = scmp.eq.s32.totalorder %s31, 0
      %p273 = por %p271, %p272
      %s275 = sadd.s32 %s274, 1
      %p278 = scmp.eq.s32.totalorder %s25, 1
      %p279 = scmp.ne.s32.totalorder %s274, %s276
      %p280 = scmp.eq.s32.totalorder %s25, 0
      %p281 = por %p279, %p280
      %p282 = scmp.ne.s32.totalorder %s274, %s276
      %p283 = scmp.eq.s32.totalorder %s30, 1
      %p284 = por %p282, %p283
      %p285 = scmp.ne.s32.totalorder %s276, %s277
      %p286 = scmp.eq.s32.totalorder %s30, 0
      %p287 = por %p285, %p286
      %p288 = scmp.ne.s32.totalorder %s276, %s277
      %p289 = scmp.eq.s32.totalorder %s31, 1
      %p290 = por %p288, %p289
      %p292 = scmp.ne.s32.totalorder %s277, %s291
      %p293 = scmp.eq.s32.totalorder %s31, 0
      %p294 = por %p292, %p293
      %s296 = sadd.s32 %s295, 1
      %p299 = scmp.eq.s32.totalorder %s25, 1
      %p300 = scmp.ne.s32.totalorder %s295, %s297
      %p301 = scmp.eq.s32.totalorder %s25, 0
      %p302 = por %p300, %p301
      %p303 = scmp.ne.s32.totalorder %s295, %s297
      %p304 = scmp.eq.s32.totalorder %s30, 1
      %p305 = por %p303, %p304
      %p306 = scmp.ne.s32.totalorder %s297, %s298
      %p307 = scmp.eq.s32.totalorder %s30, 0
      %p308 = por %p306, %p307
      %p309 = scmp.ne.s32.totalorder %s297, %s298
      %p310 = scmp.eq.s32.totalorder %s31, 1
      %p311 = por %p309, %p310
      %p313 = scmp.ne.s32.totalorder %s298, %s312
      %p314 = scmp.eq.s32.totalorder %s31, 0
      %p315 = por %p313, %p314
      %s317 = sadd.s32 %s316, 1
      %p320 = scmp.eq.s32.totalorder %s25, 1
      %p321 = scmp.ne.s32.totalorder %s316, %s318
      %p322 = scmp.eq.s32.totalorder %s25, 0
      %p323 = por %p321, %p322
      %p324 = scmp.ne.s32.totalorder %s316, %s318
      %p325 = scmp.eq.s32.totalorder %s30, 1
      %p326 = por %p324, %p325
      %p327 = scmp.ne.s32.totalorder %s318, %s319
      %p328 = scmp.eq.s32.totalorder %s30, 0
      %p329 = por %p327, %p328
      %p330 = scmp.ne.s32.totalorder %s318, %s319
      %p331 = scmp.eq.s32.totalorder %s31, 1
      %p332 = por %p330, %p331
      %p334 = scmp.ne.s32.totalorder %s319, %s333
      %p335 = scmp.eq.s32.totalorder %s31, 0
      %p336 = por %p334, %p335
      %s338 = sadd.s32 %s337, 1
      %p341 = scmp.eq.s32.totalorder %s25, 1
      %p342 = scmp.ne.s32.totalorder %s337, %s339
      %p343 = scmp.eq.s32.totalorder %s25, 0
      %p344 = por %p342, %p343
      %p345 = scmp.ne.s32.totalorder %s337, %s339
      %p346 = scmp.eq.s32.totalorder %s30, 1
      %p347 = por %p345, %p346
      %p348 = scmp.ne.s32.totalorder %s339, %s340
      %p349 = scmp.eq.s32.totalorder %s30, 0
      %p350 = por %p348, %p349
      %p351 = scmp.ne.s32.totalorder %s339, %s340
      %p352 = scmp.eq.s32.totalorder %s31, 1
      %p353 = por %p351, %p352
      %p355 = scmp.ne.s32.totalorder %s340, %s354
      %p356 = scmp.eq.s32.totalorder %s31, 0
      %p357 = por %p355, %p356
      %s359 = sadd.s32 %s358, 1
      %p362 = scmp.eq.s32.totalorder %s25, 1
      %p363 = scmp.ne.s32.totalorder %s358, %s360
      %p364 = scmp.eq.s32.totalorder %s25, 0
      %p365 = por %p363, %p364
      %p366 = scmp.ne.s32.totalorder %s358, %s360
      %p367 = scmp.eq.s32.totalorder %s30, 1
      %p368 = por %p366, %p367
      %p369 = scmp.ne.s32.totalorder %s360, %s361
      %p370 = scmp.eq.s32.totalorder %s30, 0
      %p371 = por %p369, %p370
      %p372 = scmp.ne.s32.totalorder %s360, %s361
      %p373 = scmp.eq.s32.totalorder %s31, 1
      %p374 = por %p372, %p373
      %p376 = scmp.ne.s32.totalorder %s361, %s375
      %p377 = scmp.eq.s32.totalorder %s31, 0
      %p378 = por %p376, %p377
      %s379 = ssub.s32 %s25, %s32
      %p380 = scmp.eq.s32.totalorder %s379, 0
      %s382 = sadd.s32 %s381, 1
      %s383 = scalar_select %p380, %s381, %s382
      %p386 = pneg %p380
      %p387 = scmp.eq.s32.totalorder %s25, 1
      %p388 = por %p386, %p387
      %p389 = scmp.ne.s32.totalorder %s381, %s384
      %p390 = scmp.eq.s32.totalorder %s25, 0
      %p391 = por %p389, %p390
      %p392 = scmp.ne.s32.totalorder %s381, %s384
      %p393 = scmp.eq.s32.totalorder %s30, 1
      %p394 = por %p392, %p393
      %p395 = scmp.ne.s32.totalorder %s384, %s385
      %p396 = scmp.eq.s32.totalorder %s30, 0
      %p397 = por %p395, %p396
      %p398 = scmp.ne.s32.totalorder %s384, %s385
      %p399 = scmp.eq.s32.totalorder %s31, 1
      %p400 = por %p398, %p399
      %p402 = scmp.ne.s32.totalorder %s385, %s401
      %p403 = scmp.eq.s32.totalorder %s31, 0
      %p404 = por %p402, %p403
      %p405 = scmp.le.s32.totalorder 1, %s25
      %p406 = scmp.lt.s32.totalorder %s25, 3
      %p407 = pnand %p405, %p406
      %p408 = pneg %p407
      // Predicated region
      $region9: #{forward.1} parent=5 // pred_check
        _
      $region10: #{forward.1} parent=5 // pred_check_branch
        %410 = sbr.rel (%p407) target = $region12
      $region11: #{forward.1} parent=5 // pred_region
        %s411 = ssub.s32 %s25, 1
        // Predicated region
        $region13: #{forward.1} parent=11 // pred_check
          %p412 = pneg %p98
        $region14: #{forward.1} parent=11 // pred_check_branch
          %414 = sbr.rel (%p412) target = $region16
        $region15: #{forward.1} parent=11 // pred_region
          _
        $region16: #{forward.1} parent=11 // pred_fallthru
          _
        // Predicated region
        $region17: #{forward.1} parent=11 // pred_check
          %p415 = pneg %p119
        $region18: #{forward.1} parent=11 // pred_check_branch
          %417 = sbr.rel (%p415) target = $region20
        $region19: #{forward.1} parent=11 // pred_region
          _
        $region20: #{forward.1} parent=11 // pred_fallthru
          _
        // Predicated region
        $region21: #{forward.1} parent=11 // pred_check
          %p418 = pneg %p140
        $region22: #{forward.1} parent=11 // pred_check_branch
          %420 = sbr.rel (%p418) target = $region24
        $region23: #{forward.1} parent=11 // pred_region
          _
        $region24: #{forward.1} parent=11 // pred_fallthru
          _
        // Predicated region
        $region25: #{forward.1} parent=11 // pred_check
          %p421 = pneg %p161
        $region26: #{forward.1} parent=11 // pred_check_branch
          %423 = sbr.rel (%p421) target = $region28
        $region27: #{forward.1} parent=11 // pred_region
          _
        $region28: #{forward.1} parent=11 // pred_fallthru
          _
        // Predicated region
        $region29: #{forward.1} parent=11 // pred_check
          %p424 = pneg %p182
        $region30: #{forward.1} parent=11 // pred_check_branch
          %426 = sbr.rel (%p424) target = $region32
        $region31: #{forward.1} parent=11 // pred_region
          _
        $region32: #{forward.1} parent=11 // pred_fallthru
          _
        // Predicated region
        $region33: #{forward.1} parent=11 // pred_check
          %p427 = pneg %p203
        $region34: #{forward.1} parent=11 // pred_check_branch
          %429 = sbr.rel (%p427) target = $region36
        $region35: #{forward.1} parent=11 // pred_region
          _
        $region36: #{forward.1} parent=11 // pred_fallthru
          _
        // Predicated region
        $region37: #{forward.1} parent=11 // pred_check
          %p430 = pneg %p224
        $region38: #{forward.1} parent=11 // pred_check_branch
          %432 = sbr.rel (%p430) target = $region40
        $region39: #{forward.1} parent=11 // pred_region
          _
        $region40: #{forward.1} parent=11 // pred_fallthru
          _
        // Predicated region
        $region41: #{forward.1} parent=11 // pred_check
          %p433 = pneg %p245
        $region42: #{forward.1} parent=11 // pred_check_branch
          %435 = sbr.rel (%p433) target = $region44
        $region43: #{forward.1} parent=11 // pred_region
          _
        $region44: #{forward.1} parent=11 // pred_fallthru
          _
        // Predicated region
        $region45: #{forward.1} parent=11 // pred_check
          %p436 = pneg %p266
        $region46: #{forward.1} parent=11 // pred_check_branch
          %438 = sbr.rel (%p436) target = $region48
        $region47: #{forward.1} parent=11 // pred_region
          _
        $region48: #{forward.1} parent=11 // pred_fallthru
          _
        // Predicated region
        $region49: #{forward.1} parent=11 // pred_check
          %p439 = pneg %p287
        $region50: #{forward.1} parent=11 // pred_check_branch
          %441 = sbr.rel (%p439) target = $region52
        $region51: #{forward.1} parent=11 // pred_region
          _
        $region52: #{forward.1} parent=11 // pred_fallthru
          _
        // Predicated region
        $region53: #{forward.1} parent=11 // pred_check
          %p442 = pneg %p308
        $region54: #{forward.1} parent=11 // pred_check_branch
          %444 = sbr.rel (%p442) target = $region56
        $region55: #{forward.1} parent=11 // pred_region
          _
        $region56: #{forward.1} parent=11 // pred_fallthru
          _
        // Predicated region
        $region57: #{forward.1} parent=11 // pred_check
          %p445 = pneg %p329
        $region58: #{forward.1} parent=11 // pred_check_branch
          %447 = sbr.rel (%p445) target = $region60
        $region59: #{forward.1} parent=11 // pred_region
          _
        $region60: #{forward.1} parent=11 // pred_fallthru
          _
        // Predicated region
        $region61: #{forward.1} parent=11 // pred_check
          %p448 = pneg %p350
        $region62: #{forward.1} parent=11 // pred_check_branch
          %450 = sbr.rel (%p448) target = $region64
        $region63: #{forward.1} parent=11 // pred_region
          _
        $region64: #{forward.1} parent=11 // pred_fallthru
          _
        // Predicated region
        $region65: #{forward.1} parent=11 // pred_check
          %p451 = pneg %p371
        $region66: #{forward.1} parent=11 // pred_check_branch
          %453 = sbr.rel (%p451) target = $region68
        $region67: #{forward.1} parent=11 // pred_region
          _
        $region68: #{forward.1} parent=11 // pred_fallthru
          _
      $region12: #{forward.1} parent=5 // pred_fallthru
        _
      %p454 = scmp.lt.s32.totalorder %s25, 2
      // Predicated region
      $region69: #{forward.1} parent=5 // pred_check
        %p455 = pneg %p454
      $region70: #{forward.1} parent=5 // pred_check_branch
        %457 = sbr.rel (%p455) target = $region72
      $region71: #{forward.1} parent=5 // pred_region
        // Predicated region
        $region73: #{forward.1} parent=71 // pred_check
          %p458 = pneg %p45
        $region74: #{forward.1} parent=71 // pred_check_branch
          %460 = sbr.rel (%p458) target = $region76
        $region75: #{forward.1} parent=71 // pred_region
          %p461 = scmp.lt.s32.totalorder %s25, 1
          %s462 = scalar_select %p461, %s25, 1
          %s463 = smul.addr %s462, 8
          %s464 = scalar_lea.vmem %s0, %s463
        $region76: #{forward.1} parent=71 // pred_fallthru
          _
        // Predicated region
        $region77: #{forward.1} parent=71 // pred_check
          %p465 = pneg %p71
        $region78: #{forward.1} parent=71 // pred_check_branch
          %467 = sbr.rel (%p465) target = $region80
        $region79: #{forward.1} parent=71 // pred_region
          %p468 = scmp.lt.s32.totalorder %s25, 1
          %s469 = scalar_select %p468, %s25, 1
          %s470 = scalar_lea.vmem %s1, %s469
        $region80: #{forward.1} parent=71 // pred_fallthru
          _
      $region72: #{forward.1} parent=5 // pred_fallthru
        _
      %p471 = scmp.le.s32.totalorder 1, %s25
      %p472 = scmp.lt.s32.totalorder %s25, 3
      %p473 = pnand %p471, %p472
      %p474 = pneg %p473
      // Predicated region
      $region81: #{forward.1} parent=5 // pred_check
        _
      $region82: #{forward.1} parent=5 // pred_check_branch
        %476 = sbr.rel (%p473) target = $region84
      $region83: #{forward.1} parent=5 // pred_region
        %s477 = ssub.s32 %s25, 1
        %p478 = scmp.lt.s32.totalorder %s30, 1
        %s479 = scalar_select %p478, %s30, 1
        %s480 = smul.addr %s479, 8
        %s481 = scalar_lea.vmem %s0, %s480
        %p482 = pneg %p51
        %p483 = pneg %p48
        %p484 = scmp.lt.s32.totalorder %s30, 1
        %s485 = scalar_select %p484, %s30, 1
        %s486 = scalar_lea.vmem %s1, %s485
        %p487 = pneg %p77
        %p488 = pneg %p74
        %p489 = pneg %p98
        %p490 = pneg %p95
        %p491 = pneg %p119
        %p492 = pneg %p116
        %p493 = pneg %p140
        %p494 = pneg %p137
        %p495 = pneg %p161
        %p496 = pneg %p158
        %p497 = pneg %p182
        %p498 = pneg %p179
        %p499 = pneg %p203
        %p500 = pneg %p200
        %p501 = pneg %p224
        %p502 = pneg %p221
        %p503 = pneg %p245
        %p504 = pneg %p242
        %p505 = pneg %p266
        %p506 = pneg %p263
        %p507 = pneg %p287
        %p508 = pneg %p284
        %p509 = pneg %p308
        %p510 = pneg %p305
        %p511 = pneg %p329
        %p512 = pneg %p326
        %p513 = pneg %p350
        %p514 = pneg %p347
        %p515 = pneg %p371
        %p516 = pneg %p368
        %p517 = pneg %p397
        %p518 = pneg %p394
        %s519 = sand.u32 %s384, 1
        %s520 = scalar_lea.sflag [#allocation3], %s519
        %s521 = sand.u32 %s384, 1
        %s522 = smul.addr %s521, 8
        %s523 = scalar_lea.vmem [#allocation2], %s522
        %p524 = scmp.lt.s32.totalorder %s30, 1
        %s525 = scalar_select %p524, %s30, 1
        %s526 = smul.addr %s525, 8
        %s527 = scalar_lea.vmem %s0, %s526
        %p528 = scmp.lt.s32.totalorder %s30, 1
        %s529 = scalar_select %p528, %s30, 1
        %s530 = scalar_lea.vmem %s1, %s529
        %v532 = vld [vmem:[%s527] sm:$0xff]
        %v533 = vld [vmem:[%s2] sm:$0x1]
        %v534 = vld [vmem:[%s3] sm:$0x1]
        %vm535 = vcmask 261120
        %v536 = vsel %vm535, %v532, 0.0
        %537 = vadd.xlane.f32.xlu0 %v536
        %v538 = vpop.xlane.xlu0 %537
        %v539 = vrcp.pop 32.0
        %v540 = vmul.f32 %v538, %v539
        %v541 = vsub.f32 %v532, %v540
        %v542 = vmul.f32 %v541, %v541
        %v543 = vsel %vm535, %v542, 0.0
        %544 = vadd.xlane.f32.xlu0 %v543
        %v545 = vpop.xlane.xlu0 %544
        %v546 = vmul.f32 %v545, %v539
        %v547 = vadd.f32 %v546, 1e-12
        %v548 = vrsqrt.pop %v547
        %v549 = vmul.f32 %v541, %v548
        %v551 = vlaneseq
        %v552 = vshrl.u32 %v551, 7
        %v553 = vsub.s32 0, %v552
        %v554 = vrot.slane %v533, %v553
        %v556 = vmul.f32 %v549, %v554
        %v558 = vlaneseq
        %v559 = vshrl.u32 %v558, 7
        %v560 = vsub.s32 0, %v559
        %v561 = vrot.slane %v534, %v560
        %v563 = vadd.f32 %v556, %v561
        %v564 = vld [vmem:[%s530] sm:$0x1]
        %v565 = vpack.c.bf16 %v563, %v563
        %v566 = vld [vmem:[%s4] sm:$0xf]
        %v567 = vld [vmem:[%s4 + $0x4] sm:$0xf]
        %v568 = vld [vmem:[%s4 + $0x8] sm:$0xf]
        %v569 = vld [vmem:[%s4 + $0xc] sm:$0xf]
        %v570 = vld [vmem:[%s5] sm:$0x1]
        %v572 = vlaneseq
        %v573 = vshrl.u32 %v572, 7
        %v574 = vsub.s32 0, %v573
        %v575 = vrot.slane %v570, %v574
        %v581 = vunpack.c.l.b16 %v566
        %v582 = vunpack.c.l.b16 %v567
        %v583 = vunpack.c.l.b16 %v568
        %v584 = vunpack.c.l.b16 %v569
        %v585 = vpack.c.b16 %v582, %v581
        %v586 = vpack.c.b16 %v584, %v583
        %v590 = vsel %vm535, %v565, 0
        %592 = vmatprep.subr.bf16.mxu0 0
        %593 = vmatpush1.bf16.msra.mxu0 %v585
        %594 = vmatprep.subr.bf16.mxu0 0
        %595 = vmatpush1.bf16.msra.mxu0 %v586
        %596 = vmatprep.subr.bf16.mxu0 0
        %597 = vmatpush1.bf16.msra.mxu0 0
        %598 = vmatprep.subr.bf16.mxu0 0
        %599 = vmatpush1.bf16.msra.mxu0 0
        %600 = vmatprep.subr.bf16.mxu0 0
        %601 = vmatpush1.bf16.msra.mxu0 0
        %602 = vmatprep.subr.bf16.mxu0 0
        %603 = vmatpush1.bf16.msra.mxu0 0
        %604 = vmatprep.subr.bf16.mxu0 0
        %605 = vmatpush1.bf16.msra.mxu0 0
        %606 = vmatprep.subr.bf16.mxu0 0
        %607 = vmatpush1.bf16.msra.mxu0 0
        %608 = vmatprep.subr.bf16.mxu0 0
        %609 = vmatpush1.bf16.msra.mxu0 0
        %610 = vmatprep.subr.bf16.mxu0 0
        %611 = vmatpush1.bf16.msra.mxu0 0
        %612 = vmatprep.subr.bf16.mxu0 0
        %613 = vmatpush1.bf16.msra.mxu0 0
        %614 = vmatprep.subr.bf16.mxu0 0
        %615 = vmatpush1.bf16.msra.mxu0 0
        %616 = vmatprep.subr.bf16.mxu0 0
        %617 = vmatpush1.bf16.msra.mxu0 0
        %618 = vmatprep.subr.bf16.mxu0 0
        %619 = vmatpush1.bf16.msra.mxu0 0
        %620 = vmatprep.subr.bf16.mxu0 0
        %621 = vmatpush1.bf16.msra.mxu0 0
        %622 = vmatprep.subr.bf16.mxu0 0
        %623 = vmatpush1.bf16.msra.mxu0 0
        %624 = vmatprep.mubr.bf16.mxu0 0
        %625 = vmatmul.mubr.bf16.gmra.mrb[0].mxu0 %v590
        %v626 = vpop.f32.mrb[0].mxu0
        %v627 = vadd.f32 %v575, %v626
        %v628 = vpop.f32.mrb[0].mxu0
        %v629 = vpop.f32.mrb[0].mxu0
        %v630 = vpop.f32.mrb[0].mxu0
        %631 = vdwg.mxu0
        %v632 = vpack.c.bf16 %v627, %v627
        %634 = vrot.lane.b32.xlu0 %v632, 96
        %v635 = vpop.permute.xlu0 %634
        %vm636 = vcmask 64512
        %v638 = vsel %vm636, %v632, 0
        %v641 = vsel %vm636, %v635, 0
        %643 = vmatprep.subr.bf16.mxu0 0
        %644 = vmatpush1.bf16.xpose.msra.mxu0 %v641
        %645 = vmatprep.subr.bf16.mxu0 0
        %646 = vmatpush1.bf16.xpose.msra.mxu0 0
        %647 = vmatprep.subr.bf16.mxu0 0
        %648 = vmatpush1.bf16.xpose.msra.mxu0 0
        %649 = vmatprep.subr.bf16.mxu0 0
        %650 = vmatpush1.bf16.xpose.msra.mxu0 0
        %651 = vmatprep.subr.bf16.mxu0 0
        %652 = vmatpush1.bf16.xpose.msra.mxu0 0
        %653 = vmatprep.subr.bf16.mxu0 0
        %654 = vmatpush1.bf16.xpose.msra.mxu0 0
        %655 = vmatprep.subr.bf16.mxu0 0
        %656 = vmatpush1.bf16.xpose.msra.mxu0 0
        %657 = vmatprep.subr.bf16.mxu0 0
        %658 = vmatpush1.bf16.xpose.msra.mxu0 0
        %659 = vmatprep.subr.bf16.mxu0 0
        %660 = vmatpush1.bf16.xpose.msra.mxu0 0
        %661 = vmatprep.subr.bf16.mxu0 0
        %662 = vmatpush1.bf16.xpose.msra.mxu0 0
        %663 = vmatprep.subr.bf16.mxu0 0
        %664 = vmatpush1.bf16.xpose.msra.mxu0 0
        %665 = vmatprep.subr.bf16.mxu0 0
        %666 = vmatpush1.bf16.xpose.msra.mxu0 0
        %667 = vmatprep.subr.bf16.mxu0 0
        %668 = vmatpush1.bf16.xpose.msra.mxu0 0
        %669 = vmatprep.subr.bf16.mxu0 0
        %670 = vmatpush1.bf16.xpose.msra.mxu0 0
        %671 = vmatprep.subr.bf16.mxu0 0
        %672 = vmatpush1.bf16.xpose.msra.mxu0 0
        %673 = vmatprep.subr.bf16.mxu0 0
        %674 = vmatpush1.bf16.xpose.msra.mxu0 0
        %675 = vmatprep.mubr.bf16.mxu0 0
        %676 = vmatmul.mubr.bf16.gmra.mrb[0].mxu0 %v638
        %v677 = vpop.f32.mrb[0].mxu0
        %v678 = vadd.f32 0.0, %v677
        %v679 = vpop.f32.mrb[0].mxu0
        %v680 = vpop.f32.mrb[0].mxu0
        %v681 = vpop.f32.mrb[0].mxu0
        %682 = vdwg.mxu0
        %v683 = vmul.f32 %v678, 0.35355338
        %v685 = vlaneseq
        %v686 = vshrl.u32 %v685, 7
        %v687 = vsub.s32 0, %v686
        %v688 = vrot.slane %v564, %v687
        %v690 = vadd.f32 %v683, %v688
        %v691 = vsel %vm636, %v690, -inf
        %692 = vmax.xlane.f32.xlu0 %v691
        %v693 = vpop.xlane.xlu0 %692
        %v694 = vsub.f32 %v690, %v693
        %v695 = vmul.f32 %v694, 1.442695
        %v696 = vpow.pop %v695
        %v697 = vsel %vm636, %v696, 0.0
        %698 = vadd.xlane.f32.xlu0 %v697
        %v699 = vpop.xlane.xlu0 %698
        %v700 = vrcp.pop %v699
        %v701 = vmul.f32 %v696, %v700
        %v702 = vpack.c.bf16 %v701, %v701
        %703 = vrot.lane.b32.xlu0 %v632, 64
        %v704 = vpop.permute.xlu0 %703
        %v706 = vsel %vm636, %v702, 0
        %vm708 = vcmask 1043456
        %v710 = vsel %vm708, %v704, 0
        %712 = vmatprep.subr.bf16.mxu0 0
        %713 = vmatpush1.bf16.msra.mxu0 %v710
        %714 = vmatprep.subr.bf16.mxu0 0
        %715 = vmatpush1.bf16.msra.mxu0 0
        %716 = vmatprep.subr.bf16.mxu0 0
        %717 = vmatpush1.bf16.msra.mxu0 0
        %718 = vmatprep.subr.bf16.mxu0 0
        %719 = vmatpush1.bf16.msra.mxu0 0
        %720 = vmatprep.subr.bf16.mxu0 0
        %721 = vmatpush1.bf16.msra.mxu0 0
        %722 = vmatprep.subr.bf16.mxu0 0
        %723 = vmatpush1.bf16.msra.mxu0 0
        %724 = vmatprep.subr.bf16.mxu0 0
        %725 = vmatpush1.bf16.msra.mxu0 0
        %726 = vmatprep.subr.bf16.mxu0 0
        %727 = vmatpush1.bf16.msra.mxu0 0
        %728 = vmatprep.subr.bf16.mxu0 0
        %729 = vmatpush1.bf16.msra.mxu0 0
        %730 = vmatprep.subr.bf16.mxu0 0
        %731 = vmatpush1.bf16.msra.mxu0 0
        %732 = vmatprep.subr.bf16.mxu0 0
        %733 = vmatpush1.bf16.msra.mxu0 0
        %734 = vmatprep.subr.bf16.mxu0 0
        %735 = vmatpush1.bf16.msra.mxu0 0
        %736 = vmatprep.subr.bf16.mxu0 0
        %737 = vmatpush1.bf16.msra.mxu0 0
        %738 = vmatprep.subr.bf16.mxu0 0
        %739 = vmatpush1.bf16.msra.mxu0 0
        %740 = vmatprep.subr.bf16.mxu0 0
        %741 = vmatpush1.bf16.msra.mxu0 0
        %742 = vmatprep.subr.bf16.mxu0 0
        %743 = vmatpush1.bf16.msra.mxu0 0
        %744 = vmatprep.mubr.bf16.mxu0 0
        %745 = vmatmul.mubr.bf16.gmra.mrb[0].mxu0 %v706
        %v746 = vpop.f32.mrb[0].mxu0
        %v747 = vadd.f32 0.0, %v746
        %v748 = vpop.f32.mrb[0].mxu0
        %v749 = vpop.f32.mrb[0].mxu0
        %v750 = vpop.f32.mrb[0].mxu0
        %751 = vdwg.mxu0
        %752 = vrot.lane.b32.xlu0 %v632, 120
        %v753 = vpop.permute.xlu0 %752
        %754 = vrot.lane.b32.xlu0 %v632, 88
        %v755 = vpop.permute.xlu0 %754
        %v757 = vsel %vm636, %v753, 0
        %v760 = vsel %vm636, %v755, 0
        %762 = vmatprep.subr.bf16.mxu0 0
        %763 = vmatpush1.bf16.xpose.msra.mxu0 %v760
        %764 = vmatprep.subr.bf16.mxu0 0
        %765 = vmatpush1.bf16.xpose.msra.mxu0 0
        %766 = vmatprep.subr.bf16.mxu0 0
        %767 = vmatpush1.bf16.xpose.msra.mxu0 0
        %768 = vmatprep.subr.bf16.mxu0 0
        %769 = vmatpush1.bf16.xpose.msra.mxu0 0
        %770 = vmatprep.subr.bf16.mxu0 0
        %771 = vmatpush1.bf16.xpose.msra.mxu0 0
        %772 = vmatprep.subr.bf16.mxu0 0
        %773 = vmatpush1.bf16.xpose.msra.mxu0 0
        %774 = vmatprep.subr.bf16.mxu0 0
        %775 = vmatpush1.bf16.xpose.msra.mxu0 0
        %776 = vmatprep.subr.bf16.mxu0 0
        %777 = vmatpush1.bf16.xpose.msra.mxu0 0
        %778 = vmatprep.subr.bf16.mxu0 0
        %779 = vmatpush1.bf16.xpose.msra.mxu0 0
        %780 = vmatprep.subr.bf16.mxu0 0
        %781 = vmatpush1.bf16.xpose.msra.mxu0 0
        %782 = vmatprep.subr.bf16.mxu0 0
        %783 = vmatpush1.bf16.xpose.msra.mxu0 0
        %784 = vmatprep.subr.bf16.mxu0 0
        %785 = vmatpush1.bf16.xpose.msra.mxu0 0
        %786 = vmatprep.subr.bf16.mxu0 0
        %787 = vmatpush1.bf16.xpose.msra.mxu0 0
        %788 = vmatprep.subr.bf16.mxu0 0
        %789 = vmatpush1.bf16.xpose.msra.mxu0 0
        %790 = vmatprep.subr.bf16.mxu0 0
        %791 = vmatpush1.bf16.xpose.msra.mxu0 0
        %792 = vmatprep.subr.bf16.mxu0 0
        %793 = vmatpush1.bf16.xpose.msra.mxu0 0
        %794 = vmatprep.mubr.bf16.mxu0 0
        %795 = vmatmul.mubr.bf16.gmra.mrb[0].mxu0 %v757
        %v796 = vpop.f32.mrb[0].mxu0
        %v797 = vadd.f32 0.0, %v796
        %v798 = vpop.f32.mrb[0].mxu0
        %v799 = vpop.f32.mrb[0].mxu0
        %v800 = vpop.f32.mrb[0].mxu0
        %801 = vdwg.mxu0
        %v802 = vmul.f32 %v797, 0.35355338
        %v803 = vadd.f32 %v802, %v688
        %v804 = vsel %vm636, %v803, -inf
        %805 = vmax.xlane.f32.xlu0 %v804
        %v806 = vpop.xlane.xlu0 %805
        %v807 = vsub.f32 %v803, %v806
        %v808 = vmul.f32 %v807, 1.442695
        %v809 = vpow.pop %v808
        %v810 = vsel %vm636, %v809, 0.0
        %811 = vadd.xlane.f32.xlu0 %v810
        %v812 = vpop.xlane.xlu0 %811
        %v813 = vrcp.pop %v812
        %v814 = vmul.f32 %v809, %v813
        %v815 = vpack.c.bf16 %v814, %v814
        %816 = vrot.lane.b32.xlu0 %v632, 56
        %v817 = vpop.permute.xlu0 %816
        %v819 = vsel %vm636, %v815, 0
        %v822 = vsel %vm708, %v817, 0
        %824 = vmatprep.subr.bf16.mxu0 0
        %825 = vmatpush1.bf16.msra.mxu0 %v822
        %826 = vmatprep.subr.bf16.mxu0 0
        %827 = vmatpush1.bf16.msra.mxu0 0
        %828 = vmatprep.subr.bf16.mxu0 0
        %829 = vmatpush1.bf16.msra.mxu0 0
        %830 = vmatprep.subr.bf16.mxu0 0
        %831 = vmatpush1.bf16.msra.mxu0 0
        %832 = vmatprep.subr.bf16.mxu0 0
        %833 = vmatpush1.bf16.msra.mxu0 0
        %834 = vmatprep.subr.bf16.mxu0 0
        %835 = vmatpush1.bf16.msra.mxu0 0
        %836 = vmatprep.subr.bf16.mxu0 0
        %837 = vmatpush1.bf16.msra.mxu0 0
        %838 = vmatprep.subr.bf16.mxu0 0
        %839 = vmatpush1.bf16.msra.mxu0 0
        %840 = vmatprep.subr.bf16.mxu0 0
        %841 = vmatpush1.bf16.msra.mxu0 0
        %842 = vmatprep.subr.bf16.mxu0 0
        %843 = vmatpush1.bf16.msra.mxu0 0
        %844 = vmatprep.subr.bf16.mxu0 0
        %845 = vmatpush1.bf16.msra.mxu0 0
        %846 = vmatprep.subr.bf16.mxu0 0
        %847 = vmatpush1.bf16.msra.mxu0 0
        %848 = vmatprep.subr.bf16.mxu0 0
        %849 = vmatpush1.bf16.msra.mxu0 0
        %850 = vmatprep.subr.bf16.mxu0 0
        %851 = vmatpush1.bf16.msra.mxu0 0
        %852 = vmatprep.subr.bf16.mxu0 0
        %853 = vmatpush1.bf16.msra.mxu0 0
        %854 = vmatprep.subr.bf16.mxu0 0
        %855 = vmatpush1.bf16.msra.mxu0 0
        %856 = vmatprep.mubr.bf16.mxu0 0
        %857 = vmatmul.mubr.bf16.gmra.mrb[0].mxu0 %v819
        %v858 = vpop.f32.mrb[0].mxu0
        %v859 = vadd.f32 0.0, %v858
        %v860 = vpop.f32.mrb[0].mxu0
        %v861 = vpop.f32.mrb[0].mxu0
        %v862 = vpop.f32.mrb[0].mxu0
        %863 = vdwg.mxu0
        %864 = vrot.lane.b32.xlu0 %v632, 112
        %v865 = vpop.permute.xlu0 %864
        %866 = vrot.lane.b32.xlu0 %v632, 80
        %v867 = vpop.permute.xlu0 %866
        %v869 = vsel %vm636, %v865, 0
        %v872 = vsel %vm636, %v867, 0
        %874 = vmatprep.subr.bf16.mxu0 0
        %875 = vmatpush1.bf16.xpose.msra.mxu0 %v872
        %876 = vmatprep.subr.bf16.mxu0 0
        %877 = vmatpush1.bf16.xpose.msra.mxu0 0
        %878 = vmatprep.subr.bf16.mxu0 0
        %879 = vmatpush1.bf16.xpose.msra.mxu0 0
        %880 = vmatprep.subr.bf16.mxu0 0
        %881 = vmatpush1.bf16.xpose.msra.mxu0 0
        %882 = vmatprep.subr.bf16.mxu0 0
        %883 = vmatpush1.bf16.xpose.msra.mxu0 0
        %884 = vmatprep.subr.bf16.mxu0 0
        %885 = vmatpush1.bf16.xpose.msra.mxu0 0
        %886 = vmatprep.subr.bf16.mxu0 0
        %887 = vmatpush1.bf16.xpose.msra.mxu0 0
        %888 = vmatprep.subr.bf16.mxu0 0
        %889 = vmatpush1.bf16.xpose.msra.mxu0 0
        %890 = vmatprep.subr.bf16.mxu0 0
        %891 = vmatpush1.bf16.xpose.msra.mxu0 0
        %892 = vmatprep.subr.bf16.mxu0 0
        %893 = vmatpush1.bf16.xpose.msra.mxu0 0
        %894 = vmatprep.subr.bf16.mxu0 0
        %895 = vmatpush1.bf16.xpose.msra.mxu0 0
        %896 = vmatprep.subr.bf16.mxu0 0
        %897 = vmatpush1.bf16.xpose.msra.mxu0 0
        %898 = vmatprep.subr.bf16.mxu0 0
        %899 = vmatpush1.bf16.xpose.msra.mxu0 0
        %900 = vmatprep.subr.bf16.mxu0 0
        %901 = vmatpush1.bf16.xpose.msra.mxu0 0
        %902 = vmatprep.subr.bf16.mxu0 0
        %903 = vmatpush1.bf16.xpose.msra.mxu0 0
        %904 = vmatprep.subr.bf16.mxu0 0
        %905 = vmatpush1.bf16.xpose.msra.mxu0 0
        %906 = vmatprep.mubr.bf16.mxu0 0
        %907 = vmatmul.mubr.bf16.gmra.mrb[0].mxu0 %v869
        %v908 = vpop.f32.mrb[0].mxu0
        %v909 = vadd.f32 0.0, %v908
        %v910 = vpop.f32.mrb[0].mxu0
        %v911 = vpop.f32.mrb[0].mxu0
        %v912 = vpop.f32.mrb[0].mxu0
        %913 = vdwg.mxu0
        %v914 = vmul.f32 %v909, 0.35355338
        %v915 = vadd.f32 %v914, %v688
        %v916 = vsel %vm636, %v915, -inf
        %917 = vmax.xlane.f32.xlu0 %v916
        %v918 = vpop.xlane.xlu0 %917
        %v919 = vsub.f32 %v915, %v918
        %v920 = vmul.f32 %v919, 1.442695
        %v921 = vpow.pop %v920
        %v922 = vsel %vm636, %v921, 0.0
        %923 = vadd.xlane.f32.xlu0 %v922
        %v924 = vpop.xlane.xlu0 %923
        %v925 = vrcp.pop %v924
        %v926 = vmul.f32 %v921, %v925
        %v927 = vpack.c.bf16 %v926, %v926
        %928 = vrot.lane.b32.xlu0 %v632, 48
        %v929 = vpop.permute.xlu0 %928
        %v931 = vsel %vm636, %v927, 0
        %v934 = vsel %vm708, %v929, 0
        %936 = vmatprep.subr.bf16.mxu0 0
        %937 = vmatpush1.bf16.msra.mxu0 %v934
        %938 = vmatprep.subr.bf16.mxu0 0
        %939 = vmatpush1.bf16.msra.mxu0 0
        %940 = vmatprep.subr.bf16.mxu0 0
        %941 = vmatpush1.bf16.msra.mxu0 0
        %942 = vmatprep.subr.bf16.mxu0 0
        %943 = vmatpush1.bf16.msra.mxu0 0
        %944 = vmatprep.subr.bf16.mxu0 0
        %945 = vmatpush1.bf16.msra.mxu0 0
        %946 = vmatprep.subr.bf16.mxu0 0
        %947 = vmatpush1.bf16.msra.mxu0 0
        %948 = vmatprep.subr.bf16.mxu0 0
        %949 = vmatpush1.bf16.msra.mxu0 0
        %950 = vmatprep.subr.bf16.mxu0 0
        %951 = vmatpush1.bf16.msra.mxu0 0
        %952 = vmatprep.subr.bf16.mxu0 0
        %953 = vmatpush1.bf16.msra.mxu0 0
        %954 = vmatprep.subr.bf16.mxu0 0
        %955 = vmatpush1.bf16.msra.mxu0 0
        %956 = vmatprep.subr.bf16.mxu0 0
        %957 = vmatpush1.bf16.msra.mxu0 0
        %958 = vmatprep.subr.bf16.mxu0 0
        %959 = vmatpush1.bf16.msra.mxu0 0
        %960 = vmatprep.subr.bf16.mxu0 0
        %961 = vmatpush1.bf16.msra.mxu0 0
        %962 = vmatprep.subr.bf16.mxu0 0
        %963 = vmatpush1.bf16.msra.mxu0 0
        %964 = vmatprep.subr.bf16.mxu0 0
        %965 = vmatpush1.bf16.msra.mxu0 0
        %966 = vmatprep.subr.bf16.mxu0 0
        %967 = vmatpush1.bf16.msra.mxu0 0
        %968 = vmatprep.mubr.bf16.mxu0 0
        %969 = vmatmul.mubr.bf16.gmra.mrb[0].mxu0 %v931
        %v970 = vpop.f32.mrb[0].mxu0
        %v971 = vadd.f32 0.0, %v970
        %v972 = vpop.f32.mrb[0].mxu0
        %v973 = vpop.f32.mrb[0].mxu0
        %v974 = vpop.f32.mrb[0].mxu0
        %975 = vdwg.mxu0
        %976 = vrot.lane.b32.xlu0 %v632, 104
        %v977 = vpop.permute.xlu0 %976
        %978 = vrot.lane.b32.xlu0 %v632, 72
        %v979 = vpop.permute.xlu0 %978
        %v981 = vsel %vm636, %v977, 0
        %v984 = vsel %vm636, %v979, 0
        %986 = vmatprep.subr.bf16.mxu0 0
        %987 = vmatpush1.bf16.xpose.msra.mxu0 %v984
        %988 = vmatprep.subr.bf16.mxu0 0
        %989 = vmatpush1.bf16.xpose.msra.mxu0 0
        %990 = vmatprep.subr.bf16.mxu0 0
        %991 = vmatpush1.bf16.xpose.msra.mxu0 0
        %992 = vmatprep.subr.bf16.mxu0 0
        %993 = vmatpush1.bf16.xpose.msra.mxu0 0
        %994 = vmatprep.subr.bf16.mxu0 0
        %995 = vmatpush1.bf16.xpose.msra.mxu0 0
        %996 = vmatprep.subr.bf16.mxu0 0
        %997 = vmatpush1.bf16.xpose.msra.mxu0 0
        %998 = vmatprep.subr.bf16.mxu0 0
        %999 = vmatpush1.bf16.xpose.msra.mxu0 0
        %1000 = vmatprep.subr.bf16.mxu0 0
        %1001 = vmatpush1.bf16.xpose.msra.mxu0 0
        %1002 = vmatprep.subr.bf16.mxu0 0
        %1003 = vmatpush1.bf16.xpose.msra.mxu0 0
        %1004 = vmatprep.subr.bf16.mxu0 0
        %1005 = vmatpush1.bf16.xpose.msra.mxu0 0
        %1006 = vmatprep.subr.bf16.mxu0 0
        %1007 = vmatpush1.bf16.xpose.msra.mxu0 0
        %1008 = vmatprep.subr.bf16.mxu0 0
        %1009 = vmatpush1.bf16.xpose.msra.mxu0 0
        %1010 = vmatprep.subr.bf16.mxu0 0
        %1011 = vmatpush1.bf16.xpose.msra.mxu0 0
        %1012 = vmatprep.subr.bf16.mxu0 0
        %1013 = vmatpush1.bf16.xpose.msra.mxu0 0
        %1014 = vmatprep.subr.bf16.mxu0 0
        %1015 = vmatpush1.bf16.xpose.msra.mxu0 0
        %1016 = vmatprep.subr.bf16.mxu0 0
        %1017 = vmatpush1.bf16.xpose.msra.mxu0 0
        %1018 = vmatprep.mubr.bf16.mxu0 0
        %1019 = vmatmul.mubr.bf16.gmra.mrb[0].mxu0 %v981
        %v1020 = vpop.f32.mrb[0].mxu0
        %v1021 = vadd.f32 0.0, %v1020
        %v1022 = vpop.f32.mrb[0].mxu0
        %v1023 = vpop.f32.mrb[0].mxu0
        %v1024 = vpop.f32.mrb[0].mxu0
        %1025 = vdwg.mxu0
        %v1026 = vmul.f32 %v1021, 0.35355338
        %v1027 = vadd.f32 %v1026, %v688
        %v1028 = vsel %vm636, %v1027, -inf
        %1029 = vmax.xlane.f32.xlu0 %v1028
        %v1030 = vpop.xlane.xlu0 %1029
        %v1031 = vsub.f32 %v1027, %v1030
        %v1032 = vmul.f32 %v1031, 1.442695
        %v1033 = vpow.pop %v1032
        %v1034 = vsel %vm636, %v1033, 0.0
        %1035 = vadd.xlane.f32.xlu0 %v1034
        %v1036 = vpop.xlane.xlu0 %1035
        %v1037 = vrcp.pop %v1036
        %v1038 = vmul.f32 %v1033, %v1037
        %v1039 = vpack.c.bf16 %v1038, %v1038
        %1040 = vrot.lane.b32.xlu0 %v632, 40
        %v1041 = vpop.permute.xlu0 %1040
        %v1043 = vsel %vm636, %v1039, 0
        %v1046 = vsel %vm708, %v1041, 0
        %1048 = vmatprep.subr.bf16.mxu0 0
        %1049 = vmatpush1.bf16.msra.mxu0 %v1046
        %1050 = vmatprep.subr.bf16.mxu0 0
        %1051 = vmatpush1.bf16.msra.mxu0 0
        %1052 = vmatprep.subr.bf16.mxu0 0
        %1053 = vmatpush1.bf16.msra.mxu0 0
        %1054 = vmatprep.subr.bf16.mxu0 0
        %1055 = vmatpush1.bf16.msra.mxu0 0
        %1056 = vmatprep.subr.bf16.mxu0 0
        %1057 = vmatpush1.bf16.msra.mxu0 0
        %1058 = vmatprep.subr.bf16.mxu0 0
        %1059 = vmatpush1.bf16.msra.mxu0 0
        %1060 = vmatprep.subr.bf16.mxu0 0
        %1061 = vmatpush1.bf16.msra.mxu0 0
        %1062 = vmatprep.subr.bf16.mxu0 0
        %1063 = vmatpush1.bf16.msra.mxu0 0
        %1064 = vmatprep.subr.bf16.mxu0 0
        %1065 = vmatpush1.bf16.msra.mxu0 0
        %1066 = vmatprep.subr.bf16.mxu0 0
        %1067 = vmatpush1.bf16.msra.mxu0 0
        %1068 = vmatprep.subr.bf16.mxu0 0
        %1069 = vmatpush1.bf16.msra.mxu0 0
        %1070 = vmatprep.subr.bf16.mxu0 0
        %1071 = vmatpush1.bf16.msra.mxu0 0
        %1072 = vmatprep.subr.bf16.mxu0 0
        %1073 = vmatpush1.bf16.msra.mxu0 0
        %1074 = vmatprep.subr.bf16.mxu0 0
        %1075 = vmatpush1.bf16.msra.mxu0 0
        %1076 = vmatprep.subr.bf16.mxu0 0
        %1077 = vmatpush1.bf16.msra.mxu0 0
        %1078 = vmatprep.subr.bf16.mxu0 0
        %1079 = vmatpush1.bf16.msra.mxu0 0
        %1080 = vmatprep.mubr.bf16.mxu0 0
        %1081 = vmatmul.mubr.bf16.gmra.mrb[0].mxu0 %v1043
        %v1082 = vpop.f32.mrb[0].mxu0
        %v1083 = vadd.f32 0.0, %v1082
        %v1084 = vpop.f32.mrb[0].mxu0
        %v1085 = vpop.f32.mrb[0].mxu0
        %v1086 = vpop.f32.mrb[0].mxu0
        %1087 = vdwg.mxu0
        %1089 = vrot.lane.b32.xlu0 %v859, 8
        %v1090 = vpop.permute.xlu0 %1089
        %1093 = vrot.lane.b32.xlu0 %v971, 16
        %v1094 = vpop.permute.xlu0 %1093
        %1097 = vrot.lane.b32.xlu0 %v1083, 24
        %v1098 = vpop.permute.xlu0 %1097
        %v1100 = vsel %vm636, %v747, %v1090
        %vm1101 = vcmask 130048
        %v1102 = vsel %vm1101, %v1100, %v1094
        %vm1103 = vcmask 195584
        %v1104 = vsel %vm1103, %v1102, %v1098
        %v1105 = vpack.c.bf16 %v1104, %v1104
        %v1106 = vld [vmem:[%s6] sm:$0xf]
        %v1107 = vld [vmem:[%s6 + $0x4] sm:$0xf]
        %v1108 = vld [vmem:[%s6 + $0x8] sm:$0xf]
        %v1109 = vld [vmem:[%s6 + $0xc] sm:$0xf]
        %v1110 = vld [vmem:[%s7] sm:$0x1]
        %v1112 = vlaneseq
        %v1113 = vshrl.u32 %v1112, 7
        %v1114 = vsub.s32 0, %v1113
        %v1115 = vrot.slane %v1110, %v1114
        %v1121 = vunpack.c.l.b16 %v1106
        %v1122 = vunpack.c.l.b16 %v1107
        %v1123 = vunpack.c.l.b16 %v1108
        %v1124 = vunpack.c.l.b16 %v1109
        %v1125 = vpack.c.b16 %v1122, %v1121
        %v1126 = vpack.c.b16 %v1124, %v1123
        %v1130 = vsel %vm535, %v1105, 0
        %1132 = vmatprep.subr.bf16.mxu0 0
        %1133 = vmatpush1.bf16.msra.mxu0 %v1125
        %1134 = vmatprep.subr.bf16.mxu0 0
        %1135 = vmatpush1.bf16.msra.mxu0 %v1126
        %1136 = vmatprep.subr.bf16.mxu0 0
        %1137 = vmatpush1.bf16.msra.mxu0 0
        %1138 = vmatprep.subr.bf16.mxu0 0
        %1139 = vmatpush1.bf16.msra.mxu0 0
        %1140 = vmatprep.subr.bf16.mxu0 0
        %1141 = vmatpush1.bf16.msra.mxu0 0
        %1142 = vmatprep.subr.bf16.mxu0 0
        %1143 = vmatpush1.bf16.msra.mxu0 0
        %1144 = vmatprep.subr.bf16.mxu0 0
        %1145 = vmatpush1.bf16.msra.mxu0 0
        %1146 = vmatprep.subr.bf16.mxu0 0
        %1147 = vmatpush1.bf16.msra.mxu0 0
        %1148 = vmatprep.subr.bf16.mxu0 0
        %1149 = vmatpush1.bf16.msra.mxu0 0
        %1150 = vmatprep.subr.bf16.mxu0 0
        %1151 = vmatpush1.bf16.msra.mxu0 0
        %1152 = vmatprep.subr.bf16.mxu0 0
        %1153 = vmatpush1.bf16.msra.mxu0 0
        %1154 = vmatprep.subr.bf16.mxu0 0
        %1155 = vmatpush1.bf16.msra.mxu0 0
        %1156 = vmatprep.subr.bf16.mxu0 0
        %1157 = vmatpush1.bf16.msra.mxu0 0
        %1158 = vmatprep.subr.bf16.mxu0 0
        %1159 = vmatpush1.bf16.msra.mxu0 0
        %1160 = vmatprep.subr.bf16.mxu0 0
        %1161 = vmatpush1.bf16.msra.mxu0 0
        %1162 = vmatprep.subr.bf16.mxu0 0
        %1163 = vmatpush1.bf16.msra.mxu0 0
        %1164 = vmatprep.mubr.bf16.mxu0 0
        %1165 = vmatmul.mubr.bf16.gmra.mrb[0].mxu0 %v1130
        %v1166 = vpop.f32.mrb[0].mxu0
        %v1167 = vadd.f32 %v1115, %v1166
        %v1168 = vpop.f32.mrb[0].mxu0
        %v1169 = vpop.f32.mrb[0].mxu0
        %v1170 = vpop.f32.mrb[0].mxu0
        %1171 = vdwg.mxu0
        %v1172 = vadd.f32 %v1167, %v563
        %v1173 = vld [vmem:[%s8] sm:$0x1]
        %v1174 = vld [vmem:[%s9] sm:$0x1]
        %v1175 = vsel %vm535, %v1172, 0.0
        %1176 = vadd.xlane.f32.xlu0 %v1175
        %v1177 = vpop.xlane.xlu0 %1176
        %v1178 = vmul.f32 %v1177, %v539
        %v1179 = vsub.f32 %v1172, %v1178
        %v1180 = vmul.f32 %v1179, %v1179
        %v1181 = vsel %vm535, %v1180, 0.0
        %1182 = vadd.xlane.f32.xlu0 %v1181
        %v1183 = vpop.xlane.xlu0 %1182
        %v1184 = vmul.f32 %v1183, %v539
        %v1185 = vadd.f32 %v1184, 1e-12
        %v1186 = vrsqrt.pop %v1185
        %v1187 = vmul.f32 %v1179, %v1186
        %v1189 = vlaneseq
        %v1190 = vshrl.u32 %v1189, 7
        %v1191 = vsub.s32 0, %v1190
        %v1192 = vrot.slane %v1173, %v1191
        %v1194 = vmul.f32 %v1187, %v1192
        %v1196 = vlaneseq
        %v1197 = vshrl.u32 %v1196, 7
        %v1198 = vsub.s32 0, %v1197
        %v1199 = vrot.slane %v1174, %v1198
        %v1201 = vadd.f32 %v1194, %v1199
        %v1202 = vpack.c.bf16 %v1201, %v1201
        %v1203 = vld [vmem:[%s10] sm:$0xf]
        %v1204 = vld [vmem:[%s10 + $0x4] sm:$0xf]
        %v1205 = vld [vmem:[%s10 + $0x8] sm:$0xf]
        %v1206 = vld [vmem:[%s10 + $0xc] sm:$0xf]
        %v1207 = vld [vmem:[%s11] sm:$0x1]
        %v1209 = vlaneseq
        %v1210 = vshrl.u32 %v1209, 7
        %v1211 = vsub.s32 0, %v1210
        %v1212 = vrot.slane %v1207, %v1211
        %v1218 = vunpack.c.l.b16 %v1203
        %v1219 = vunpack.c.l.b16 %v1204
        %v1220 = vunpack.c.l.b16 %v1205
        %v1221 = vunpack.c.l.b16 %v1206
        %v1222 = vpack.c.b16 %v1219, %v1218
        %v1223 = vpack.c.b16 %v1221, %v1220
        %v1227 = vsel %vm535, %v1202, 0
        %1229 = vmatprep.subr.bf16.mxu0 0
        %1230 = vmatpush1.bf16.msra.mxu0 %v1222
        %1231 = vmatprep.subr.bf16.mxu0 0
        %1232 = vmatpush1.bf16.msra.mxu0 %v1223
        %1233 = vmatprep.subr.bf16.mxu0 0
        %1234 = vmatpush1.bf16.msra.mxu0 0
        %1235 = vmatprep.subr.bf16.mxu0 0
        %1236 = vmatpush1.bf16.msra.mxu0 0
        %1237 = vmatprep.subr.bf16.mxu0 0
        %1238 = vmatpush1.bf16.msra.mxu0 0
        %1239 = vmatprep.subr.bf16.mxu0 0
        %1240 = vmatpush1.bf16.msra.mxu0 0
        %1241 = vmatprep.subr.bf16.mxu0 0
        %1242 = vmatpush1.bf16.msra.mxu0 0
        %1243 = vmatprep.subr.bf16.mxu0 0
        %1244 = vmatpush1.bf16.msra.mxu0 0
        %1245 = vmatprep.subr.bf16.mxu0 0
        %1246 = vmatpush1.bf16.msra.mxu0 0
        %1247 = vmatprep.subr.bf16.mxu0 0
        %1248 = vmatpush1.bf16.msra.mxu0 0
        %1249 = vmatprep.subr.bf16.mxu0 0
        %1250 = vmatpush1.bf16.msra.mxu0 0
        %1251 = vmatprep.subr.bf16.mxu0 0
        %1252 = vmatpush1.bf16.msra.mxu0 0
        %1253 = vmatprep.subr.bf16.mxu0 0
        %1254 = vmatpush1.bf16.msra.mxu0 0
        %1255 = vmatprep.subr.bf16.mxu0 0
        %1256 = vmatpush1.bf16.msra.mxu0 0
        %1257 = vmatprep.subr.bf16.mxu0 0
        %1258 = vmatpush1.bf16.msra.mxu0 0
        %1259 = vmatprep.subr.bf16.mxu0 0
        %1260 = vmatpush1.bf16.msra.mxu0 0
        %1261 = vmatprep.mubr.bf16.mxu0 0
        %1262 = vmatmul.mubr.bf16.gmra.mrb[0].mxu0 %v1227
        %v1263 = vpop.f32.mrb[0].mxu0
        %v1264 = vadd.f32 %v1212, %v1263
        %v1265 = vpop.f32.mrb[0].mxu0
        %v1266 = vpop.f32.mrb[0].mxu0
        %v1267 = vpop.f32.mrb[0].mxu0
        %1268 = vdwg.mxu0
        %v1269 = vmul.f32 %v1264, 0.5
        %v1270 = vmul.f32 %v1264, 0.044715
        %v1271 = vmul.f32 %v1270, %v1264
        %v1272 = vmul.f32 %v1271, %v1264
        %v1273 = vadd.f32 %v1264, %v1272
        %v1274 = vmul.f32 %v1273, 0.7978846
        %v1275 = vtanh.pop %v1274
        %v1276 = vadd.f32 %v1275, 1.0
        %v1277 = vmul.f32 %v1269, %v1276
        %v1278 = vpack.c.bf16 %v1277, %v1277
        %v1279 = vld [vmem:[%s12] sm:$0xf]
        %v1280 = vld [vmem:[%s12 + $0x4] sm:$0xf]
        %v1281 = vld [vmem:[%s12 + $0x8] sm:$0xf]
        %v1282 = vld [vmem:[%s12 + $0xc] sm:$0xf]
        %v1283 = vld [vmem:[%s12 + $0x10] sm:$0xf]
        %v1284 = vld [vmem:[%s12 + $0x14] sm:$0xf]
        %v1285 = vld [vmem:[%s12 + $0x18] sm:$0xf]
        %v1286 = vld [vmem:[%s12 + $0x1c] sm:$0xf]
        %v1287 = vld [vmem:[%s13] sm:$0x1]
        %v1289 = vlaneseq
        %v1290 = vshrl.u32 %v1289, 7
        %v1291 = vsub.s32 0, %v1290
        %v1292 = vrot.slane %v1287, %v1291
        %v1302 = vunpack.c.l.b16 %v1279
        %v1303 = vunpack.c.l.b16 %v1280
        %v1304 = vunpack.c.l.b16 %v1281
        %v1305 = vunpack.c.l.b16 %v1282
        %v1306 = vunpack.c.l.b16 %v1283
        %v1307 = vunpack.c.l.b16 %v1284
        %v1308 = vunpack.c.l.b16 %v1285
        %v1309 = vunpack.c.l.b16 %v1286
        %v1310 = vpack.c.b16 %v1303, %v1302
        %v1311 = vpack.c.b16 %v1305, %v1304
        %v1312 = vpack.c.b16 %v1307, %v1306
        %v1313 = vpack.c.b16 %v1309, %v1308
        %vm1318 = vcmask 523264
        %v1320 = vsel %vm1318, %v1278, 0
        %1322 = vmatprep.subr.bf16.mxu0 0
        %1323 = vmatpush1.bf16.msra.mxu0 %v1310
        %1324 = vmatprep.subr.bf16.mxu0 0
        %1325 = vmatpush1.bf16.msra.mxu0 %v1311
        %1326 = vmatprep.subr.bf16.mxu0 0
        %1327 = vmatpush1.bf16.msra.mxu0 %v1312
        %1328 = vmatprep.subr.bf16.mxu0 0
        %1329 = vmatpush1.bf16.msra.mxu0 %v1313
        %1330 = vmatprep.subr.bf16.mxu0 0
        %1331 = vmatpush1.bf16.msra.mxu0 0
        %1332 = vmatprep.subr.bf16.mxu0 0
        %1333 = vmatpush1.bf16.msra.mxu0 0
        %1334 = vmatprep.subr.bf16.mxu0 0
        %1335 = vmatpush1.bf16.msra.mxu0 0
        %1336 = vmatprep.subr.bf16.mxu0 0
        %1337 = vmatpush1.bf16.msra.mxu0 0
        %1338 = vmatprep.subr.bf16.mxu0 0
        %1339 = vmatpush1.bf16.msra.mxu0 0
        %1340 = vmatprep.subr.bf16.mxu0 0
        %1341 = vmatpush1.bf16.msra.mxu0 0
        %1342 = vmatprep.subr.bf16.mxu0 0
        %1343 = vmatpush1.bf16.msra.mxu0 0
        %1344 = vmatprep.subr.bf16.mxu0 0
        %1345 = vmatpush1.bf16.msra.mxu0 0
        %1346 = vmatprep.subr.bf16.mxu0 0
        %1347 = vmatpush1.bf16.msra.mxu0 0
        %1348 = vmatprep.subr.bf16.mxu0 0
        %1349 = vmatpush1.bf16.msra.mxu0 0
        %1350 = vmatprep.subr.bf16.mxu0 0
        %1351 = vmatpush1.bf16.msra.mxu0 0
        %1352 = vmatprep.subr.bf16.mxu0 0
        %1353 = vmatpush1.bf16.msra.mxu0 0
        %1354 = vmatprep.mubr.bf16.mxu0 0
        %1355 = vmatmul.mubr.bf16.gmra.mrb[0].mxu0 %v1320
        %v1356 = vpop.f32.mrb[0].mxu0
        %v1357 = vadd.f32 %v1292, %v1356
        %v1358 = vpop.f32.mrb[0].mxu0
        %v1359 = vpop.f32.mrb[0].mxu0
        %v1360 = vpop.f32.mrb[0].mxu0
        %1361 = vdwg.mxu0
        %v1362 = vadd.f32 %v1357, %v1201
        %v1363 = vld [vmem:[%s14] sm:$0x1]
        %v1364 = vld [vmem:[%s15] sm:$0x1]
        %v1365 = vsel %vm535, %v1362, 0.0
        %1366 = vadd.xlane.f32.xlu0 %v1365
        %v1367 = vpop.xlane.xlu0 %1366
        %v1368 = vmul.f32 %v1367, %v539
        %v1369 = vsub.f32 %v1362, %v1368
        %v1370 = vmul.f32 %v1369, %v1369
        %v1371 = vsel %vm535, %v1370, 0.0
        %1372 = vadd.xlane.f32.xlu0 %v1371
        %v1373 = vpop.xlane.xlu0 %1372
        %v1374 = vmul.f32 %v1373, %v539
        %v1375 = vadd.f32 %v1374, 1e-12
        %v1376 = vrsqrt.pop %v1375
        %v1377 = vmul.f32 %v1369, %v1376
        %v1379 = vlaneseq
        %v1380 = vshrl.u32 %v1379, 7
        %v1381 = vsub.s32 0, %v1380
        %v1382 = vrot.slane %v1363, %v1381
        %v1384 = vmul.f32 %v1377, %v1382
        %v1386 = vlaneseq
        %v1387 = vshrl.u32 %v1386, 7
        %v1388 = vsub.s32 0, %v1387
        %v1389 = vrot.slane %v1364, %v1388
        %v1391 = vadd.f32 %v1384, %v1389
        %v1392 = vpack.c.bf16 %v1391, %v1391
        %s1393 = scalar_lea.vmem %s4, 16
        %v1394 = vld [vmem:[%s1393] sm:$0xf]
        %v1395 = vld [vmem:[%s1393 + $0x4] sm:$0xf]
        %v1396 = vld [vmem:[%s1393 + $0x8] sm:$0xf]
        %v1397 = vld [vmem:[%s1393 + $0xc] sm:$0xf]
        %s1398 = scalar_lea.vmem %s5, 1
        %v1399 = vld [vmem:[%s1398] sm:$0x1]
        %v1401 = vlaneseq
        %v1402 = vshrl.u32 %v1401, 7
        %v1403 = vsub.s32 0, %v1402
        %v1404 = vrot.slane %v1399, %v1403
        %v1410 = vunpack.c.l.b16 %v1394
        %v1411 = vunpack.c.l.b16 %v1395
        %v1412 = vunpack.c.l.b16 %v1396
        %v1413 = vunpack.c.l.b16 %v1397
        %v1414 = vpack.c.b16 %v1411, %v1410
        %v1415 = vpack.c.b16 %v1413, %v1412
        %v1419 = vsel %vm535, %v1392, 0
        %1421 = vmatprep.subr.bf16.mxu0 0
        %1422 = vmatpush1.bf16.msra.mxu0 %v1414
        %1423 = vmatprep.subr.bf16.mxu0 0
        %1424 = vmatpush1.bf16.msra.mxu0 %v1415
        %1425 = vmatprep.subr.bf16.mxu0 0
        %1426 = vmatpush1.bf16.msra.mxu0 0
        %1427 = vmatprep.subr.bf16.mxu0 0
        %1428 = vmatpush1.bf16.msra.mxu0 0
        %1429 = vmatprep.subr.bf16.mxu0 0
        %1430 = vmatpush1.bf16.msra.mxu0 0
        %1431 = vmatprep.subr.bf16.mxu0 0
        %1432 = vmatpush1.bf16.msra.mxu0 0
        %1433 = vmatprep.subr.bf16.mxu0 0
        %1434 = vmatpush1.bf16.msra.mxu0 0
        %1435 = vmatprep.subr.bf16.mxu0 0
        %1436 = vmatpush1.bf16.msra.mxu0 0
        %1437 = vmatprep.subr.bf16.mxu0 0
        %1438 = vmatpush1.bf16.msra.mxu0 0
        %1439 = vmatprep.subr.bf16.mxu0 0
        %1440 = vmatpush1.bf16.msra.mxu0 0
        %1441 = vmatprep.subr.bf16.mxu0 0
        %1442 = vmatpush1.bf16.msra.mxu0 0
        %1443 = vmatprep.subr.bf16.mxu0 0
        %1444 = vmatpush1.bf16.msra.mxu0 0
        %1445 = vmatprep.subr.bf16.mxu0 0
        %1446 = vmatpush1.bf16.msra.mxu0 0
        %1447 = vmatprep.subr.bf16.mxu0 0
        %1448 = vmatpush1.bf16.msra.mxu0 0
        %1449 = vmatprep.subr.bf16.mxu0 0
        %1450 = vmatpush1.bf16.msra.mxu0 0
        %1451 = vmatprep.subr.bf16.mxu0 0
        %1452 = vmatpush1.bf16.msra.mxu0 0
        %1453 = vmatprep.mubr.bf16.mxu0 0
        %1454 = vmatmul.mubr.bf16.gmra.mrb[0].mxu0 %v1419
        %v1455 = vpop.f32.mrb[0].mxu0
        %v1456 = vadd.f32 %v1404, %v1455
        %v1457 = vpop.f32.mrb[0].mxu0
        %v1458 = vpop.f32.mrb[0].mxu0
        %v1459 = vpop.f32.mrb[0].mxu0
        %1460 = vdwg.mxu0
        %v1461 = vpack.c.bf16 %v1456, %v1456
        %1463 = vrot.lane.b32.xlu0 %v1461, 96
        %v1464 = vpop.permute.xlu0 %1463
        %v1466 = vsel %vm636, %v1461, 0
        %v1469 = vsel %vm636, %v1464, 0
        %1471 = vmatprep.subr.bf16.mxu0 0
        %1472 = vmatpush1.bf16.xpose.msra.mxu0 %v1469
        %1473 = vmatprep.subr.bf16.mxu0 0
        %1474 = vmatpush1.bf16.xpose.msra.mxu0 0
        %1475 = vmatprep.subr.bf16.mxu0 0
        %1476 = vmatpush1.bf16.xpose.msra.mxu0 0
        %1477 = vmatprep.subr.bf16.mxu0 0
        %1478 = vmatpush1.bf16.xpose.msra.mxu0 0
        %1479 = vmatprep.subr.bf16.mxu0 0
        %1480 = vmatpush1.bf16.xpose.msra.mxu0 0
        %1481 = vmatprep.subr.bf16.mxu0 0
        %1482 = vmatpush1.bf16.xpose.msra.mxu0 0
        %1483 = vmatprep.subr.bf16.mxu0 0
        %1484 = vmatpush1.bf16.xpose.msra.mxu0 0
        %1485 = vmatprep.subr.bf16.mxu0 0
        %1486 = vmatpush1.bf16.xpose.msra.mxu0 0
        %1487 = vmatprep.subr.bf16.mxu0 0
        %1488 = vmatpush1.bf16.xpose.msra.mxu0 0
        %1489 = vmatprep.subr.bf16.mxu0 0
        %1490 = vmatpush1.bf16.xpose.msra.mxu0 0
        %1491 = vmatprep.subr.bf16.mxu0 0
        %1492 = vmatpush1.bf16.xpose.msra.mxu0 0
        %1493 = vmatprep.subr.bf16.mxu0 0
        %1494 = vmatpush1.bf16.xpose.msra.mxu0 0
        %1495 = vmatprep.subr.bf16.mxu0 0
        %1496 = vmatpush1.bf16.xpose.msra.mxu0 0
        %1497 = vmatprep.subr.bf16.mxu0 0
        %1498 = vmatpush1.bf16.xpose.msra.mxu0 0
        %1499 = vmatprep.subr.bf16.mxu0 0
        %1500 = vmatpush1.bf16.xpose.msra.mxu0 0
        %1501 = vmatprep.subr.bf16.mxu0 0
        %1502 = vmatpush1.bf16.xpose.msra.mxu0 0
        %1503 = vmatprep.mubr.bf16.mxu0 0
        %1504 = vmatmul.mubr.bf16.gmra.mrb[0].mxu0 %v1466
        %v1505 = vpop.f32.mrb[0].mxu0
        %v1506 = vadd.f32 0.0, %v1505
        %v1507 = vpop.f32.mrb[0].mxu0
        %v1508 = vpop.f32.mrb[0].mxu0
        %v1509 = vpop.f32.mrb[0].mxu0
        %1510 = vdwg.mxu0
        %v1511 = vmul.f32 %v1506, 0.35355338
        %v1512 = vadd.f32 %v1511, %v688
        %v1513 = vsel %vm636, %v1512, -inf
        %1514 = vmax.xlane.f32.xlu0 %v1513
        %v1515 = vpop.xlane.xlu0 %1514
        %v1516 = vsub.f32 %v1512, %v1515
        %v1517 = vmul.f32 %v1516, 1.442695
        %v1518 = vpow.pop %v1517
        %v1519 = vsel %vm636, %v1518, 0.0
        %1520 = vadd.xlane.f32.xlu0 %v1519
        %v1521 = vpop.xlane.xlu0 %1520
        %v1522 = vrcp.pop %v1521
        %v1523 = vmul.f32 %v1518, %v1522
        %v1524 = vpack.c.bf16 %v1523, %v1523
        %1525 = vrot.lane.b32.xlu0 %v1461, 64
        %v1526 = vpop.permute.xlu0 %1525
        %v1528 = vsel %vm636, %v1524, 0
        %v1531 = vsel %vm708, %v1526, 0
        %1533 = vmatprep.subr.bf16.mxu0 0
        %1534 = vmatpush1.bf16.msra.mxu0 %v1531
        %1535 = vmatprep.subr.bf16.mxu0 0
        %1536 = vmatpush1.bf16.msra.mxu0 0
        %1537 = vmatprep.subr.bf16.mxu0 0
        %1538 = vmatpush1.bf16.msra.mxu0 0
        %1539 = vmatprep.subr.bf16.mxu0 0
        %1540 = vmatpush1.bf16.msra.mxu0 0
        %1541 = vmatprep.subr.bf16.mxu0 0
        %1542 = vmatpush1.bf16.msra.mxu0 0
        %1543 = vmatprep.subr.bf16.mxu0 0
        %1544 = vmatpush1.bf16.msra.mxu0 0
        %1545 = vmatprep.subr.bf16.mxu0 0
        %1546 = vmatpush1.bf16.msra.mxu0 0
        %1547 = vmatprep.subr.bf16.mxu0 0
        %1548 = vmatpush1.bf16.msra.mxu0 0
        %1549 = vmatprep.subr.bf16.mxu0 0
        %1550 = vmatpush1.bf16.msra.mxu0 0
        %1551 = vmatprep.subr.bf16.mxu0 0
        %1552 = vmatpush1.bf16.msra.mxu0 0
        %1553 = vmatprep.subr.bf16.mxu0 0
        %1554 = vmatpush1.bf16.msra.mxu0 0
        %1555 = vmatprep.subr.bf16.mxu0 0
        %1556 = vmatpush1.bf16.msra.mxu0 0
        %1557 = vmatprep.subr.bf16.mxu0 0
        %1558 = vmatpush1.bf16.msra.mxu0 0
        %1559 = vmatprep.subr.bf16.mxu0 0
        %1560 = vmatpush1.bf16.msra.mxu0 0
        %1561 = vmatprep.subr.bf16.mxu0 0
        %1562 = vmatpush1.bf16.msra.mxu0 0
        %1563 = vmatprep.subr.bf16.mxu0 0
        %1564 = vmatpush1.bf16.msra.mxu0 0
        %1565 = vmatprep.mubr.bf16.mxu0 0
        %1566 = vmatmul.mubr.bf16.gmra.mrb[0].mxu0 %v1528
        %v1567 = vpop.f32.mrb[0].mxu0
        %v1568 = vadd.f32 0.0, %v1567
        %v1569 = vpop.f32.mrb[0].mxu0
        %v1570 = vpop.f32.mrb[0].mxu0
        %v1571 = vpop.f32.mrb[0].mxu0
        %1572 = vdwg.mxu0
        %1573 = vrot.lane.b32.xlu0 %v1461, 120
        %v1574 = vpop.permute.xlu0 %1573
        %1575 = vrot.lane.b32.xlu0 %v1461, 88
        %v1576 = vpop.permute.xlu0 %1575
        %v1578 = vsel %vm636, %v1574, 0
        %v1581 = vsel %vm636, %v1576, 0
        %1583 = vmatprep.subr.bf16.mxu0 0
        %1584 = vmatpush1.bf16.xpose.msra.mxu0 %v1581
        %1585 = vmatprep.subr.bf16.mxu0 0
        %1586 = vmatpush1.bf16.xpose.msra.mxu0 0
        %1587 = vmatprep.subr.bf16.mxu0 0
        %1588 = vmatpush1.bf16.xpose.msra.mxu0 0
        %1589 = vmatprep.subr.bf16.mxu0 0
        %1590 = vmatpush1.bf16.xpose.msra.mxu0 0
        %1591 = vmatprep.subr.bf16.mxu0 0
        %1592 = vmatpush1.bf16.xpose.msra.mxu0 0
        %1593 = vmatprep.subr.bf16.mxu0 0
        %1594 = vmatpush1.bf16.xpose.msra.mxu0 0
        %1595 = vmatprep.subr.bf16.mxu0 0
        %1596 = vmatpush1.bf16.xpose.msra.mxu0 0
        %1597 = vmatprep.subr.bf16.mxu0 0
        %1598 = vmatpush1.bf16.xpose.msra.mxu0 0
        %1599 = vmatprep.subr.bf16.mxu0 0
        %1600 = vmatpush1.bf16.xpose.msra.mxu0 0
        %1601 = vmatprep.subr.bf16.mxu0 0
        %1602 = vmatpush1.bf16.xpose.msra.mxu0 0
        %1603 = vmatprep.subr.bf16.mxu0 0
        %1604 = vmatpush1.bf16.xpose.msra.mxu0 0
        %1605 = vmatprep.subr.bf16.mxu0 0
        %1606 = vmatpush1.bf16.xpose.msra.mxu0 0
        %1607 = vmatprep.subr.bf16.mxu0 0
        %1608 = vmatpush1.bf16.xpose.msra.mxu0 0
        %1609 = vmatprep.subr.bf16.mxu0 0
        %1610 = vmatpush1.bf16.xpose.msra.mxu0 0
        %1611 = vmatprep.subr.bf16.mxu0 0
        %1612 = vmatpush1.bf16.xpose.msra.mxu0 0
        %1613 = vmatprep.subr.bf16.mxu0 0
        %1614 = vmatpush1.bf16.xpose.msra.mxu0 0
        %1615 = vmatprep.mubr.bf16.mxu0 0
        %1616 = vmatmul.mubr.bf16.gmra.mrb[0].mxu0 %v1578
        %v1617 = vpop.f32.mrb[0].mxu0
        %v1618 = vadd.f32 0.0, %v1617
        %v1619 = vpop.f32.mrb[0].mxu0
        %v1620 = vpop.f32.mrb[0].mxu0
        %v1621 = vpop.f32.mrb[0].mxu0
        %1622 = vdwg.mxu0
        %v1623 = vmul.f32 %v1618, 0.35355338
        %v1624 = vadd.f32 %v1623, %v688
        %v1625 = vsel %vm636, %v1624, -inf
        %1626 = vmax.xlane.f32.xlu0 %v1625
        %v1627 = vpop.xlane.xlu0 %1626
        %v1628 = vsub.f32 %v1624, %v1627
        %v1629 = vmul.f32 %v1628, 1.442695
        %v1630 = vpow.pop %v1629
        %v1631 = vsel %vm636, %v1630, 0.0
        %1632 = vadd.xlane.f32.xlu0 %v1631
        %v1633 = vpop.xlane.xlu0 %1632
        %v1634 = vrcp.pop %v1633
        %v1635 = vmul.f32 %v1630, %v1634
        %v1636 = vpack.c.bf16 %v1635, %v1635
        %1637 = vrot.lane.b32.xlu0 %v1461, 56
        %v1638 = vpop.permute.xlu0 %1637
        %v1640 = vsel %vm636, %v1636, 0
        %v1643 = vsel %vm708, %v1638, 0
        %1645 = vmatprep.subr.bf16.mxu0 0
        %1646 = vmatpush1.bf16.msra.mxu0 %v1643
        %1647 = vmatprep.subr.bf16.mxu0 0
        %1648 = vmatpush1.bf16.msra.mxu0 0
        %1649 = vmatprep.subr.bf16.mxu0 0
        %1650 = vmatpush1.bf16.msra.mxu0 0
        %1651 = vmatprep.subr.bf16.mxu0 0
        %1652 = vmatpush1.bf16.msra.mxu0 0
        %1653 = vmatprep.subr.bf16.mxu0 0
        %1654 = vmatpush1.bf16.msra.mxu0 0
        %1655 = vmatprep.subr.bf16.mxu0 0
        %1656 = vmatpush1.bf16.msra.mxu0 0
        %1657 = vmatprep.subr.bf16.mxu0 0
        %1658 = vmatpush1.bf16.msra.mxu0 0
        %1659 = vmatprep.subr.bf16.mxu0 0
        %1660 = vmatpush1.bf16.msra.mxu0 0
        %1661 = vmatprep.subr.bf16.mxu0 0
        %1662 = vmatpush1.bf16.msra.mxu0 0
        %1663 = vmatprep.subr.bf16.mxu0 0
        %1664 = vmatpush1.bf16.msra.mxu0 0
        %1665 = vmatprep.subr.bf16.mxu0 0
        %1666 = vmatpush1.bf16.msra.mxu0 0
        %1667 = vmatprep.subr.bf16.mxu0 0
        %1668 = vmatpush1.bf16.msra.mxu0 0
        %1669 = vmatprep.subr.bf16.mxu0 0
        %1670 = vmatpush1.bf16.msra.mxu0 0
        %1671 = vmatprep.subr.bf16.mxu0 0
        %1672 = vmatpush1.bf16.msra.mxu0 0
        %1673 = vmatprep.subr.bf16.mxu0 0
        %1674 = vmatpush1.bf16.msra.mxu0 0
        %1675 = vmatprep.subr.bf16.mxu0 0
        %1676 = vmatpush1.bf16.msra.mxu0 0
        %1677 = vmatprep.mubr.bf16.mxu0 0
        %1678 = vmatmul.mubr.bf16.gmra.mrb[0].mxu0 %v1640
        %v1679 = vpop.f32.mrb[0].mxu0
        %v1680 = vadd.f32 0.0, %v1679
        %v1681 = vpop.f32.mrb[0].mxu0
        %v1682 = vpop.f32.mrb[0].mxu0
        %v1683 = vpop.f32.mrb[0].mxu0
        %1684 = vdwg.mxu0
        %1685 = vrot.lane.b32.xlu0 %v1461, 112
        %v1686 = vpop.permute.xlu0 %1685
        %1687 = vrot.lane.b32.xlu0 %v1461, 80
        %v1688 = vpop.permute.xlu0 %1687
        %v1690 = vsel %vm636, %v1686, 0
        %v1693 = vsel %vm636, %v1688, 0
        %1695 = vmatprep.subr.bf16.mxu0 0
        %1696 = vmatpush1.bf16.xpose.msra.mxu0 %v1693
        %1697 = vmatprep.subr.bf16.mxu0 0
        %1698 = vmatpush1.bf16.xpose.msra.mxu0 0
        %1699 = vmatprep.subr.bf16.mxu0 0
        %1700 = vmatpush1.bf16.xpose.msra.mxu0 0
        %1701 = vmatprep.subr.bf16.mxu0 0
        %1702 = vmatpush1.bf16.xpose.msra.mxu0 0
        %1703 = vmatprep.subr.bf16.mxu0 0
        %1704 = vmatpush1.bf16.xpose.msra.mxu0 0
        %1705 = vmatprep.subr.bf16.mxu0 0
        %1706 = vmatpush1.bf16.xpose.msra.mxu0 0
        %1707 = vmatprep.subr.bf16.mxu0 0
        %1708 = vmatpush1.bf16.xpose.msra.mxu0 0
        %1709 = vmatprep.subr.bf16.mxu0 0
        %1710 = vmatpush1.bf16.xpose.msra.mxu0 0
        %1711 = vmatprep.subr.bf16.mxu0 0
        %1712 = vmatpush1.bf16.xpose.msra.mxu0 0
        %1713 = vmatprep.subr.bf16.mxu0 0
        %1714 = vmatpush1.bf16.xpose.msra.mxu0 0
        %1715 = vmatprep.subr.bf16.mxu0 0
        %1716 = vmatpush1.bf16.xpose.msra.mxu0 0
        %1717 = vmatprep.subr.bf16.mxu0 0
        %1718 = vmatpush1.bf16.xpose.msra.mxu0 0
        %1719 = vmatprep.subr.bf16.mxu0 0
        %1720 = vmatpush1.bf16.xpose.msra.mxu0 0
        %1721 = vmatprep.subr.bf16.mxu0 0
        %1722 = vmatpush1.bf16.xpose.msra.mxu0 0
        %1723 = vmatprep.subr.bf16.mxu0 0
        %1724 = vmatpush1.bf16.xpose.msra.mxu0 0
        %1725 = vmatprep.subr.bf16.mxu0 0
        %1726 = vmatpush1.bf16.xpose.msra.mxu0 0
        %1727 = vmatprep.mubr.bf16.mxu0 0
        %1728 = vmatmul.mubr.bf16.gmra.mrb[0].mxu0 %v1690
        %v1729 = vpop.f32.mrb[0].mxu0
        %v1730 = vadd.f32 0.0, %v1729
        %v1731 = vpop.f32.mrb[0].mxu0
        %v1732 = vpop.f32.mrb[0].mxu0
        %v1733 = vpop.f32.mrb[0].mxu0
        %1734 = vdwg.mxu0
        %v1735 = vmul.f32 %v1730, 0.35355338
        %v1736 = vadd.f32 %v1735, %v688
        %v1737 = vsel %vm636, %v1736, -inf
        %1738 = vmax.xlane.f32.xlu0 %v1737
        %v1739 = vpop.xlane.xlu0 %1738
        %v1740 = vsub.f32 %v1736, %v1739
        %v1741 = vmul.f32 %v1740, 1.442695
        %v1742 = vpow.pop %v1741
        %v1743 = vsel %vm636, %v1742, 0.0
        %1744 = vadd.xlane.f32.xlu0 %v1743
        %v1745 = vpop.xlane.xlu0 %1744
        %v1746 = vrcp.pop %v1745
        %v1747 = vmul.f32 %v1742, %v1746
        %v1748 = vpack.c.bf16 %v1747, %v1747
        %1749 = vrot.lane.b32.xlu0 %v1461, 48
        %v1750 = vpop.permute.xlu0 %1749
        %v1752 = vsel %vm636, %v1748, 0
        %v1755 = vsel %vm708, %v1750, 0
        %1757 = vmatprep.subr.bf16.mxu0 0
        %1758 = vmatpush1.bf16.msra.mxu0 %v1755
        %1759 = vmatprep.subr.bf16.mxu0 0
        %1760 = vmatpush1.bf16.msra.mxu0 0
        %1761 = vmatprep.subr.bf16.mxu0 0
        %1762 = vmatpush1.bf16.msra.mxu0 0
        %1763 = vmatprep.subr.bf16.mxu0 0
        %1764 = vmatpush1.bf16.msra.mxu0 0
        %1765 = vmatprep.subr.bf16.mxu0 0
        %1766 = vmatpush1.bf16.msra.mxu0 0
        %1767 = vmatprep.subr.bf16.mxu0 0
        %1768 = vmatpush1.bf16.msra.mxu0 0
        %1769 = vmatprep.subr.bf16.mxu0 0
        %1770 = vmatpush1.bf16.msra.mxu0 0
        %1771 = vmatprep.subr.bf16.mxu0 0
        %1772 = vmatpush1.bf16.msra.mxu0 0
        %1773 = vmatprep.subr.bf16.mxu0 0
        %1774 = vmatpush1.bf16.msra.mxu0 0
        %1775 = vmatprep.subr.bf16.mxu0 0
        %1776 = vmatpush1.bf16.msra.mxu0 0
        %1777 = vmatprep.subr.bf16.mxu0 0
        %1778 = vmatpush1.bf16.msra.mxu0 0
        %1779 = vmatprep.subr.bf16.mxu0 0
        %1780 = vmatpush1.bf16.msra.mxu0 0
        %1781 = vmatprep.subr.bf16.mxu0 0
        %1782 = vmatpush1.bf16.msra.mxu0 0
        %1783 = vmatprep.subr.bf16.mxu0 0
        %1784 = vmatpush1.bf16.msra.mxu0 0
        %1785 = vmatprep.subr.bf16.mxu0 0
        %1786 = vmatpush1.bf16.msra.mxu0 0
        %1787 = vmatprep.subr.bf16.mxu0 0
        %1788 = vmatpush1.bf16.msra.mxu0 0
        %1789 = vmatprep.mubr.bf16.mxu0 0
        %1790 = vmatmul.mubr.bf16.gmra.mrb[0].mxu0 %v1752
        %v1791 = vpop.f32.mrb[0].mxu0
        %v1792 = vadd.f32 0.0, %v1791
        %v1793 = vpop.f32.mrb[0].mxu0
        %v1794 = vpop.f32.mrb[0].mxu0
        %v1795 = vpop.f32.mrb[0].mxu0
        %1796 = vdwg.mxu0
        %1797 = vrot.lane.b32.xlu0 %v1461, 104
        %v1798 = vpop.permute.xlu0 %1797
        %1799 = vrot.lane.b32.xlu0 %v1461, 72
        %v1800 = vpop.permute.xlu0 %1799
        %v1802 = vsel %vm636, %v1798, 0
        %v1805 = vsel %vm636, %v1800, 0
        %1807 = vmatprep.subr.bf16.mxu0 0
        %1808 = vmatpush1.bf16.xpose.msra.mxu0 %v1805
        %1809 = vmatprep.subr.bf16.mxu0 0
        %1810 = vmatpush1.bf16.xpose.msra.mxu0 0
        %1811 = vmatprep.subr.bf16.mxu0 0
        %1812 = vmatpush1.bf16.xpose.msra.mxu0 0
        %1813 = vmatprep.subr.bf16.mxu0 0
        %1814 = vmatpush1.bf16.xpose.msra.mxu0 0
        %1815 = vmatprep.subr.bf16.mxu0 0
        %1816 = vmatpush1.bf16.xpose.msra.mxu0 0
        %1817 = vmatprep.subr.bf16.mxu0 0
        %1818 = vmatpush1.bf16.xpose.msra.mxu0 0
        %1819 = vmatprep.subr.bf16.mxu0 0
        %1820 = vmatpush1.bf16.xpose.msra.mxu0 0
        %1821 = vmatprep.subr.bf16.mxu0 0
        %1822 = vmatpush1.bf16.xpose.msra.mxu0 0
        %1823 = vmatprep.subr.bf16.mxu0 0
        %1824 = vmatpush1.bf16.xpose.msra.mxu0 0
        %1825 = vmatprep.subr.bf16.mxu0 0
        %1826 = vmatpush1.bf16.xpose.msra.mxu0 0
        %1827 = vmatprep.subr.bf16.mxu0 0
        %1828 = vmatpush1.bf16.xpose.msra.mxu0 0
        %1829 = vmatprep.subr.bf16.mxu0 0
        %1830 = vmatpush1.bf16.xpose.msra.mxu0 0
        %1831 = vmatprep.subr.bf16.mxu0 0
        %1832 = vmatpush1.bf16.xpose.msra.mxu0 0
        %1833 = vmatprep.subr.bf16.mxu0 0
        %1834 = vmatpush1.bf16.xpose.msra.mxu0 0
        %1835 = vmatprep.subr.bf16.mxu0 0
        %1836 = vmatpush1.bf16.xpose.msra.mxu0 0
        %1837 = vmatprep.subr.bf16.mxu0 0
        %1838 = vmatpush1.bf16.xpose.msra.mxu0 0
        %1839 = vmatprep.mubr.bf16.mxu0 0
        %1840 = vmatmul.mubr.bf16.gmra.mrb[0].mxu0 %v1802
        %v1841 = vpop.f32.mrb[0].mxu0
        %v1842 = vadd.f32 0.0, %v1841
        %v1843 = vpop.f32.mrb[0].mxu0
        %v1844 = vpop.f32.mrb[0].mxu0
        %v1845 = vpop.f32.mrb[0].mxu0
        %1846 = vdwg.mxu0
        %v1847 = vmul.f32 %v1842, 0.35355338
        %v1848 = vadd.f32 %v1847, %v688
        %v1849 = vsel %vm636, %v1848, -inf
        %1850 = vmax.xlane.f32.xlu0 %v1849
        %v1851 = vpop.xlane.xlu0 %1850
        %v1852 = vsub.f32 %v1848, %v1851
        %v1853 = vmul.f32 %v1852, 1.442695
        %v1854 = vpow.pop %v1853
        %v1855 = vsel %vm636, %v1854, 0.0
        %1856 = vadd.xlane.f32.xlu0 %v1855
        %v1857 = vpop.xlane.xlu0 %1856
        %v1858 = vrcp.pop %v1857
        %v1859 = vmul.f32 %v1854, %v1858
        %v1860 = vpack.c.bf16 %v1859, %v1859
        %1861 = vrot.lane.b32.xlu0 %v1461, 40
        %v1862 = vpop.permute.xlu0 %1861
        %v1864 = vsel %vm636, %v1860, 0
        %v1867 = vsel %vm708, %v1862, 0
        %1869 = vmatprep.subr.bf16.mxu0 0
        %1870 = vmatpush1.bf16.msra.mxu0 %v1867
        %1871 = vmatprep.subr.bf16.mxu0 0
        %1872 = vmatpush1.bf16.msra.mxu0 0
        %1873 = vmatprep.subr.bf16.mxu0 0
        %1874 = vmatpush1.bf16.msra.mxu0 0
        %1875 = vmatprep.subr.bf16.mxu0 0
        %1876 = vmatpush1.bf16.msra.mxu0 0
        %1877 = vmatprep.subr.bf16.mxu0 0
        %1878 = vmatpush1.bf16.msra.mxu0 0
        %1879 = vmatprep.subr.bf16.mxu0 0
        %1880 = vmatpush1.bf16.msra.mxu0 0
        %1881 = vmatprep.subr.bf16.mxu0 0
        %1882 = vmatpush1.bf16.msra.mxu0 0
        %1883 = vmatprep.subr.bf16.mxu0 0
        %1884 = vmatpush1.bf16.msra.mxu0 0
        %1885 = vmatprep.subr.bf16.mxu0 0
        %1886 = vmatpush1.bf16.msra.mxu0 0
        %1887 = vmatprep.subr.bf16.mxu0 0
        %1888 = vmatpush1.bf16.msra.mxu0 0
        %1889 = vmatprep.subr.bf16.mxu0 0
        %1890 = vmatpush1.bf16.msra.mxu0 0
        %1891 = vmatprep.subr.bf16.mxu0 0
        %1892 = vmatpush1.bf16.msra.mxu0 0
        %1893 = vmatprep.subr.bf16.mxu0 0
        %1894 = vmatpush1.bf16.msra.mxu0 0
        %1895 = vmatprep.subr.bf16.mxu0 0
        %1896 = vmatpush1.bf16.msra.mxu0 0
        %1897 = vmatprep.subr.bf16.mxu0 0
        %1898 = vmatpush1.bf16.msra.mxu0 0
        %1899 = vmatprep.subr.bf16.mxu0 0
        %1900 = vmatpush1.bf16.msra.mxu0 0
        %1901 = vmatprep.mubr.bf16.mxu0 0
        %1902 = vmatmul.mubr.bf16.gmra.mrb[0].mxu0 %v1864
        %v1903 = vpop.f32.mrb[0].mxu0
        %v1904 = vadd.f32 0.0, %v1903
        %v1905 = vpop.f32.mrb[0].mxu0
        %v1906 = vpop.f32.mrb[0].mxu0
        %v1907 = vpop.f32.mrb[0].mxu0
        %1908 = vdwg.mxu0
        %1910 = vrot.lane.b32.xlu0 %v1680, 8
        %v1911 = vpop.permute.xlu0 %1910
        %1914 = vrot.lane.b32.xlu0 %v1792, 16
        %v1915 = vpop.permute.xlu0 %1914
        %1918 = vrot.lane.b32.xlu0 %v1904, 24
        %v1919 = vpop.permute.xlu0 %1918
        %v1921 = vsel %vm636, %v1568, %v1911
        %v1922 = vsel %vm1101, %v1921, %v1915
        %v1923 = vsel %vm1103, %v1922, %v1919
        %v1924 = vpack.c.bf16 %v1923, %v1923
        %s1925 = scalar_lea.vmem %s6, 16
        %v1926 = vld [vmem:[%s1925] sm:$0xf]
        %v1927 = vld [vmem:[%s1925 + $0x4] sm:$0xf]
        %v1928 = vld [vmem:[%s1925 + $0x8] sm:$0xf]
        %v1929 = vld [vmem:[%s1925 + $0xc] sm:$0xf]
        %s1930 = scalar_lea.vmem %s7, 1
        %v1931 = vld [vmem:[%s1930] sm:$0x1]
        %v1933 = vlaneseq
        %v1934 = vshrl.u32 %v1933, 7
        %v1935 = vsub.s32 0, %v1934
        %v1936 = vrot.slane %v1931, %v1935
        %v1942 = vunpack.c.l.b16 %v1926
        %v1943 = vunpack.c.l.b16 %v1927
        %v1944 = vunpack.c.l.b16 %v1928
        %v1945 = vunpack.c.l.b16 %v1929
        %v1946 = vpack.c.b16 %v1943, %v1942
        %v1947 = vpack.c.b16 %v1945, %v1944
        %v1951 = vsel %vm535, %v1924, 0
        %1953 = vmatprep.subr.bf16.mxu0 0
        %1954 = vmatpush1.bf16.msra.mxu0 %v1946
        %1955 = vmatprep.subr.bf16.mxu0 0
        %1956 = vmatpush1.bf16.msra.mxu0 %v1947
        %1957 = vmatprep.subr.bf16.mxu0 0
        %1958 = vmatpush1.bf16.msra.mxu0 0
        %1959 = vmatprep.subr.bf16.mxu0 0
        %1960 = vmatpush1.bf16.msra.mxu0 0
        %1961 = vmatprep.subr.bf16.mxu0 0
        %1962 = vmatpush1.bf16.msra.mxu0 0
        %1963 = vmatprep.subr.bf16.mxu0 0
        %1964 = vmatpush1.bf16.msra.mxu0 0
        %1965 = vmatprep.subr.bf16.mxu0 0
        %1966 = vmatpush1.bf16.msra.mxu0 0
        %1967 = vmatprep.subr.bf16.mxu0 0
        %1968 = vmatpush1.bf16.msra.mxu0 0
        %1969 = vmatprep.subr.bf16.mxu0 0
        %1970 = vmatpush1.bf16.msra.mxu0 0
        %1971 = vmatprep.subr.bf16.mxu0 0
        %1972 = vmatpush1.bf16.msra.mxu0 0
        %1973 = vmatprep.subr.bf16.mxu0 0
        %1974 = vmatpush1.bf16.msra.mxu0 0
        %1975 = vmatprep.subr.bf16.mxu0 0
        %1976 = vmatpush1.bf16.msra.mxu0 0
        %1977 = vmatprep.subr.bf16.mxu0 0
        %1978 = vmatpush1.bf16.msra.mxu0 0
        %1979 = vmatprep.subr.bf16.mxu0 0
        %1980 = vmatpush1.bf16.msra.mxu0 0
        %1981 = vmatprep.subr.bf16.mxu0 0
        %1982 = vmatpush1.bf16.msra.mxu0 0
        %1983 = vmatprep.subr.bf16.mxu0 0
        %1984 = vmatpush1.bf16.msra.mxu0 0
        %1985 = vmatprep.mubr.bf16.mxu0 0
        %1986 = vmatmul.mubr.bf16.gmra.mrb[0].mxu0 %v1951
        %v1987 = vpop.f32.mrb[0].mxu0
        %v1988 = vadd.f32 %v1936, %v1987
        %v1989 = vpop.f32.mrb[0].mxu0
        %v1990 = vpop.f32.mrb[0].mxu0
        %v1991 = vpop.f32.mrb[0].mxu0
        %1992 = vdwg.mxu0
        %v1993 = vadd.f32 %v1988, %v1391
        %s1994 = scalar_lea.vmem %s8, 1
        %v1995 = vld [vmem:[%s1994] sm:$0x1]
        %s1996 = scalar_lea.vmem %s9, 1
        %v1997 = vld [vmem:[%s1996] sm:$0x1]
        %v1998 = vsel %vm535, %v1993, 0.0
        %1999 = vadd.xlane.f32.xlu0 %v1998
        %v2000 = vpop.xlane.xlu0 %1999
        %v2001 = vmul.f32 %v2000, %v539
        %v2002 = vsub.f32 %v1993, %v2001
        %v2003 = vmul.f32 %v2002, %v2002
        %v2004 = vsel %vm535, %v2003, 0.0
        %2005 = vadd.xlane.f32.xlu0 %v2004
        %v2006 = vpop.xlane.xlu0 %2005
        %v2007 = vmul.f32 %v2006, %v539
        %v2008 = vadd.f32 %v2007, 1e-12
        %v2009 = vrsqrt.pop %v2008
        %v2010 = vmul.f32 %v2002, %v2009
        %v2012 = vlaneseq
        %v2013 = vshrl.u32 %v2012, 7
        %v2014 = vsub.s32 0, %v2013
        %v2015 = vrot.slane %v1995, %v2014
        %v2017 = vmul.f32 %v2010, %v2015
        %v2019 = vlaneseq
        %v2020 = vshrl.u32 %v2019, 7
        %v2021 = vsub.s32 0, %v2020
        %v2022 = vrot.slane %v1997, %v2021
        %v2024 = vadd.f32 %v2017, %v2022
        %v2025 = vpack.c.bf16 %v2024, %v2024
        %s2026 = scalar_lea.vmem %s10, 16
        %v2027 = vld [vmem:[%s2026] sm:$0xf]
        %v2028 = vld [vmem:[%s2026 + $0x4] sm:$0xf]
        %v2029 = vld [vmem:[%s2026 + $0x8] sm:$0xf]
        %v2030 = vld [vmem:[%s2026 + $0xc] sm:$0xf]
        %s2031 = scalar_lea.vmem %s11, 1
        %v2032 = vld [vmem:[%s2031] sm:$0x1]
        %v2034 = vlaneseq
        %v2035 = vshrl.u32 %v2034, 7
        %v2036 = vsub.s32 0, %v2035
        %v2037 = vrot.slane %v2032, %v2036
        %v2043 = vunpack.c.l.b16 %v2027
        %v2044 = vunpack.c.l.b16 %v2028
        %v2045 = vunpack.c.l.b16 %v2029
        %v2046 = vunpack.c.l.b16 %v2030
        %v2047 = vpack.c.b16 %v2044, %v2043
        %v2048 = vpack.c.b16 %v2046, %v2045
        %v2052 = vsel %vm535, %v2025, 0
        %2054 = vmatprep.subr.bf16.mxu0 0
        %2055 = vmatpush1.bf16.msra.mxu0 %v2047
        %2056 = vmatprep.subr.bf16.mxu0 0
        %2057 = vmatpush1.bf16.msra.mxu0 %v2048
        %2058 = vmatprep.subr.bf16.mxu0 0
        %2059 = vmatpush1.bf16.msra.mxu0 0
        %2060 = vmatprep.subr.bf16.mxu0 0
        %2061 = vmatpush1.bf16.msra.mxu0 0
        %2062 = vmatprep.subr.bf16.mxu0 0
        %2063 = vmatpush1.bf16.msra.mxu0 0
        %2064 = vmatprep.subr.bf16.mxu0 0
        %2065 = vmatpush1.bf16.msra.mxu0 0
        %2066 = vmatprep.subr.bf16.mxu0 0
        %2067 = vmatpush1.bf16.msra.mxu0 0
        %2068 = vmatprep.subr.bf16.mxu0 0
        %2069 = vmatpush1.bf16.msra.mxu0 0
        %2070 = vmatprep.subr.bf16.mxu0 0
        %2071 = vmatpush1.bf16.msra.mxu0 0
        %2072 = vmatprep.subr.bf16.mxu0 0
        %2073 = vmatpush1.bf16.msra.mxu0 0
        %2074 = vmatprep.subr.bf16.mxu0 0
        %2075 = vmatpush1.bf16.msra.mxu0 0
        %2076 = vmatprep.subr.bf16.mxu0 0
        %2077 = vmatpush1.bf16.msra.mxu0 0
        %2078 = vmatprep.subr.bf16.mxu0 0
        %2079 = vmatpush1.bf16.msra.mxu0 0
        %2080 = vmatprep.subr.bf16.mxu0 0
        %2081 = vmatpush1.bf16.msra.mxu0 0
        %2082 = vmatprep.subr.bf16.mxu0 0
        %2083 = vmatpush1.bf16.msra.mxu0 0
        %2084 = vmatprep.subr.bf16.mxu0 0
        %2085 = vmatpush1.bf16.msra.mxu0 0
        %2086 = vmatprep.mubr.bf16.mxu0 0
        %2087 = vmatmul.mubr.bf16.gmra.mrb[0].mxu0 %v2052
        %v2088 = vpop.f32.mrb[0].mxu0
        %v2089 = vadd.f32 %v2037, %v2088
        %v2090 = vpop.f32.mrb[0].mxu0
        %v2091 = vpop.f32.mrb[0].mxu0
        %v2092 = vpop.f32.mrb[0].mxu0
        %2093 = vdwg.mxu0
        %v2094 = vmul.f32 %v2089, 0.5
        %v2095 = vmul.f32 %v2089, 0.044715
        %v2096 = vmul.f32 %v2095, %v2089
        %v2097 = vmul.f32 %v2096, %v2089
        %v2098 = vadd.f32 %v2089, %v2097
        %v2099 = vmul.f32 %v2098, 0.7978846
        %v2100 = vtanh.pop %v2099
        %v2101 = vadd.f32 %v2100, 1.0
        %v2102 = vmul.f32 %v2094, %v2101
        %v2103 = vpack.c.bf16 %v2102, %v2102
        %s2104 = scalar_lea.vmem %s12, 32
        %v2105 = vld [vmem:[%s2104] sm:$0xf]
        %v2106 = vld [vmem:[%s2104 + $0x4] sm:$0xf]
        %v2107 = vld [vmem:[%s2104 + $0x8] sm:$0xf]
        %v2108 = vld [vmem:[%s2104 + $0xc] sm:$0xf]
        %v2109 = vld [vmem:[%s2104 + $0x10] sm:$0xf]
        %v2110 = vld [vmem:[%s2104 + $0x14] sm:$0xf]
        %v2111 = vld [vmem:[%s2104 + $0x18] sm:$0xf]
        %v2112 = vld [vmem:[%s2104 + $0x1c] sm:$0xf]
        %s2113 = scalar_lea.vmem %s13, 1
        %v2114 = vld [vmem:[%s2113] sm:$0x1]
        %v2116 = vlaneseq
        %v2117 = vshrl.u32 %v2116, 7
        %v2118 = vsub.s32 0, %v2117
        %v2119 = vrot.slane %v2114, %v2118
        %v2129 = vunpack.c.l.b16 %v2105
        %v2130 = vunpack.c.l.b16 %v2106
        %v2131 = vunpack.c.l.b16 %v2107
        %v2132 = vunpack.c.l.b16 %v2108
        %v2133 = vunpack.c.l.b16 %v2109
        %v2134 = vunpack.c.l.b16 %v2110
        %v2135 = vunpack.c.l.b16 %v2111
        %v2136 = vunpack.c.l.b16 %v2112
        %v2137 = vpack.c.b16 %v2130, %v2129
        %v2138 = vpack.c.b16 %v2132, %v2131
        %v2139 = vpack.c.b16 %v2134, %v2133
        %v2140 = vpack.c.b16 %v2136, %v2135
        %v2146 = vsel %vm1318, %v2103, 0
        %2148 = vmatprep.subr.bf16.mxu0 0
        %2149 = vmatpush1.bf16.msra.mxu0 %v2137
        %2150 = vmatprep.subr.bf16.mxu0 0
        %2151 = vmatpush1.bf16.msra.mxu0 %v2138
        %2152 = vmatprep.subr.bf16.mxu0 0
        %2153 = vmatpush1.bf16.msra.mxu0 %v2139
        %2154 = vmatprep.subr.bf16.mxu0 0
        %2155 = vmatpush1.bf16.msra.mxu0 %v2140
        %2156 = vmatprep.subr.bf16.mxu0 0
        %2157 = vmatpush1.bf16.msra.mxu0 0
        %2158 = vmatprep.subr.bf16.mxu0 0
        %2159 = vmatpush1.bf16.msra.mxu0 0
        %2160 = vmatprep.subr.bf16.mxu0 0
        %2161 = vmatpush1.bf16.msra.mxu0 0
        %2162 = vmatprep.subr.bf16.mxu0 0
        %2163 = vmatpush1.bf16.msra.mxu0 0
        %2164 = vmatprep.subr.bf16.mxu0 0
        %2165 = vmatpush1.bf16.msra.mxu0 0
        %2166 = vmatprep.subr.bf16.mxu0 0
        %2167 = vmatpush1.bf16.msra.mxu0 0
        %2168 = vmatprep.subr.bf16.mxu0 0
        %2169 = vmatpush1.bf16.msra.mxu0 0
        %2170 = vmatprep.subr.bf16.mxu0 0
        %2171 = vmatpush1.bf16.msra.mxu0 0
        %2172 = vmatprep.subr.bf16.mxu0 0
        %2173 = vmatpush1.bf16.msra.mxu0 0
        %2174 = vmatprep.subr.bf16.mxu0 0
        %2175 = vmatpush1.bf16.msra.mxu0 0
        %2176 = vmatprep.subr.bf16.mxu0 0
        %2177 = vmatpush1.bf16.msra.mxu0 0
        %2178 = vmatprep.subr.bf16.mxu0 0
        %2179 = vmatpush1.bf16.msra.mxu0 0
        %2180 = vmatprep.mubr.bf16.mxu0 0
        %2181 = vmatmul.mubr.bf16.gmra.mrb[0].mxu0 %v2146
        %v2182 = vpop.f32.mrb[0].mxu0
        %v2183 = vadd.f32 %v2119, %v2182
        %v2184 = vpop.f32.mrb[0].mxu0
        %v2185 = vpop.f32.mrb[0].mxu0
        %v2186 = vpop.f32.mrb[0].mxu0
        %2187 = vdwg.mxu0
        %v2188 = vadd.f32 %v2183, %v2024
        %s2189 = scalar_lea.vmem %s14, 1
        %v2190 = vld [vmem:[%s2189] sm:$0x1]
        %s2191 = scalar_lea.vmem %s15, 1
        %v2192 = vld [vmem:[%s2191] sm:$0x1]
        %v2193 = vsel %vm535, %v2188, 0.0
        %2194 = vadd.xlane.f32.xlu0 %v2193
        %v2195 = vpop.xlane.xlu0 %2194
        %v2196 = vmul.f32 %v2195, %v539
        %v2197 = vsub.f32 %v2188, %v2196
        %v2198 = vmul.f32 %v2197, %v2197
        %v2199 = vsel %vm535, %v2198, 0.0
        %2200 = vadd.xlane.f32.xlu0 %v2199
        %v2201 = vpop.xlane.xlu0 %2200
        %v2202 = vmul.f32 %v2201, %v539
        %v2203 = vadd.f32 %v2202, 1e-12
        %v2204 = vrsqrt.pop %v2203
        %v2205 = vmul.f32 %v2197, %v2204
        %v2207 = vlaneseq
        %v2208 = vshrl.u32 %v2207, 7
        %v2209 = vsub.s32 0, %v2208
        %v2210 = vrot.slane %v2190, %v2209
        %v2212 = vmul.f32 %v2205, %v2210
        %v2214 = vlaneseq
        %v2215 = vshrl.u32 %v2214, 7
        %v2216 = vsub.s32 0, %v2215
        %v2217 = vrot.slane %v2192, %v2216
        %v2219 = vadd.f32 %v2212, %v2217
        %2220 = vst.msk [vmem:[%s523] sm:$0xff] %vm535, %v2219
        %s2221 = sand.u32 %s384, 1
        %s2222 = scalar_lea.sflag [#allocation3], %s2221
        %s2223 = sand.u32 %s384, 1
        %s2224 = smul.addr %s2223, 8
        %s2225 = scalar_lea.vmem [#allocation2], %s2224
        // Predicated region
        $region85: #{forward.1} parent=83 // pred_check
          %p2226 = pneg %p394
        $region86: #{forward.1} parent=83 // pred_check_branch
          %2228 = sbr.rel (%p2226) target = $region88
        $region87: #{forward.1} parent=83 // pred_region
          %s2230 = ssub.s32 128, 128
          %2231 = vsyncadd %s2222, %s2230
          %s2232 = smul.addr %s30, 128
          %s2233 = scalar_lea.hbm %s16, %s2232
          %s2235 = sshll.u32 %s2225, 4
          %s2236 = int_to_ptr.vmem [resolvable:$true] %s2235
          %2238 = dma.vmem_to_hbm [thread:$0]  %s2236, 128, %s2233, %s2222
        $region88: #{forward.1} parent=83 // pred_fallthru
          _
      $region84: #{forward.1} parent=5 // pred_fallthru
        _
      %p2239 = scmp.le.s32.totalorder 2, %s25
      // Predicated region
      $region89: #{forward.1} parent=5 // pred_check
        %p2240 = pneg %p2239
      $region90: #{forward.1} parent=5 // pred_check_branch
        %2242 = sbr.rel (%p2240) target = $region92
      $region91: #{forward.1} parent=5 // pred_region
        %s2243 = ssub.s32 %s25, 2
        // Predicated region
        $region93: #{forward.1} parent=91 // pred_check
          %p2244 = pneg %p400
        $region94: #{forward.1} parent=91 // pred_check_branch
          %2246 = sbr.rel (%p2244) target = $region96
        $region95: #{forward.1} parent=91 // pred_region
          %s2247 = sand.u32 %s385, 1
          %s2248 = scalar_lea.sflag [#allocation3], %s2247
          %s2249 = sand.u32 %s385, 1
          %s2250 = smul.addr %s2249, 8
          %s2251 = scalar_lea.vmem [#allocation2], %s2250
          %2252 = dma.done %s2248, 128
        $region96: #{forward.1} parent=91 // pred_fallthru
          _
      $region92: #{forward.1} parent=5 // pred_fallthru
        _
    $region6: #{forward.1} parent=1 // loop_footer
      %s29 = sadd.s32 1, %s25
    $region7: #{forward.1} parent=1 // loop_footer_branch
      %24 = sbr.rel target = $region3
    $region8: #{forward.1} parent=1 // loop_exit
      _
    %2253 = vsyncpa [#allocation3], 1
    %s2254 = scalar_lea.sflag [#allocation3], 1
    %2255 = vsyncpa %s2254, 1

</llo_original>
